<compile_context>
chip_gen: v7x
topology: tpu7x:2x2x1
jax: 0.10.0
libtpu: 0.0.40
codegen_flags: <defaults>
</compile_context>

<pallas_src>
import functools

import jax
import jax.numpy as jnp
from jax.experimental import pallas as pl
from jax.experimental.pallas import tpu as pltpu


# ----------------------------------------------------------------------------
# Pallas kernels: (Cout,K) @ (K,TM) + bias + PReLU (+/- residual), lane-dense
# ----------------------------------------------------------------------------
def _proj_kernel(p_ref, w_ref, b_ref, o_ref, *, alpha):
    # w: (Cout, K)   p: (1, K, TM)   b: (Cout, 1)   o: (1, Cout, TM)
    acc = jnp.dot(w_ref[...], p_ref[0], preferred_element_type=jnp.float32)
    acc = acc + b_ref[...]
    o_ref[0] = jnp.where(acc >= 0.0, acc, alpha * acc).astype(o_ref.dtype)


def _proj_res_kernel(p_ref, w_ref, b_ref, r_ref, o_ref, *, alpha, subtract):
    # same, plus fused residual (subtract=True -> y - r, else y + r)
    acc = jnp.dot(w_ref[...], p_ref[0], preferred_element_type=jnp.float32)
    acc = acc + b_ref[...]
    y = jnp.where(acc >= 0.0, acc, alpha * acc)
    r = r_ref[0].astype(jnp.float32)
    o_ref[0] = (y - r if subtract else y + r).astype(o_ref.dtype)


# ----------------------------------------------------------------------------
# pallas_call wrapper
# ----------------------------------------------------------------------------
def _choose_tile(mp, max_tile=2048):
    """Largest multiple of 128 that divides mp and is <= max_tile."""
    blocks = mp // 128
    best = 1
    for d in range(1, blocks + 1):
        if blocks % d == 0 and d * 128 <= max_tile:
            best = d
    return best * 128


def matmul_bias_prelu_T(patchesT, wT, bias, alpha, residual=None, subtract=False):
    """out[n] = prelu(wT @ patchesT[n] + b) (+/- residual[n]);  lane axis = M."""
    N, K, M = patchesT.shape
    Cout = wT.shape[0]
    Mp = ((M + 127) // 128) * 128
    if Mp != M:
        patchesT = jnp.pad(patchesT, ((0, 0), (0, 0), (0, Mp - M)))
        if residual is not None:
            residual = jnp.pad(residual, ((0, 0), (0, 0), (0, Mp - M)))
    TM = _choose_tile(Mp)

    b2 = bias.reshape(Cout, 1).astype(jnp.float32)

    in_specs = [
        pl.BlockSpec((1, K, TM), lambda n, m: (n, 0, m)),
        pl.BlockSpec((Cout, K), lambda n, m: (0, 0)),
        pl.BlockSpec((Cout, 1), lambda n, m: (0, 0)),
    ]
    args = [patchesT, wT, b2]

    if residual is None:
        kernel = functools.partial(_proj_kernel, alpha=alpha)
    else:
        kernel = functools.partial(_proj_res_kernel, alpha=alpha, subtract=subtract)
        in_specs.append(pl.BlockSpec((1, Cout, TM), lambda n, m: (n, 0, m)))
        args.append(residual.astype(jnp.float32))

    out = pl.pallas_call(
        kernel,
        out_shape=jax.ShapeDtypeStruct((N, Cout, Mp), jnp.float32),
        grid=(N, Mp // TM),
        in_specs=in_specs,
        out_specs=pl.BlockSpec((1, Cout, TM), lambda n, m: (n, 0, m)),
        compiler_params=pltpu.CompilerParams(
            dimension_semantics=("parallel", "parallel")),
    )(*args)
    return out[:, :, :M]


# ----------------------------------------------------------------------------
# conv / transposed-conv (NCHW) on top of the transposed-matmul kernel
# ----------------------------------------------------------------------------
def conv2d_prelu(x, w_oihw, bias, alpha, k, s, p, residual=None, subtract=False,
                 compute_dtype=jnp.bfloat16):
    """Conv2d(stride=s, pad=p) + bias + PReLU (+ fused residual).  x: NCHW."""
    N, C, H, W = x.shape
    Cout = w_oihw.shape[0]
    OH = (H + 2 * p - k) // s + 1
    OW = (W + 2 * p - k) // s + 1
    xp = jnp.pad(x, ((0, 0), (0, 0), (p, p), (p, p))) if p else x

    slabs = []
    for kh in range(k):
        for kw in range(k):
            slabs.append(xp[:, :, kh:kh + (OH - 1) * s + 1:s,
                             kw:kw + (OW - 1) * s + 1:s])
    pT = jnp.stack(slabs, axis=1).reshape(N, k * k * C, OH * OW)
    wT = jnp.transpose(w_oihw, (0, 2, 3, 1)).reshape(Cout, k * k * C)

    res = residual.reshape(N, Cout, OH * OW) if residual is not None else None
    out = matmul_bias_prelu_T(pT.astype(compute_dtype), wT.astype(compute_dtype),
                              bias, alpha, residual=res, subtract=subtract)
    return out.reshape(N, Cout, OH, OW)


def deconv2d_prelu(x, w_iohw, bias, alpha, k, s, p, residual=None,
                   compute_dtype=jnp.bfloat16):
    """ConvTranspose2d(stride=s, pad=p) + bias + PReLU (+ fused residual add).

    Sub-pixel (phase) decomposition: for each output phase (ph, pw) the output
    is an independent stride-1 conv with the corresponding sub-kernel -> no
    zero-dilated patches.  w: (Cin, Cout, kh, kw), x: NCHW."""
    N, C, H, W = x.shape
    Cout = w_iohw.shape[1]
    OH = (H - 1) * s - 2 * p + k
    OW = (W - 1) * s - 2 * p + k

    out = jnp.zeros((N, Cout, OH, OW), jnp.float32)
    for ph in range(s):
        for pw in range(s):
            rh, ch = (ph + p) % s, (ph + p) // s
            rw, cw = (pw + p) % s, (pw + p) // s
            nth = len(range(rh, k, s))
            ntw = len(range(rw, k, s))
            Qh = len(range(ph, OH, s))
            Qw = len(range(pw, OW, s))

            pad_t = max(0, (nth - 1) - ch)
            pad_b = max(0, Qh - 1 + ch - (H - 1))
            pad_l = max(0, (ntw - 1) - cw)
            pad_r = max(0, Qw - 1 + cw - (W - 1))
            xp = jnp.pad(x, ((0, 0), (0, 0), (pad_t, pad_b), (pad_l, pad_r)))

            slabs = []
            for eh in range(nth):                     # tap kh = eh*s + rh
                for ew in range(ntw):                 # tap kw = ew*s + rw
                    r0 = ch - eh + pad_t
                    c0 = cw - ew + pad_l
                    slabs.append(xp[:, :, r0:r0 + Qh, c0:c0 + Qw])
            pT = jnp.stack(slabs, axis=1).reshape(N, nth * ntw * C, Qh * Qw)

            wsub = w_iohw[:, :, rh::s, rw::s]                      # (Cin,Cout,nth,ntw)
            wT = jnp.transpose(wsub, (1, 2, 3, 0)).reshape(Cout, nth * ntw * C)

            res = (residual[:, :, ph::s, pw::s].reshape(N, Cout, Qh * Qw)
                   if residual is not None else None)
            y = matmul_bias_prelu_T(pT.astype(compute_dtype),
                                    wT.astype(compute_dtype),
                                    bias, alpha, residual=res, subtract=False)
            out = out.at[:, :, ph::s, pw::s].set(y.reshape(N, Cout, Qh, Qw))
    return out


# ----------------------------------------------------------------------------
# D_UpprojBlock forward (Pallas path) — NCHW in / NCHW out, no transposes
# ----------------------------------------------------------------------------
@functools.partial(jax.jit, static_argnames=("k", "s", "p", "compute_dtype"))
def d_upproj_block(x_nchw, params, k, s, p, compute_dtype=jnp.bfloat16):
    alpha = 0.2  # PReLU(num_parameters=1, init=0.2) for every activation
    x1 = conv2d_prelu(x_nchw, params["c1w"], params["c1b"], alpha, 1, 1, 0,
                      compute_dtype=compute_dtype)                       # conv_1
    H0 = deconv2d_prelu(x1, params["d1w"], params["d1b"], alpha, k, s, p,
                        compute_dtype=compute_dtype)                     # deconv_1
    diff = conv2d_prelu(H0, params["c2w"], params["c2b"], alpha, k, s, p,
                        residual=x1, subtract=True,
                        compute_dtype=compute_dtype)                     # conv_2, fused (L_0_t - x)
    out = deconv2d_prelu(diff, params["d2w"], params["d2b"], alpha, k, s, p,
                         residual=H0, compute_dtype=compute_dtype)       # deconv_2, fused (+ H_0_t)
    return out


# ----------------------------------------------------------------------------
# Pure-JAX reference (for correctness check)
# ----------------------------------------------------------------------------
def _prelu(x, a):
    return jnp.where(x >= 0, x, a * x)


def ref_forward(x, params, k, s, p):
    a = 0.2
    dn = ("NCHW", "OIHW", "NCHW")

    def conv(x, w, b, st, pd):
        y = jax.lax.conv_general_dilated(x, w, (st, st), [(pd, pd), (pd, pd)],
                                         dimension_numbers=dn)
        return y + b[None, :, None, None]

    def deconv(x, w, b, st, pd):
        wc = jnp.transpose(w, (1, 0, 2, 3))[:, :, ::-1, ::-1]
        y = jax.lax.conv_general_dilated(x, wc, (1, 1),
                                         [(k - 1 - pd, k - 1 - pd)] * 2,
                                         lhs_dilation=(st, st),
                                         dimension_numbers=dn)
        return y + b[None, :, None, None]

    x1 = _prelu(conv(x, params["c1w"], params["c1b"], 1, 0), a)
    H0 = _prelu(deconv(x1, params["d1w"], params["d1b"], s, p), a)
    L0 = _prelu(conv(H0, params["c2w"], params["c2b"], s, p), a)
    H1 = _prelu(deconv(L0 - x1, params["d2w"], params["d2b"], s, p), a)
    return H1 + H0


# ----------------------------------------------------------------------------
if __name__ == "__main__":
    jax.config.update("jax_default_matmul_precision", "highest")

    N, Cin, Cout, H, W = 2, 4, 8, 8, 8
    k, s, p = 4, 2, 1          # deconvs double spatial size, conv_2 halves it back

    keys = jax.random.split(jax.random.PRNGKey(0), 10)
    x = jax.random.normal(keys[0], (N, Cin, H, W), jnp.float32)
    params = {
        "c1w": 0.1 * jax.random.normal(keys[1], (Cout, Cin, 1, 1), jnp.float32),
        "c1b": 0.1 * jax.random.normal(keys[2], (Cout,), jnp.float32),
        "d1w": 0.1 * jax.random.normal(keys[3], (Cout, Cout, k, k), jnp.float32),
        "d1b": 0.1 * jax.random.normal(keys[4], (Cout,), jnp.float32),
        "c2w": 0.1 * jax.random.normal(keys[5], (Cout, Cout, k, k), jnp.float32),
        "c2b": 0.1 * jax.random.normal(keys[6], (Cout,), jnp.float32),
        "d2w": 0.1 * jax.random.normal(keys[7], (Cout, Cout, k, k), jnp.float32),
        "d2b": 0.1 * jax.random.normal(keys[8], (Cout,), jnp.float32),
    }

    ref = jax.block_until_ready(ref_forward(x, params, k, s, p))
    OH = (H - 1) * s - 2 * p + k        # PyTorch ConvTranspose2d output size

    # f32 compute path: tight structural / numerical check
    out32 = jax.block_until_ready(
        d_upproj_block(x, params, k=k, s=s, p=p, compute_dtype=jnp.float32))
    assert out32.shape == (N, Cout, OH, OH), out32.shape
    err32 = float(jnp.max(jnp.abs(out32 - ref)))
    assert err32 < 2e-3, f"f32 path max abs error {err32}"

    # bf16 MXU path (default / optimized): looser tolerance for bf16 rounding
    out16 = jax.block_until_ready(d_upproj_block(x, params, k=k, s=s, p=p))
    assert out16.shape == (N, Cout, OH, OH), out16.shape
    err16 = float(jnp.max(jnp.abs(out16 - ref)))
    assert err16 < 3e-2, f"bf16 path max abs error {err16}"

    print("KERNEL_OK")
</pallas_src>

<mosaic_0001>
module attributes {stable_mosaic.version = 11 : i64} {
  func.func @_proj_kernel(%arg0: i32, %arg1: i32, %arg2: memref<1x4x128xf32, #tpu.memory_space<vmem>>, %arg3: memref<8x4xf32, #tpu.memory_space<vmem>>, %arg4: memref<8x1xf32, #tpu.memory_space<vmem>>, %arg5: memref<1x8x128xf32, #tpu.memory_space<vmem>>) attributes {dimension_semantics = [#tpu.dimension_semantics<parallel>, #tpu.dimension_semantics<parallel>], iteration_bounds = array<i64: 2, 1>, scalar_prefetch = 0 : i64, scratch_operands = 0 : i64, tpu.core_type = #tpu.core_type<tc>, window_params = [{transform_indices = @transform_0, window_bounds = array<i64: 1, 4, 128>}, {pipeline_mode = #tpu.pipeline_mode<synchronous>, transform_indices = @transform_1, window_bounds = array<i64: 8, 4>}, {pipeline_mode = #tpu.pipeline_mode<synchronous>, transform_indices = @transform_2, window_bounds = array<i64: 8, 1>}, {transform_indices = @transform_3, window_bounds = array<i64: 1, 8, 128>}]} {
    %c0 = arith.constant 0 : index
    %c0_0 = arith.constant 0 : index
    %0 = vector.load %arg3[%c0, %c0_0] : memref<8x4xf32, #tpu.memory_space<vmem>>, vector<8x4xf32>
    %c0_1 = arith.constant 0 : index
    %c0_2 = arith.constant 0 : index
    %c0_3 = arith.constant 0 : index
    %1 = vector.load %arg2[%c0_1, %c0_2, %c0_3] : memref<1x4x128xf32, #tpu.memory_space<vmem>>, vector<1x4x128xf32>
    %2 = vector.shape_cast %1 : vector<1x4x128xf32> to vector<4x128xf32>
    %cst = arith.constant dense<0.000000e+00> : vector<8x128xf32>
    %3 = tpu.matmul %0, %2, %cst {dimension_numbers = #tpu.dot_dimension_numbers<[1], [0], [0], [1], [0, 0, 1, 1], [], []>, precision = #tpu.contract_precision<fp32>} : vector<8x4xf32>, vector<4x128xf32>, vector<8x128xf32> -> vector<8x128xf32>
    %c0_4 = arith.constant 0 : index
    %c0_5 = arith.constant 0 : index
    %4 = vector.load %arg4[%c0_4, %c0_5] : memref<8x1xf32, #tpu.memory_space<vmem>>, vector<8x1xf32>
    %5 = vector.broadcast %4 : vector<8x1xf32> to vector<8x128xf32>
    %6 = arith.addf %3, %5 : vector<8x128xf32>
    %cst_6 = arith.constant 0.000000e+00 : f32
    %7 = vector.broadcast %cst_6 : f32 to vector<8x128xf32>
    %8 = arith.cmpf oge, %6, %7 : vector<8x128xf32>
    %cst_7 = arith.constant 2.000000e-01 : f32
    %9 = vector.broadcast %cst_7 : f32 to vector<8x128xf32>
    %10 = arith.mulf %9, %6 : vector<8x128xf32>
    %11 = arith.select %8, %6, %10 : vector<8x128xi1>, vector<8x128xf32>
    %c0_8 = arith.constant 0 : index
    %c0_9 = arith.constant 0 : index
    %c0_10 = arith.constant 0 : index
    %12 = vector.load %arg5[%c0_8, %c0_9, %c0_10] : memref<1x8x128xf32, #tpu.memory_space<vmem>>, vector<1x8x128xf32>
    %13 = vector.shape_cast %12 : vector<1x8x128xf32> to vector<8x128xf32>
    %14 = vector.shape_cast %11 : vector<8x128xf32> to vector<1x8x128xf32>
    tpu.vector_store %arg5[%c0_8, %c0_9, %c0_10], %14 {strides = array<i32>} : memref<1x8x128xf32, #tpu.memory_space<vmem>>, vector<1x8x128xf32>,
    return
  }
  func.func @transform_0(%arg0: i32, %arg1: i32) -> (i32, i32, i32) {
    %c0_i32 = arith.constant 0 : i32
    %c0_i32_0 = arith.constant 0 : i32
    return %arg0, %c0_i32, %arg1 : i32, i32, i32
  }
  func.func @transform_1(%arg0: i32, %arg1: i32) -> (i32, i32) {
    %c0_i32 = arith.constant 0 : i32
    %c0_i32_0 = arith.constant 0 : i32
    %c0_i32_1 = arith.constant 0 : i32
    return %c0_i32, %c0_i32_0 : i32, i32
  }
  func.func @transform_2(%arg0: i32, %arg1: i32) -> (i32, i32) {
    %c0_i32 = arith.constant 0 : i32
    %c0_i32_0 = arith.constant 0 : i32
    %c0_i32_1 = arith.constant 0 : i32
    return %c0_i32, %c0_i32_0 : i32, i32
  }
  func.func @transform_3(%arg0: i32, %arg1: i32) -> (i32, i32, i32) {
    %c0_i32 = arith.constant 0 : i32
    %c0_i32_0 = arith.constant 0 : i32
    return %arg0, %c0_i32, %arg1 : i32, i32, i32
  }
}

module attributes {stable_mosaic.version = 11 : i64} {
  func.func @_proj_kernel(%arg0: i32, %arg1: i32, %arg2: memref<1x32x128xf32, #tpu.memory_space<vmem>>, %arg3: memref<8x32xf32, #tpu.memory_space<vmem>>, %arg4: memref<8x1xf32, #tpu.memory_space<vmem>>, %arg5: memref<1x8x128xf32, #tpu.memory_space<vmem>>) attributes {dimension_semantics = [#tpu.dimension_semantics<parallel>, #tpu.dimension_semantics<parallel>], iteration_bounds = array<i64: 2, 1>, scalar_prefetch = 0 : i64, scratch_operands = 0 : i64, tpu.core_type = #tpu.core_type<tc>, window_params = [{transform_indices = @transform_0, window_bounds = array<i64: 1, 32, 128>}, {pipeline_mode = #tpu.pipeline_mode<synchronous>, transform_indices = @transform_1, window_bounds = array<i64: 8, 32>}, {pipeline_mode = #tpu.pipeline_mode<synchronous>, transform_indices = @transform_2, window_bounds = array<i64: 8, 1>}, {transform_indices = @transform_3, window_bounds = array<i64: 1, 8, 128>}]} {
    %c0 = arith.constant 0 : index
    %c0_0 = arith.constant 0 : index
    %0 = vector.load %arg3[%c0, %c0_0] : memref<8x32xf32, #tpu.memory_space<vmem>>, vector<8x32xf32>
    %c0_1 = arith.constant 0 : index
    %c0_2 = arith.constant 0 : index
    %c0_3 = arith.constant 0 : index
    %1 = vector.load %arg2[%c0_1, %c0_2, %c0_3] : memref<1x32x128xf32, #tpu.memory_space<vmem>>, vector<1x32x128xf32>
    %2 = vector.shape_cast %1 : vector<1x32x128xf32> to vector<32x128xf32>
    %cst = arith.constant dense<0.000000e+00> : vector<8x128xf32>
    %3 = tpu.matmul %0, %2, %cst {dimension_numbers = #tpu.dot_dimension_numbers<[1], [0], [0], [1], [0, 0, 1, 1], [], []>, precision = #tpu.contract_precision<fp32>} : vector<8x32xf32>, vector<32x128xf32>, vector<8x128xf32> -> vector<8x128xf32>
    %c0_4 = arith.constant 0 : index
    %c0_5 = arith.constant 0 : index
    %4 = vector.load %arg4[%c0_4, %c0_5] : memref<8x1xf32, #tpu.memory_space<vmem>>, vector<8x1xf32>
    %5 = vector.broadcast %4 : vector<8x1xf32> to vector<8x128xf32>
    %6 = arith.addf %3, %5 : vector<8x128xf32>
    %cst_6 = arith.constant 0.000000e+00 : f32
    %7 = vector.broadcast %cst_6 : f32 to vector<8x128xf32>
    %8 = arith.cmpf oge, %6, %7 : vector<8x128xf32>
    %cst_7 = arith.constant 2.000000e-01 : f32
    %9 = vector.broadcast %cst_7 : f32 to vector<8x128xf32>
    %10 = arith.mulf %9, %6 : vector<8x128xf32>
    %11 = arith.select %8, %6, %10 : vector<8x128xi1>, vector<8x128xf32>
    %c0_8 = arith.constant 0 : index
    %c0_9 = arith.constant 0 : index
    %c0_10 = arith.constant 0 : index
    %12 = vector.load %arg5[%c0_8, %c0_9, %c0_10] : memref<1x8x128xf32, #tpu.memory_space<vmem>>, vector<1x8x128xf32>
    %13 = vector.shape_cast %12 : vector<1x8x128xf32> to vector<8x128xf32>
    %14 = vector.shape_cast %11 : vector<8x128xf32> to vector<1x8x128xf32>
    tpu.vector_store %arg5[%c0_8, %c0_9, %c0_10], %14 {strides = array<i32>} : memref<1x8x128xf32, #tpu.memory_space<vmem>>, vector<1x8x128xf32>,
    return
  }
  func.func @transform_0(%arg0: i32, %arg1: i32) -> (i32, i32, i32) {
    %c0_i32 = arith.constant 0 : i32
    %c0_i32_0 = arith.constant 0 : i32
    return %arg0, %c0_i32, %arg1 : i32, i32, i32
  }
  func.func @transform_1(%arg0: i32, %arg1: i32) -> (i32, i32) {
    %c0_i32 = arith.constant 0 : i32
    %c0_i32_0 = arith.constant 0 : i32
    %c0_i32_1 = arith.constant 0 : i32
    return %c0_i32, %c0_i32_0 : i32, i32
  }
  func.func @transform_2(%arg0: i32, %arg1: i32) -> (i32, i32) {
    %c0_i32 = arith.constant 0 : i32
    %c0_i32_0 = arith.constant 0 : i32
    %c0_i32_1 = arith.constant 0 : i32
    return %c0_i32, %c0_i32_0 : i32, i32
  }
  func.func @transform_3(%arg0: i32, %arg1: i32) -> (i32, i32, i32) {
    %c0_i32 = arith.constant 0 : i32
    %c0_i32_0 = arith.constant 0 : i32
    return %arg0, %c0_i32, %arg1 : i32, i32, i32
  }
}

module attributes {stable_mosaic.version = 11 : i64} {
  func.func @_proj_res_kernel(%arg0: i32, %arg1: i32, %arg2: memref<1x128x128xf32, #tpu.memory_space<vmem>>, %arg3: memref<8x128xf32, #tpu.memory_space<vmem>>, %arg4: memref<8x1xf32, #tpu.memory_space<vmem>>, %arg5: memref<1x8x128xf32, #tpu.memory_space<vmem>>, %arg6: memref<1x8x128xf32, #tpu.memory_space<vmem>>) attributes {dimension_semantics = [#tpu.dimension_semantics<parallel>, #tpu.dimension_semantics<parallel>], iteration_bounds = array<i64: 2, 1>, scalar_prefetch = 0 : i64, scratch_operands = 0 : i64, tpu.core_type = #tpu.core_type<tc>, window_params = [{transform_indices = @transform_0, window_bounds = array<i64: 1, 128, 128>}, {pipeline_mode = #tpu.pipeline_mode<synchronous>, transform_indices = @transform_1, window_bounds = array<i64: 8, 128>}, {pipeline_mode = #tpu.pipeline_mode<synchronous>, transform_indices = @transform_2, window_bounds = array<i64: 8, 1>}, {transform_indices = @transform_3, window_bounds = array<i64: 1, 8, 128>}, {transform_indices = @transform_4, window_bounds = array<i64: 1, 8, 128>}]} {
    %c0 = arith.constant 0 : index
    %c0_0 = arith.constant 0 : index
    %0 = vector.load %arg3[%c0, %c0_0] : memref<8x128xf32, #tpu.memory_space<vmem>>, vector<8x128xf32>
    %c0_1 = arith.constant 0 : index
    %c0_2 = arith.constant 0 : index
    %c0_3 = arith.constant 0 : index
    %1 = vector.load %arg2[%c0_1, %c0_2, %c0_3] : memref<1x128x128xf32, #tpu.memory_space<vmem>>, vector<1x128x128xf32>
    %2 = vector.shape_cast %1 : vector<1x128x128xf32> to vector<128x128xf32>
    %cst = arith.constant dense<0.000000e+00> : vector<8x128xf32>
    %3 = tpu.matmul %0, %2, %cst {dimension_numbers = #tpu.dot_dimension_numbers<[1], [0], [0], [1], [0, 0, 1, 1], [], []>, precision = #tpu.contract_precision<fp32>} : vector<8x128xf32>, vector<128x128xf32>, vector<8x128xf32> -> vector<8x128xf32>
    %c0_4 = arith.constant 0 : index
    %c0_5 = arith.constant 0 : index
    %4 = vector.load %arg4[%c0_4, %c0_5] : memref<8x1xf32, #tpu.memory_space<vmem>>, vector<8x1xf32>
    %5 = vector.broadcast %4 : vector<8x1xf32> to vector<8x128xf32>
    %6 = arith.addf %3, %5 : vector<8x128xf32>
    %cst_6 = arith.constant 0.000000e+00 : f32
    %7 = vector.broadcast %cst_6 : f32 to vector<8x128xf32>
    %8 = arith.cmpf oge, %6, %7 : vector<8x128xf32>
    %cst_7 = arith.constant 2.000000e-01 : f32
    %9 = vector.broadcast %cst_7 : f32 to vector<8x128xf32>
    %10 = arith.mulf %9, %6 : vector<8x128xf32>
    %11 = arith.select %8, %6, %10 : vector<8x128xi1>, vector<8x128xf32>
    %c0_8 = arith.constant 0 : index
    %c0_9 = arith.constant 0 : index
    %c0_10 = arith.constant 0 : index
    %12 = vector.load %arg5[%c0_8, %c0_9, %c0_10] : memref<1x8x128xf32, #tpu.memory_space<vmem>>, vector<1x8x128xf32>
    %13 = vector.shape_cast %12 : vector<1x8x128xf32> to vector<8x128xf32>
    %14 = arith.subf %11, %13 : vector<8x128xf32>
    %c0_11 = arith.constant 0 : index
    %c0_12 = arith.constant 0 : index
    %c0_13 = arith.constant 0 : index
    %15 = vector.load %arg6[%c0_11, %c0_12, %c0_13] : memref<1x8x128xf32, #tpu.memory_space<vmem>>, vector<1x8x128xf32>
    %16 = vector.shape_cast %15 : vector<1x8x128xf32> to vector<8x128xf32>
    %17 = vector.shape_cast %14 : vector<8x128xf32> to vector<1x8x128xf32>
    tpu.vector_store %arg6[%c0_11, %c0_12, %c0_13], %17 {strides = array<i32>} : memref<1x8x128xf32, #tpu.memory_space<vmem>>, vector<1x8x128xf32>,
    return
  }
  func.func @transform_0(%arg0: i32, %arg1: i32) -> (i32, i32, i32) {
    %c0_i32 = arith.constant 0 : i32
    %c0_i32_0 = arith.constant 0 : i32
    return %arg0, %c0_i32, %arg1 : i32, i32, i32
  }
  func.func @transform_1(%arg0: i32, %arg1: i32) -> (i32, i32) {
    %c0_i32 = arith.constant 0 : i32
    %c0_i32_0 = arith.constant 0 : i32
    %c0_i32_1 = arith.constant 0 : i32
    return %c0_i32, %c0_i32_0 : i32, i32
  }
  func.func @transform_2(%arg0: i32, %arg1: i32) -> (i32, i32) {
    %c0_i32 = arith.constant 0 : i32
    %c0_i32_0 = arith.constant 0 : i32
    %c0_i32_1 = arith.constant 0 : i32
    return %c0_i32, %c0_i32_0 : i32, i32
  }
  func.func @transform_3(%arg0: i32, %arg1: i32) -> (i32, i32, i32) {
    %c0_i32 = arith.constant 0 : i32
    %c0_i32_0 = arith.constant 0 : i32
    return %arg0, %c0_i32, %arg1 : i32, i32, i32
  }
  func.func @transform_4(%arg0: i32, %arg1: i32) -> (i32, i32, i32) {
    %c0_i32 = arith.constant 0 : i32
    %c0_i32_0 = arith.constant 0 : i32
    return %arg0, %c0_i32, %arg1 : i32, i32, i32
  }
}

module attributes {stable_mosaic.version = 11 : i64} {
  func.func @_proj_res_kernel(%arg0: i32, %arg1: i32, %arg2: memref<1x32x128xf32, #tpu.memory_space<vmem>>, %arg3: memref<8x32xf32, #tpu.memory_space<vmem>>, %arg4: memref<8x1xf32, #tpu.memory_space<vmem>>, %arg5: memref<1x8x128xf32, #tpu.memory_space<vmem>>, %arg6: memref<1x8x128xf32, #tpu.memory_space<vmem>>) attributes {dimension_semantics = [#tpu.dimension_semantics<parallel>, #tpu.dimension_semantics<parallel>], iteration_bounds = array<i64: 2, 1>, scalar_prefetch = 0 : i64, scratch_operands = 0 : i64, tpu.core_type = #tpu.core_type<tc>, window_params = [{transform_indices = @transform_0, window_bounds = array<i64: 1, 32, 128>}, {pipeline_mode = #tpu.pipeline_mode<synchronous>, transform_indices = @transform_1, window_bounds = array<i64: 8, 32>}, {pipeline_mode = #tpu.pipeline_mode<synchronous>, transform_indices = @transform_2, window_bounds = array<i64: 8, 1>}, {transform_indices = @transform_3, window_bounds = array<i64: 1, 8, 128>}, {transform_indices = @transform_4, window_bounds = array<i64: 1, 8, 128>}]} {
    %c0 = arith.constant 0 : index
    %c0_0 = arith.constant 0 : index
    %0 = vector.load %arg3[%c0, %c0_0] : memref<8x32xf32, #tpu.memory_space<vmem>>, vector<8x32xf32>
    %c0_1 = arith.constant 0 : index
    %c0_2 = arith.constant 0 : index
    %c0_3 = arith.constant 0 : index
    %1 = vector.load %arg2[%c0_1, %c0_2, %c0_3] : memref<1x32x128xf32, #tpu.memory_space<vmem>>, vector<1x32x128xf32>
    %2 = vector.shape_cast %1 : vector<1x32x128xf32> to vector<32x128xf32>
    %cst = arith.constant dense<0.000000e+00> : vector<8x128xf32>
    %3 = tpu.matmul %0, %2, %cst {dimension_numbers = #tpu.dot_dimension_numbers<[1], [0], [0], [1], [0, 0, 1, 1], [], []>, precision = #tpu.contract_precision<fp32>} : vector<8x32xf32>, vector<32x128xf32>, vector<8x128xf32> -> vector<8x128xf32>
    %c0_4 = arith.constant 0 : index
    %c0_5 = arith.constant 0 : index
    %4 = vector.load %arg4[%c0_4, %c0_5] : memref<8x1xf32, #tpu.memory_space<vmem>>, vector<8x1xf32>
    %5 = vector.broadcast %4 : vector<8x1xf32> to vector<8x128xf32>
    %6 = arith.addf %3, %5 : vector<8x128xf32>
    %cst_6 = arith.constant 0.000000e+00 : f32
    %7 = vector.broadcast %cst_6 : f32 to vector<8x128xf32>
    %8 = arith.cmpf oge, %6, %7 : vector<8x128xf32>
    %cst_7 = arith.constant 2.000000e-01 : f32
    %9 = vector.broadcast %cst_7 : f32 to vector<8x128xf32>
    %10 = arith.mulf %9, %6 : vector<8x128xf32>
    %11 = arith.select %8, %6, %10 : vector<8x128xi1>, vector<8x128xf32>
    %c0_8 = arith.constant 0 : index
    %c0_9 = arith.constant 0 : index
    %c0_10 = arith.constant 0 : index
    %12 = vector.load %arg5[%c0_8, %c0_9, %c0_10] : memref<1x8x128xf32, #tpu.memory_space<vmem>>, vector<1x8x128xf32>
    %13 = vector.shape_cast %12 : vector<1x8x128xf32> to vector<8x128xf32>
    %14 = arith.addf %11, %13 : vector<8x128xf32>
    %c0_11 = arith.constant 0 : index
    %c0_12 = arith.constant 0 : index
    %c0_13 = arith.constant 0 : index
    %15 = vector.load %arg6[%c0_11, %c0_12, %c0_13] : memref<1x8x128xf32, #tpu.memory_space<vmem>>, vector<1x8x128xf32>
    %16 = vector.shape_cast %15 : vector<1x8x128xf32> to vector<8x128xf32>
    %17 = vector.shape_cast %14 : vector<8x128xf32> to vector<1x8x128xf32>
    tpu.vector_store %arg6[%c0_11, %c0_12, %c0_13], %17 {strides = array<i32>} : memref<1x8x128xf32, #tpu.memory_space<vmem>>, vector<1x8x128xf32>,
    return
  }
  func.func @transform_0(%arg0: i32, %arg1: i32) -> (i32, i32, i32) {
    %c0_i32 = arith.constant 0 : i32
    %c0_i32_0 = arith.constant 0 : i32
    return %arg0, %c0_i32, %arg1 : i32, i32, i32
  }
  func.func @transform_1(%arg0: i32, %arg1: i32) -> (i32, i32) {
    %c0_i32 = arith.constant 0 : i32
    %c0_i32_0 = arith.constant 0 : i32
    %c0_i32_1 = arith.constant 0 : i32
    return %c0_i32, %c0_i32_0 : i32, i32
  }
  func.func @transform_2(%arg0: i32, %arg1: i32) -> (i32, i32) {
    %c0_i32 = arith.constant 0 : i32
    %c0_i32_0 = arith.constant 0 : i32
    %c0_i32_1 = arith.constant 0 : i32
    return %c0_i32, %c0_i32_0 : i32, i32
  }
  func.func @transform_3(%arg0: i32, %arg1: i32) -> (i32, i32, i32) {
    %c0_i32 = arith.constant 0 : i32
    %c0_i32_0 = arith.constant 0 : i32
    return %arg0, %c0_i32, %arg1 : i32, i32, i32
  }
  func.func @transform_4(%arg0: i32, %arg1: i32) -> (i32, i32, i32) {
    %c0_i32 = arith.constant 0 : i32
    %c0_i32_0 = arith.constant 0 : i32
    return %arg0, %c0_i32, %arg1 : i32, i32, i32
  }
}

</mosaic_0001>

<llo_original>
// kernel: d_upproj_block.10
$region0: #{d_upproj_block.10}
  #allocation0 [shape = 'u32[]', space=smem, size = 0x4, offset = 0x4, fixed_abs, tag = 'smem constant byte address 0x4 - core index']
  #allocation1 [shape = 'u32[144,128]{1,0:T(1,128)}', space=vmem, size = 0x12000, scoped, tag = 'internal scratch']
  %s0 = inlined_call_operand.vmem [shape: f32[2,4,128], index: 0, kind: input, shape index: {}]
  %s1 = inlined_call_operand.vmem [shape: f32[8,4], index: 1, kind: input, shape index: {}]
  %s2 = inlined_call_operand.vmem [shape: f32[8,1], index: 2, kind: input, shape index: {}]
  %s3 = inlined_call_operand.vmem [shape: f32[2,8,128], index: 3, kind: output, shape index: {}]
  %s4 = sld [smem:[#allocation0]]
  $region45: #{d_upproj_block.10} parent=0
    _
  %s6 = ssub.s32 1, %s4
  %s7 = scalar_select 0, %s6, %s4
  loop: start=0, step=1, limit=4
  $region2: #{d_upproj_block.10} parent=0 // loop_pre_header
    _
  $region3: #{d_upproj_block.10} parent=0 // loop_header
    %s9 = sphi 0, %s13
    %p10 = scmp.ge.s32.totalorder %s9, 4
    %s16 = sphi 0, %s28
    %s17 = sphi 0, %s24
    %s18 = sphi 0, %s16
    %s19 = sphi 0, %s17
    %s20 = sphi 0, %s18
    %s21 = sphi 0, %s19
    %s33 = sphi 0, %s35
    %s36 = sphi 0, %s33
    %s37 = sphi 0, %s36
    %s53 = sphi 0, %s37
    %s57 = sphi 0, %s57
    %s59 = sphi 0, %s57
    %s60 = sphi 0, %s59
    %s74 = sphi 0, %s60
    %s78 = sphi 0, %s78
    %s80 = sphi 0, %s78
    %s81 = sphi 0, %s80
    %s95 = sphi 0, %s81
    %s103 = sphi 0, %s105
    %s106 = sphi 0, %s103
    %s107 = sphi 0, %s106
    %s123 = sphi 0, %s107
  $region4: #{d_upproj_block.10} parent=0 // loop_header_branch
    %12 = sbr.rel (%p10) target = $region8
  $region5: #{d_upproj_block.10} parent=0 // loop_body
    %s14 = ssub.s32 %s9, 1
    %s15 = ssub.s32 %s9, 2
    %s22 = sadd.s32 1, %s17
    %p23 = scmp.ge.s32.totalorder %s22, 1
    %s24 = scalar_select %p23, 0, %s22
    %s25 = sadd.s32 1, %s16
    %s26 = scalar_select %p23, %s25, %s16
    %p27 = scmp.ge.s32.totalorder %s26, 2
    %s28 = scalar_select %p27, 0, %s26
    %s29 = ssub.s32 %s16, %s28
    %s30 = ssub.s32 %s17, %s24
    %s31 = sor.u32 %s29, %s30
    %p32 = scmp.eq.s32.totalorder %s31, 0
    %s34 = sadd.s32 %s33, 1
    %s35 = scalar_select %p32, %s33, %s34
    %p38 = pneg %p32
    %p39 = scmp.eq.s32.totalorder %s9, 1
    %p40 = por %p38, %p39
    %p41 = scmp.ne.s32.totalorder %s33, %s36
    %p42 = scmp.eq.s32.totalorder %s9, 0
    %p43 = por %p41, %p42
    %p44 = scmp.ne.s32.totalorder %s33, %s36
    %p45 = scmp.eq.s32.totalorder %s14, 1
    %p46 = por %p44, %p45
    %p47 = scmp.ne.s32.totalorder %s36, %s37
    %p48 = scmp.eq.s32.totalorder %s14, 0
    %p49 = por %p47, %p48
    %p50 = scmp.ne.s32.totalorder %s36, %s37
    %p51 = scmp.eq.s32.totalorder %s15, 1
    %p52 = por %p50, %p51
    %p54 = scmp.ne.s32.totalorder %s37, %s53
    %p55 = scmp.eq.s32.totalorder %s15, 0
    %p56 = por %p54, %p55
    %s58 = sadd.s32 %s57, 1
    %p61 = scmp.eq.s32.totalorder %s9, 1
    %p62 = scmp.ne.s32.totalorder %s57, %s59
    %p63 = scmp.eq.s32.totalorder %s9, 0
    %p64 = por %p62, %p63
    %p65 = scmp.ne.s32.totalorder %s57, %s59
    %p66 = scmp.eq.s32.totalorder %s14, 1
    %p67 = por %p65, %p66
    %p68 = scmp.ne.s32.totalorder %s59, %s60
    %p69 = scmp.eq.s32.totalorder %s14, 0
    %p70 = por %p68, %p69
    %p71 = scmp.ne.s32.totalorder %s59, %s60
    %p72 = scmp.eq.s32.totalorder %s15, 1
    %p73 = por %p71, %p72
    %p75 = scmp.ne.s32.totalorder %s60, %s74
    %p76 = scmp.eq.s32.totalorder %s15, 0
    %p77 = por %p75, %p76
    %s79 = sadd.s32 %s78, 1
    %p82 = scmp.eq.s32.totalorder %s9, 1
    %p83 = scmp.ne.s32.totalorder %s78, %s80
    %p84 = scmp.eq.s32.totalorder %s9, 0
    %p85 = por %p83, %p84
    %p86 = scmp.ne.s32.totalorder %s78, %s80
    %p87 = scmp.eq.s32.totalorder %s14, 1
    %p88 = por %p86, %p87
    %p89 = scmp.ne.s32.totalorder %s80, %s81
    %p90 = scmp.eq.s32.totalorder %s14, 0
    %p91 = por %p89, %p90
    %p92 = scmp.ne.s32.totalorder %s80, %s81
    %p93 = scmp.eq.s32.totalorder %s15, 1
    %p94 = por %p92, %p93
    %p96 = scmp.ne.s32.totalorder %s81, %s95
    %p97 = scmp.eq.s32.totalorder %s15, 0
    %p98 = por %p96, %p97
    %s99 = ssub.s32 %s16, %s28
    %s100 = ssub.s32 %s17, %s24
    %s101 = sor.u32 %s99, %s100
    %p102 = scmp.eq.s32.totalorder %s101, 0
    %s104 = sadd.s32 %s103, 1
    %s105 = scalar_select %p102, %s103, %s104
    %p108 = pneg %p102
    %p109 = scmp.eq.s32.totalorder %s9, 1
    %p110 = por %p108, %p109
    %p111 = scmp.ne.s32.totalorder %s103, %s106
    %p112 = scmp.eq.s32.totalorder %s9, 0
    %p113 = por %p111, %p112
    %p114 = scmp.ne.s32.totalorder %s103, %s106
    %p115 = scmp.eq.s32.totalorder %s14, 1
    %p116 = por %p114, %p115
    %p117 = scmp.ne.s32.totalorder %s106, %s107
    %p118 = scmp.eq.s32.totalorder %s14, 0
    %p119 = por %p117, %p118
    %p120 = scmp.ne.s32.totalorder %s106, %s107
    %p121 = scmp.eq.s32.totalorder %s15, 1
    %p122 = por %p120, %p121
    %p124 = scmp.ne.s32.totalorder %s107, %s123
    %p125 = scmp.eq.s32.totalorder %s15, 0
    %p126 = por %p124, %p125
    %p127 = scmp.le.s32.totalorder 1, %s9
    %p128 = scmp.lt.s32.totalorder %s9, 3
    %p129 = pnand %p127, %p128
    %p130 = pneg %p129
    // Predicated region
    $region9: #{d_upproj_block.10} parent=5 // pred_check
      _
    $region10: #{d_upproj_block.10} parent=5 // pred_check_branch
      %132 = sbr.rel (%p129) target = $region12
    $region11: #{d_upproj_block.10} parent=5 // pred_region
      %s133 = ssub.s32 %s9, 1
      // Predicated region
      $region13: #{d_upproj_block.10} parent=11 // pred_check
        %p134 = pneg %p70
      $region14: #{d_upproj_block.10} parent=11 // pred_check_branch
        %136 = sbr.rel (%p134) target = $region16
      $region15: #{d_upproj_block.10} parent=11 // pred_region
        _
      $region16: #{d_upproj_block.10} parent=11 // pred_fallthru
        _
      // Predicated region
      $region17: #{d_upproj_block.10} parent=11 // pred_check
        %p137 = pneg %p91
      $region18: #{d_upproj_block.10} parent=11 // pred_check_branch
        %139 = sbr.rel (%p137) target = $region20
      $region19: #{d_upproj_block.10} parent=11 // pred_region
        _
      $region20: #{d_upproj_block.10} parent=11 // pred_fallthru
        _
    $region12: #{d_upproj_block.10} parent=5 // pred_fallthru
      _
    %p140 = scmp.lt.s32.totalorder %s9, 2
    // Predicated region
    $region21: #{d_upproj_block.10} parent=5 // pred_check
      %p141 = pneg %p140
    $region22: #{d_upproj_block.10} parent=5 // pred_check_branch
      %143 = sbr.rel (%p141) target = $region24
    $region23: #{d_upproj_block.10} parent=5 // pred_region
      // Predicated region
      $region25: #{d_upproj_block.10} parent=23 // pred_check
        %p144 = pneg %p43
      $region26: #{d_upproj_block.10} parent=23 // pred_check_branch
        %146 = sbr.rel (%p144) target = $region28
      $region27: #{d_upproj_block.10} parent=23 // pred_region
        %p147 = scmp.lt.s32.totalorder %s16, 1
        %s148 = scalar_select %p147, %s16, 1
        %p149 = scmp.lt.s32.totalorder %s17, 0
        %s150 = scalar_select %p149, %s17, 0
        %s151 = sadd.s32 %s150, %s148
        %s152 = smul.addr %s151, 4
        %s153 = scalar_lea.vmem %s0, %s152
      $region28: #{d_upproj_block.10} parent=23 // pred_fallthru
        _
    $region24: #{d_upproj_block.10} parent=5 // pred_fallthru
      _
    %p154 = scmp.le.s32.totalorder 1, %s9
    %p155 = scmp.lt.s32.totalorder %s9, 3
    %p156 = pnand %p154, %p155
    %p157 = pneg %p156
    // Predicated region
    $region29: #{d_upproj_block.10} parent=5 // pred_check
      _
    $region30: #{d_upproj_block.10} parent=5 // pred_check_branch
      %159 = sbr.rel (%p156) target = $region32
    $region31: #{d_upproj_block.10} parent=5 // pred_region
      %s160 = ssub.s32 %s9, 1
      %p161 = scmp.lt.s32.totalorder %s18, 1
      %s162 = scalar_select %p161, %s18, 1
      %p163 = scmp.lt.s32.totalorder %s19, 0
      %s164 = scalar_select %p163, %s19, 0
      %s165 = sadd.s32 %s164, %s162
      %s166 = smul.addr %s165, 4
      %s167 = scalar_lea.vmem %s0, %s166
      %p168 = pneg %p49
      %p169 = pneg %p46
      %p170 = pneg %p70
      %p171 = pneg %p67
      %p172 = pneg %p91
      %p173 = pneg %p88
      %p174 = pneg %p119
      %p175 = pneg %p116
      %p176 = scmp.lt.s32.totalorder %s18, 1
      %s177 = scalar_select %p176, %s18, 1
      %p178 = scmp.lt.s32.totalorder %s19, 0
      %s179 = scalar_select %p178, %s19, 0
      %s180 = sadd.s32 %s179, %s177
      %s181 = smul.addr %s180, 8
      %s182 = scalar_lea.vmem %s3, %s181
      %p183 = scmp.lt.s32.totalorder %s18, 1
      %s184 = scalar_select %p183, %s18, 1
      %p185 = scmp.lt.s32.totalorder %s19, 0
      %s186 = scalar_select %p185, %s19, 0
      %s187 = sadd.s32 %s186, %s184
      %s188 = smul.addr %s187, 4
      %s189 = scalar_lea.vmem %s0, %s188
      %p190 = scmp.lt.s32.totalorder %s18, 1
      %s191 = scalar_select %p190, %s18, 1
      %p192 = scmp.lt.s32.totalorder %s19, 0
      %s193 = scalar_select %p192, %s19, 0
      %s194 = sadd.s32 %s193, %s191
      %s195 = smul.addr %s194, 8
      %s196 = scalar_lea.vmem %s3, %s195
      %v197 = vld [vmem:[%s1] sm:$0xff]
      %v198 = vld [vmem:[%s189] sm:$0xf]
      %v199 = vld [vmem:[%s2] sm:$0xff]
      %201 = vset.pattern.permute.xlu0 0
      %202 = vperm.xlu0 %201, %v199
      %v203 = vpop.permute.xlu0 %202
      %vm205 = vcmask 31744
      %v207 = vsel %vm205, %v197, 0
      %vm209 = vcmask 1043456
      %v211 = vsel %vm209, %v198, 0
      %213 = vmatprep.subr.mxu0 0.0
      %v214 = vand.u32 %v211, 4294901760
      %215 = vmatpush1.msra.mxu0 %v214
      %216 = vmatprep.subr.mxu0 0.0
      %217 = vmatpush1.msra.mxu0 0.0
      %218 = vmatprep.subr.mxu0 0.0
      %219 = vmatpush1.msra.mxu0 0.0
      %220 = vmatprep.subr.mxu0 0.0
      %221 = vmatpush1.msra.mxu0 0.0
      %222 = vmatprep.subr.mxu0 0.0
      %223 = vmatpush1.msra.mxu0 0.0
      %224 = vmatprep.subr.mxu0 0.0
      %225 = vmatpush1.msra.mxu0 0.0
      %226 = vmatprep.subr.mxu0 0.0
      %227 = vmatpush1.msra.mxu0 0.0
      %228 = vmatprep.subr.mxu0 0.0
      %229 = vmatpush1.msra.mxu0 0.0
      %230 = vmatprep.subr.mxu0 0.0
      %231 = vmatpush1.msra.mxu0 0.0
      %232 = vmatprep.subr.mxu0 0.0
      %233 = vmatpush1.msra.mxu0 0.0
      %234 = vmatprep.subr.mxu0 0.0
      %235 = vmatpush1.msra.mxu0 0.0
      %236 = vmatprep.subr.mxu0 0.0
      %237 = vmatpush1.msra.mxu0 0.0
      %238 = vmatprep.subr.mxu0 0.0
      %239 = vmatpush1.msra.mxu0 0.0
      %240 = vmatprep.subr.mxu0 0.0
      %241 = vmatpush1.msra.mxu0 0.0
      %242 = vmatprep.subr.mxu0 0.0
      %243 = vmatpush1.msra.mxu0 0.0
      %244 = vmatprep.subr.mxu0 0.0
      %245 = vmatpush1.msra.mxu0 0.0
      %246 = vmatprep.subr.mxu0 0.0
      %247 = vmatpush1.msra.mxu0 0.0
      %248 = vmatprep.subr.mxu0 0.0
      %249 = vmatpush1.msra.mxu0 0.0
      %250 = vmatprep.subr.mxu0 0.0
      %251 = vmatpush1.msra.mxu0 0.0
      %252 = vmatprep.subr.mxu0 0.0
      %253 = vmatpush1.msra.mxu0 0.0
      %254 = vmatprep.subr.mxu0 0.0
      %255 = vmatpush1.msra.mxu0 0.0
      %256 = vmatprep.subr.mxu0 0.0
      %257 = vmatpush1.msra.mxu0 0.0
      %258 = vmatprep.subr.mxu0 0.0
      %259 = vmatpush1.msra.mxu0 0.0
      %260 = vmatprep.subr.mxu0 0.0
      %261 = vmatpush1.msra.mxu0 0.0
      %262 = vmatprep.subr.mxu0 0.0
      %263 = vmatpush1.msra.mxu0 0.0
      %264 = vmatprep.subr.mxu0 0.0
      %265 = vmatpush1.msra.mxu0 0.0
      %266 = vmatprep.subr.mxu0 0.0
      %267 = vmatpush1.msra.mxu0 0.0
      %268 = vmatprep.subr.mxu0 0.0
      %269 = vmatpush1.msra.mxu0 0.0
      %270 = vmatprep.subr.mxu0 0.0
      %271 = vmatpush1.msra.mxu0 0.0
      %272 = vmatprep.subr.mxu0 0.0
      %273 = vmatpush1.msra.mxu0 0.0
      %274 = vmatprep.subr.mxu0 0.0
      %275 = vmatpush1.msra.mxu0 0.0
      %276 = vmatprep.subr.mxu0 0.0
      %277 = vmatpush1.msra.mxu0 0.0
      %278 = vmatprep.mubr.f32.mxu0 0.0
      %v279 = vand.u32 %v207, 4294901760
      %v280 = vsub.f32 %v207, %v279
      %v281 = vand.u32 %v280, 4294901760
      %v282 = vsub.f32 %v280, %v281
      %v283 = vand.u32 %v282, 4294901760
      %284 = vmatmul.mubr.f32.gmra.mrb[0].mxu0 %v283
      %v285 = vpop.f32.mrb[0].mxu0
      %v286 = vadd.f32 %v203, %v285
      %v287 = vpop.f32.mrb[0].mxu0
      %288 = vdwg.mxu0
      %289 = vmatprep.subr.mxu0 0.0
      %v290 = vand.u32 %v211, 4294901760
      %v291 = vsub.f32 %v211, %v290
      %v292 = vand.u32 %v291, 4294901760
      %v293 = vsub.f32 %v291, %v292
      %v294 = vand.u32 %v293, 4294901760
      %295 = vmatpush1.msra.mxu0 %v294
      %296 = vmatprep.subr.mxu0 0.0
      %297 = vmatpush1.msra.mxu0 0.0
      %298 = vmatprep.subr.mxu0 0.0
      %299 = vmatpush1.msra.mxu0 0.0
      %300 = vmatprep.subr.mxu0 0.0
      %301 = vmatpush1.msra.mxu0 0.0
      %302 = vmatprep.subr.mxu0 0.0
      %303 = vmatpush1.msra.mxu0 0.0
      %304 = vmatprep.subr.mxu0 0.0
      %305 = vmatpush1.msra.mxu0 0.0
      %306 = vmatprep.subr.mxu0 0.0
      %307 = vmatpush1.msra.mxu0 0.0
      %308 = vmatprep.subr.mxu0 0.0
      %309 = vmatpush1.msra.mxu0 0.0
      %310 = vmatprep.subr.mxu0 0.0
      %311 = vmatpush1.msra.mxu0 0.0
      %312 = vmatprep.subr.mxu0 0.0
      %313 = vmatpush1.msra.mxu0 0.0
      %314 = vmatprep.subr.mxu0 0.0
      %315 = vmatpush1.msra.mxu0 0.0
      %316 = vmatprep.subr.mxu0 0.0
      %317 = vmatpush1.msra.mxu0 0.0
      %318 = vmatprep.subr.mxu0 0.0
      %319 = vmatpush1.msra.mxu0 0.0
      %320 = vmatprep.subr.mxu0 0.0
      %321 = vmatpush1.msra.mxu0 0.0
      %322 = vmatprep.subr.mxu0 0.0
      %323 = vmatpush1.msra.mxu0 0.0
      %324 = vmatprep.subr.mxu0 0.0
      %325 = vmatpush1.msra.mxu0 0.0
      %326 = vmatprep.subr.mxu0 0.0
      %327 = vmatpush1.msra.mxu0 0.0
      %328 = vmatprep.subr.mxu0 0.0
      %329 = vmatpush1.msra.mxu0 0.0
      %330 = vmatprep.subr.mxu0 0.0
      %331 = vmatpush1.msra.mxu0 0.0
      %332 = vmatprep.subr.mxu0 0.0
      %333 = vmatpush1.msra.mxu0 0.0
      %334 = vmatprep.subr.mxu0 0.0
      %335 = vmatpush1.msra.mxu0 0.0
      %336 = vmatprep.subr.mxu0 0.0
      %337 = vmatpush1.msra.mxu0 0.0
      %338 = vmatprep.subr.mxu0 0.0
      %339 = vmatpush1.msra.mxu0 0.0
      %340 = vmatprep.subr.mxu0 0.0
      %341 = vmatpush1.msra.mxu0 0.0
      %342 = vmatprep.subr.mxu0 0.0
      %343 = vmatpush1.msra.mxu0 0.0
      %344 = vmatprep.subr.mxu0 0.0
      %345 = vmatpush1.msra.mxu0 0.0
      %346 = vmatprep.subr.mxu0 0.0
      %347 = vmatpush1.msra.mxu0 0.0
      %348 = vmatprep.subr.mxu0 0.0
      %349 = vmatpush1.msra.mxu0 0.0
      %350 = vmatprep.subr.mxu0 0.0
      %351 = vmatpush1.msra.mxu0 0.0
      %352 = vmatprep.subr.mxu0 0.0
      %353 = vmatpush1.msra.mxu0 0.0
      %354 = vmatprep.subr.mxu0 0.0
      %355 = vmatpush1.msra.mxu0 0.0
      %356 = vmatprep.subr.mxu0 0.0
      %357 = vmatpush1.msra.mxu0 0.0
      %358 = vmatprep.mubr.f32.mxu0 0.0
      %v359 = vand.u32 %v207, 4294901760
      %360 = vmatmul.mubr.f32.gmra.mrb[0].mxu0 %v359
      %v361 = vpop.f32.mrb[0].mxu0
      %v362 = vadd.f32 %v286, %v361
      %v363 = vpop.f32.mrb[0].mxu0
      %364 = vdwg.mxu0
      %365 = vmatprep.subr.mxu0 0.0
      %v366 = vand.u32 %v211, 4294901760
      %v367 = vsub.f32 %v211, %v366
      %368 = vmatpush1.msra.mxu0 %v367
      %369 = vmatprep.subr.mxu0 0.0
      %370 = vmatpush1.msra.mxu0 0.0
      %371 = vmatprep.subr.mxu0 0.0
      %372 = vmatpush1.msra.mxu0 0.0
      %373 = vmatprep.subr.mxu0 0.0
      %374 = vmatpush1.msra.mxu0 0.0
      %375 = vmatprep.subr.mxu0 0.0
      %376 = vmatpush1.msra.mxu0 0.0
      %377 = vmatprep.subr.mxu0 0.0
      %378 = vmatpush1.msra.mxu0 0.0
      %379 = vmatprep.subr.mxu0 0.0
      %380 = vmatpush1.msra.mxu0 0.0
      %381 = vmatprep.subr.mxu0 0.0
      %382 = vmatpush1.msra.mxu0 0.0
      %383 = vmatprep.subr.mxu0 0.0
      %384 = vmatpush1.msra.mxu0 0.0
      %385 = vmatprep.subr.mxu0 0.0
      %386 = vmatpush1.msra.mxu0 0.0
      %387 = vmatprep.subr.mxu0 0.0
      %388 = vmatpush1.msra.mxu0 0.0
      %389 = vmatprep.subr.mxu0 0.0
      %390 = vmatpush1.msra.mxu0 0.0
      %391 = vmatprep.subr.mxu0 0.0
      %392 = vmatpush1.msra.mxu0 0.0
      %393 = vmatprep.subr.mxu0 0.0
      %394 = vmatpush1.msra.mxu0 0.0
      %395 = vmatprep.subr.mxu0 0.0
      %396 = vmatpush1.msra.mxu0 0.0
      %397 = vmatprep.subr.mxu0 0.0
      %398 = vmatpush1.msra.mxu0 0.0
      %399 = vmatprep.subr.mxu0 0.0
      %400 = vmatpush1.msra.mxu0 0.0
      %401 = vmatprep.subr.mxu0 0.0
      %402 = vmatpush1.msra.mxu0 0.0
      %403 = vmatprep.subr.mxu0 0.0
      %404 = vmatpush1.msra.mxu0 0.0
      %405 = vmatprep.subr.mxu0 0.0
      %406 = vmatpush1.msra.mxu0 0.0
      %407 = vmatprep.subr.mxu0 0.0
      %408 = vmatpush1.msra.mxu0 0.0
      %409 = vmatprep.subr.mxu0 0.0
      %410 = vmatpush1.msra.mxu0 0.0
      %411 = vmatprep.subr.mxu0 0.0
      %412 = vmatpush1.msra.mxu0 0.0
      %413 = vmatprep.subr.mxu0 0.0
      %414 = vmatpush1.msra.mxu0 0.0
      %415 = vmatprep.subr.mxu0 0.0
      %416 = vmatpush1.msra.mxu0 0.0
      %417 = vmatprep.subr.mxu0 0.0
      %418 = vmatpush1.msra.mxu0 0.0
      %419 = vmatprep.subr.mxu0 0.0
      %420 = vmatpush1.msra.mxu0 0.0
      %421 = vmatprep.subr.mxu0 0.0
      %422 = vmatpush1.msra.mxu0 0.0
      %423 = vmatprep.subr.mxu0 0.0
      %424 = vmatpush1.msra.mxu0 0.0
      %425 = vmatprep.subr.mxu0 0.0
      %426 = vmatpush1.msra.mxu0 0.0
      %427 = vmatprep.subr.mxu0 0.0
      %428 = vmatpush1.msra.mxu0 0.0
      %429 = vmatprep.subr.mxu0 0.0
      %430 = vmatpush1.msra.mxu0 0.0
      %431 = vmatprep.mubr.f32.mxu0 0.0
      %v432 = vand.u32 %v207, 4294901760
      %v433 = vsub.f32 %v207, %v432
      %434 = vmatmul.mubr.f32.gmra.mrb[0].mxu0 %v433
      %v435 = vpop.f32.mrb[0].mxu0
      %v436 = vadd.f32 %v362, %v435
      %v437 = vpop.f32.mrb[0].mxu0
      %438 = vdwg.mxu0
      %439 = vmatprep.subr.mxu0 0.0
      %v440 = vand.u32 %v211, 4294901760
      %441 = vmatpush1.msra.mxu0 %v440
      %442 = vmatprep.subr.mxu0 0.0
      %443 = vmatpush1.msra.mxu0 0.0
      %444 = vmatprep.subr.mxu0 0.0
      %445 = vmatpush1.msra.mxu0 0.0
      %446 = vmatprep.subr.mxu0 0.0
      %447 = vmatpush1.msra.mxu0 0.0
      %448 = vmatprep.subr.mxu0 0.0
      %449 = vmatpush1.msra.mxu0 0.0
      %450 = vmatprep.subr.mxu0 0.0
      %451 = vmatpush1.msra.mxu0 0.0
      %452 = vmatprep.subr.mxu0 0.0
      %453 = vmatpush1.msra.mxu0 0.0
      %454 = vmatprep.subr.mxu0 0.0
      %455 = vmatpush1.msra.mxu0 0.0
      %456 = vmatprep.subr.mxu0 0.0
      %457 = vmatpush1.msra.mxu0 0.0
      %458 = vmatprep.subr.mxu0 0.0
      %459 = vmatpush1.msra.mxu0 0.0
      %460 = vmatprep.subr.mxu0 0.0
      %461 = vmatpush1.msra.mxu0 0.0
      %462 = vmatprep.subr.mxu0 0.0
      %463 = vmatpush1.msra.mxu0 0.0
      %464 = vmatprep.subr.mxu0 0.0
      %465 = vmatpush1.msra.mxu0 0.0
      %466 = vmatprep.subr.mxu0 0.0
      %467 = vmatpush1.msra.mxu0 0.0
      %468 = vmatprep.subr.mxu0 0.0
      %469 = vmatpush1.msra.mxu0 0.0
      %470 = vmatprep.subr.mxu0 0.0
      %471 = vmatpush1.msra.mxu0 0.0
      %472 = vmatprep.subr.mxu0 0.0
      %473 = vmatpush1.msra.mxu0 0.0
      %474 = vmatprep.subr.mxu0 0.0
      %475 = vmatpush1.msra.mxu0 0.0
      %476 = vmatprep.subr.mxu0 0.0
      %477 = vmatpush1.msra.mxu0 0.0
      %478 = vmatprep.subr.mxu0 0.0
      %479 = vmatpush1.msra.mxu0 0.0
      %480 = vmatprep.subr.mxu0 0.0
      %481 = vmatpush1.msra.mxu0 0.0
      %482 = vmatprep.subr.mxu0 0.0
      %483 = vmatpush1.msra.mxu0 0.0
      %484 = vmatprep.subr.mxu0 0.0
      %485 = vmatpush1.msra.mxu0 0.0
      %486 = vmatprep.subr.mxu0 0.0
      %487 = vmatpush1.msra.mxu0 0.0
      %488 = vmatprep.subr.mxu0 0.0
      %489 = vmatpush1.msra.mxu0 0.0
      %490 = vmatprep.subr.mxu0 0.0
      %491 = vmatpush1.msra.mxu0 0.0
      %492 = vmatprep.subr.mxu0 0.0
      %493 = vmatpush1.msra.mxu0 0.0
      %494 = vmatprep.subr.mxu0 0.0
      %495 = vmatpush1.msra.mxu0 0.0
      %496 = vmatprep.subr.mxu0 0.0
      %497 = vmatpush1.msra.mxu0 0.0
      %498 = vmatprep.subr.mxu0 0.0
      %499 = vmatpush1.msra.mxu0 0.0
      %500 = vmatprep.subr.mxu0 0.0
      %501 = vmatpush1.msra.mxu0 0.0
      %502 = vmatprep.subr.mxu0 0.0
      %503 = vmatpush1.msra.mxu0 0.0
      %504 = vmatprep.mubr.f32.mxu0 0.0
      %v505 = vand.u32 %v207, 4294901760
      %v506 = vsub.f32 %v207, %v505
      %v507 = vand.u32 %v506, 4294901760
      %508 = vmatmul.mubr.f32.gmra.mrb[0].mxu0 %v507
      %v509 = vpop.f32.mrb[0].mxu0
      %v510 = vadd.f32 %v436, %v509
      %v511 = vpop.f32.mrb[0].mxu0
      %512 = vdwg.mxu0
      %513 = vmatprep.subr.mxu0 0.0
      %v514 = vand.u32 %v211, 4294901760
      %v515 = vsub.f32 %v211, %v514
      %v516 = vand.u32 %v515, 4294901760
      %517 = vmatpush1.msra.mxu0 %v516
      %518 = vmatprep.subr.mxu0 0.0
      %519 = vmatpush1.msra.mxu0 0.0
      %520 = vmatprep.subr.mxu0 0.0
      %521 = vmatpush1.msra.mxu0 0.0
      %522 = vmatprep.subr.mxu0 0.0
      %523 = vmatpush1.msra.mxu0 0.0
      %524 = vmatprep.subr.mxu0 0.0
      %525 = vmatpush1.msra.mxu0 0.0
      %526 = vmatprep.subr.mxu0 0.0
      %527 = vmatpush1.msra.mxu0 0.0
      %528 = vmatprep.subr.mxu0 0.0
      %529 = vmatpush1.msra.mxu0 0.0
      %530 = vmatprep.subr.mxu0 0.0
      %531 = vmatpush1.msra.mxu0 0.0
      %532 = vmatprep.subr.mxu0 0.0
      %533 = vmatpush1.msra.mxu0 0.0
      %534 = vmatprep.subr.mxu0 0.0
      %535 = vmatpush1.msra.mxu0 0.0
      %536 = vmatprep.subr.mxu0 0.0
      %537 = vmatpush1.msra.mxu0 0.0
      %538 = vmatprep.subr.mxu0 0.0
      %539 = vmatpush1.msra.mxu0 0.0
      %540 = vmatprep.subr.mxu0 0.0
      %541 = vmatpush1.msra.mxu0 0.0
      %542 = vmatprep.subr.mxu0 0.0
      %543 = vmatpush1.msra.mxu0 0.0
      %544 = vmatprep.subr.mxu0 0.0
      %545 = vmatpush1.msra.mxu0 0.0
      %546 = vmatprep.subr.mxu0 0.0
      %547 = vmatpush1.msra.mxu0 0.0
      %548 = vmatprep.subr.mxu0 0.0
      %549 = vmatpush1.msra.mxu0 0.0
      %550 = vmatprep.subr.mxu0 0.0
      %551 = vmatpush1.msra.mxu0 0.0
      %552 = vmatprep.subr.mxu0 0.0
      %553 = vmatpush1.msra.mxu0 0.0
      %554 = vmatprep.subr.mxu0 0.0
      %555 = vmatpush1.msra.mxu0 0.0
      %556 = vmatprep.subr.mxu0 0.0
      %557 = vmatpush1.msra.mxu0 0.0
      %558 = vmatprep.subr.mxu0 0.0
      %559 = vmatpush1.msra.mxu0 0.0
      %560 = vmatprep.subr.mxu0 0.0
      %561 = vmatpush1.msra.mxu0 0.0
      %562 = vmatprep.subr.mxu0 0.0
      %563 = vmatpush1.msra.mxu0 0.0
      %564 = vmatprep.subr.mxu0 0.0
      %565 = vmatpush1.msra.mxu0 0.0
      %566 = vmatprep.subr.mxu0 0.0
      %567 = vmatpush1.msra.mxu0 0.0
      %568 = vmatprep.subr.mxu0 0.0
      %569 = vmatpush1.msra.mxu0 0.0
      %570 = vmatprep.subr.mxu0 0.0
      %571 = vmatpush1.msra.mxu0 0.0
      %572 = vmatprep.subr.mxu0 0.0
      %573 = vmatpush1.msra.mxu0 0.0
      %574 = vmatprep.subr.mxu0 0.0
      %575 = vmatpush1.msra.mxu0 0.0
      %576 = vmatprep.subr.mxu0 0.0
      %577 = vmatpush1.msra.mxu0 0.0
      %578 = vmatprep.subr.mxu0 0.0
      %579 = vmatpush1.msra.mxu0 0.0
      %580 = vmatprep.mubr.f32.mxu0 0.0
      %v581 = vand.u32 %v207, 4294901760
      %582 = vmatmul.mubr.f32.gmra.mrb[0].mxu0 %v581
      %v583 = vpop.f32.mrb[0].mxu0
      %v584 = vadd.f32 %v510, %v583
      %v585 = vpop.f32.mrb[0].mxu0
      %586 = vdwg.mxu0
      %587 = vmatprep.subr.mxu0 0.0
      %v588 = vand.u32 %v211, 4294901760
      %589 = vmatpush1.msra.mxu0 %v588
      %590 = vmatprep.subr.mxu0 0.0
      %591 = vmatpush1.msra.mxu0 0.0
      %592 = vmatprep.subr.mxu0 0.0
      %593 = vmatpush1.msra.mxu0 0.0
      %594 = vmatprep.subr.mxu0 0.0
      %595 = vmatpush1.msra.mxu0 0.0
      %596 = vmatprep.subr.mxu0 0.0
      %597 = vmatpush1.msra.mxu0 0.0
      %598 = vmatprep.subr.mxu0 0.0
      %599 = vmatpush1.msra.mxu0 0.0
      %600 = vmatprep.subr.mxu0 0.0
      %601 = vmatpush1.msra.mxu0 0.0
      %602 = vmatprep.subr.mxu0 0.0
      %603 = vmatpush1.msra.mxu0 0.0
      %604 = vmatprep.subr.mxu0 0.0
      %605 = vmatpush1.msra.mxu0 0.0
      %606 = vmatprep.subr.mxu0 0.0
      %607 = vmatpush1.msra.mxu0 0.0
      %608 = vmatprep.subr.mxu0 0.0
      %609 = vmatpush1.msra.mxu0 0.0
      %610 = vmatprep.subr.mxu0 0.0
      %611 = vmatpush1.msra.mxu0 0.0
      %612 = vmatprep.subr.mxu0 0.0
      %613 = vmatpush1.msra.mxu0 0.0
      %614 = vmatprep.subr.mxu0 0.0
      %615 = vmatpush1.msra.mxu0 0.0
      %616 = vmatprep.subr.mxu0 0.0
      %617 = vmatpush1.msra.mxu0 0.0
      %618 = vmatprep.subr.mxu0 0.0
      %619 = vmatpush1.msra.mxu0 0.0
      %620 = vmatprep.subr.mxu0 0.0
      %621 = vmatpush1.msra.mxu0 0.0
      %622 = vmatprep.subr.mxu0 0.0
      %623 = vmatpush1.msra.mxu0 0.0
      %624 = vmatprep.subr.mxu0 0.0
      %625 = vmatpush1.msra.mxu0 0.0
      %626 = vmatprep.subr.mxu0 0.0
      %627 = vmatpush1.msra.mxu0 0.0
      %628 = vmatprep.subr.mxu0 0.0
      %629 = vmatpush1.msra.mxu0 0.0
      %630 = vmatprep.subr.mxu0 0.0
      %631 = vmatpush1.msra.mxu0 0.0
      %632 = vmatprep.subr.mxu0 0.0
      %633 = vmatpush1.msra.mxu0 0.0
      %634 = vmatprep.subr.mxu0 0.0
      %635 = vmatpush1.msra.mxu0 0.0
      %636 = vmatprep.subr.mxu0 0.0
      %637 = vmatpush1.msra.mxu0 0.0
      %638 = vmatprep.subr.mxu0 0.0
      %639 = vmatpush1.msra.mxu0 0.0
      %640 = vmatprep.subr.mxu0 0.0
      %641 = vmatpush1.msra.mxu0 0.0
      %642 = vmatprep.subr.mxu0 0.0
      %643 = vmatpush1.msra.mxu0 0.0
      %644 = vmatprep.subr.mxu0 0.0
      %645 = vmatpush1.msra.mxu0 0.0
      %646 = vmatprep.subr.mxu0 0.0
      %647 = vmatpush1.msra.mxu0 0.0
      %648 = vmatprep.subr.mxu0 0.0
      %649 = vmatpush1.msra.mxu0 0.0
      %650 = vmatprep.subr.mxu0 0.0
      %651 = vmatpush1.msra.mxu0 0.0
      %652 = vmatprep.mubr.f32.mxu0 0.0
      %v653 = vand.u32 %v207, 4294901760
      %654 = vmatmul.mubr.f32.gmra.mrb[0].mxu0 %v653
      %v655 = vpop.f32.mrb[0].mxu0
      %v656 = vadd.f32 %v584, %v655
      %v657 = vpop.f32.mrb[0].mxu0
      %658 = vdwg.mxu0
      %vm659 = vcmp.ge.f32.partialorder %v656, 0.0
      %v660 = vmul.f32 %v656, 0.2
      %v661 = vsel %vm659, %v656, %v660
      %662 = vst [vmem:[%s196] sm:$0xff] %v661
      %p663 = scmp.lt.s32.totalorder %s18, 1
      %s664 = scalar_select %p663, %s18, 1
      %p665 = scmp.lt.s32.totalorder %s19, 0
      %s666 = scalar_select %p665, %s19, 0
      %s667 = sadd.s32 %s666, %s664
      %s668 = smul.addr %s667, 8
      %s669 = scalar_lea.vmem %s3, %s668
      // Predicated region
      $region33: #{d_upproj_block.10} parent=31 // pred_check
        %p670 = pneg %p116
      $region34: #{d_upproj_block.10} parent=31 // pred_check_branch
        %672 = sbr.rel (%p670) target = $region36
      $region35: #{d_upproj_block.10} parent=31 // pred_region
        _
      $region36: #{d_upproj_block.10} parent=31 // pred_fallthru
        _
    $region32: #{d_upproj_block.10} parent=5 // pred_fallthru
      _
    %p673 = scmp.le.s32.totalorder 2, %s9
    // Predicated region
    $region37: #{d_upproj_block.10} parent=5 // pred_check
      %p674 = pneg %p673
    $region38: #{d_upproj_block.10} parent=5 // pred_check_branch
      %676 = sbr.rel (%p674) target = $region40
    $region39: #{d_upproj_block.10} parent=5 // pred_region
      %s677 = ssub.s32 %s9, 2
      // Predicated region
      $region41: #{d_upproj_block.10} parent=39 // pred_check
        %p678 = pneg %p122
      $region42: #{d_upproj_block.10} parent=39 // pred_check_branch
        %680 = sbr.rel (%p678) target = $region44
      $region43: #{d_upproj_block.10} parent=39 // pred_region
        %p681 = scmp.lt.s32.totalorder %s20, 1
        %s682 = scalar_select %p681, %s20, 1
        %p683 = scmp.lt.s32.totalorder %s21, 0
        %s684 = scalar_select %p683, %s21, 0
        %s685 = sadd.s32 %s684, %s682
        %s686 = smul.addr %s685, 8
        %s687 = scalar_lea.vmem %s3, %s686
      $region44: #{d_upproj_block.10} parent=39 // pred_fallthru
        _
    $region40: #{d_upproj_block.10} parent=5 // pred_fallthru
      _
  $region6: #{d_upproj_block.10} parent=0 // loop_footer
    %s13 = sadd.s32 1, %s9
  $region7: #{d_upproj_block.10} parent=0 // loop_footer_branch
    %8 = sbr.rel target = $region3
  $region8: #{d_upproj_block.10} parent=0 // loop_exit
    _

// kernel: d_upproj_block.11
$region0: #{d_upproj_block.11}
  #allocation0 [shape = 'u32[]', space=smem, size = 0x4, offset = 0x4, fixed_abs, tag = 'smem constant byte address 0x4 - core index']
  #allocation1 [shape = 'u32[144,128]{1,0:T(1,128)}', space=vmem, size = 0x12000, scoped, tag = 'internal scratch']
  %s0 = inlined_call_operand.vmem [shape: f32[2,32,128], index: 0, kind: input, shape index: {}]
  %s1 = inlined_call_operand.vmem [shape: f32[8,32], index: 1, kind: input, shape index: {}]
  %s2 = inlined_call_operand.vmem [shape: f32[8,1], index: 2, kind: input, shape index: {}]
  %s3 = inlined_call_operand.vmem [shape: f32[2,8,128], index: 3, kind: output, shape index: {}]
  %s4 = sld [smem:[#allocation0]]
  $region45: #{d_upproj_block.11} parent=0
    _
  %s6 = ssub.s32 1, %s4
  %s7 = scalar_select 0, %s6, %s4
  loop: start=0, step=1, limit=4
  $region2: #{d_upproj_block.11} parent=0 // loop_pre_header
    _
  $region3: #{d_upproj_block.11} parent=0 // loop_header
    %s9 = sphi 0, %s13
    %p10 = scmp.ge.s32.totalorder %s9, 4
    %s16 = sphi 0, %s28
    %s17 = sphi 0, %s24
    %s18 = sphi 0, %s16
    %s19 = sphi 0, %s17
    %s20 = sphi 0, %s18
    %s21 = sphi 0, %s19
    %s33 = sphi 0, %s35
    %s36 = sphi 0, %s33
    %s37 = sphi 0, %s36
    %s53 = sphi 0, %s37
    %s57 = sphi 0, %s57
    %s59 = sphi 0, %s57
    %s60 = sphi 0, %s59
    %s74 = sphi 0, %s60
    %s78 = sphi 0, %s78
    %s80 = sphi 0, %s78
    %s81 = sphi 0, %s80
    %s95 = sphi 0, %s81
    %s103 = sphi 0, %s105
    %s106 = sphi 0, %s103
    %s107 = sphi 0, %s106
    %s123 = sphi 0, %s107
  $region4: #{d_upproj_block.11} parent=0 // loop_header_branch
    %12 = sbr.rel (%p10) target = $region8
  $region5: #{d_upproj_block.11} parent=0 // loop_body
    %s14 = ssub.s32 %s9, 1
    %s15 = ssub.s32 %s9, 2
    %s22 = sadd.s32 1, %s17
    %p23 = scmp.ge.s32.totalorder %s22, 1
    %s24 = scalar_select %p23, 0, %s22
    %s25 = sadd.s32 1, %s16
    %s26 = scalar_select %p23, %s25, %s16
    %p27 = scmp.ge.s32.totalorder %s26, 2
    %s28 = scalar_select %p27, 0, %s26
    %s29 = ssub.s32 %s16, %s28
    %s30 = ssub.s32 %s17, %s24
    %s31 = sor.u32 %s29, %s30
    %p32 = scmp.eq.s32.totalorder %s31, 0
    %s34 = sadd.s32 %s33, 1
    %s35 = scalar_select %p32, %s33, %s34
    %p38 = pneg %p32
    %p39 = scmp.eq.s32.totalorder %s9, 1
    %p40 = por %p38, %p39
    %p41 = scmp.ne.s32.totalorder %s33, %s36
    %p42 = scmp.eq.s32.totalorder %s9, 0
    %p43 = por %p41, %p42
    %p44 = scmp.ne.s32.totalorder %s33, %s36
    %p45 = scmp.eq.s32.totalorder %s14, 1
    %p46 = por %p44, %p45
    %p47 = scmp.ne.s32.totalorder %s36, %s37
    %p48 = scmp.eq.s32.totalorder %s14, 0
    %p49 = por %p47, %p48
    %p50 = scmp.ne.s32.totalorder %s36, %s37
    %p51 = scmp.eq.s32.totalorder %s15, 1
    %p52 = por %p50, %p51
    %p54 = scmp.ne.s32.totalorder %s37, %s53
    %p55 = scmp.eq.s32.totalorder %s15, 0
    %p56 = por %p54, %p55
    %s58 = sadd.s32 %s57, 1
    %p61 = scmp.eq.s32.totalorder %s9, 1
    %p62 = scmp.ne.s32.totalorder %s57, %s59
    %p63 = scmp.eq.s32.totalorder %s9, 0
    %p64 = por %p62, %p63
    %p65 = scmp.ne.s32.totalorder %s57, %s59
    %p66 = scmp.eq.s32.totalorder %s14, 1
    %p67 = por %p65, %p66
    %p68 = scmp.ne.s32.totalorder %s59, %s60
    %p69 = scmp.eq.s32.totalorder %s14, 0
    %p70 = por %p68, %p69
    %p71 = scmp.ne.s32.totalorder %s59, %s60
    %p72 = scmp.eq.s32.totalorder %s15, 1
    %p73 = por %p71, %p72
    %p75 = scmp.ne.s32.totalorder %s60, %s74
    %p76 = scmp.eq.s32.totalorder %s15, 0
    %p77 = por %p75, %p76
    %s79 = sadd.s32 %s78, 1
    %p82 = scmp.eq.s32.totalorder %s9, 1
    %p83 = scmp.ne.s32.totalorder %s78, %s80
    %p84 = scmp.eq.s32.totalorder %s9, 0
    %p85 = por %p83, %p84
    %p86 = scmp.ne.s32.totalorder %s78, %s80
    %p87 = scmp.eq.s32.totalorder %s14, 1
    %p88 = por %p86, %p87
    %p89 = scmp.ne.s32.totalorder %s80, %s81
    %p90 = scmp.eq.s32.totalorder %s14, 0
    %p91 = por %p89, %p90
    %p92 = scmp.ne.s32.totalorder %s80, %s81
    %p93 = scmp.eq.s32.totalorder %s15, 1
    %p94 = por %p92, %p93
    %p96 = scmp.ne.s32.totalorder %s81, %s95
    %p97 = scmp.eq.s32.totalorder %s15, 0
    %p98 = por %p96, %p97
    %s99 = ssub.s32 %s16, %s28
    %s100 = ssub.s32 %s17, %s24
    %s101 = sor.u32 %s99, %s100
    %p102 = scmp.eq.s32.totalorder %s101, 0
    %s104 = sadd.s32 %s103, 1
    %s105 = scalar_select %p102, %s103, %s104
    %p108 = pneg %p102
    %p109 = scmp.eq.s32.totalorder %s9, 1
    %p110 = por %p108, %p109
    %p111 = scmp.ne.s32.totalorder %s103, %s106
    %p112 = scmp.eq.s32.totalorder %s9, 0
    %p113 = por %p111, %p112
    %p114 = scmp.ne.s32.totalorder %s103, %s106
    %p115 = scmp.eq.s32.totalorder %s14, 1
    %p116 = por %p114, %p115
    %p117 = scmp.ne.s32.totalorder %s106, %s107
    %p118 = scmp.eq.s32.totalorder %s14, 0
    %p119 = por %p117, %p118
    %p120 = scmp.ne.s32.totalorder %s106, %s107
    %p121 = scmp.eq.s32.totalorder %s15, 1
    %p122 = por %p120, %p121
    %p124 = scmp.ne.s32.totalorder %s107, %s123
    %p125 = scmp.eq.s32.totalorder %s15, 0
    %p126 = por %p124, %p125
    %p127 = scmp.le.s32.totalorder 1, %s9
    %p128 = scmp.lt.s32.totalorder %s9, 3
    %p129 = pnand %p127, %p128
    %p130 = pneg %p129
    // Predicated region
    $region9: #{d_upproj_block.11} parent=5 // pred_check
      _
    $region10: #{d_upproj_block.11} parent=5 // pred_check_branch
      %132 = sbr.rel (%p129) target = $region12
    $region11: #{d_upproj_block.11} parent=5 // pred_region
      %s133 = ssub.s32 %s9, 1
      // Predicated region
      $region13: #{d_upproj_block.11} parent=11 // pred_check
        %p134 = pneg %p70
      $region14: #{d_upproj_block.11} parent=11 // pred_check_branch
        %136 = sbr.rel (%p134) target = $region16
      $region15: #{d_upproj_block.11} parent=11 // pred_region
        _
      $region16: #{d_upproj_block.11} parent=11 // pred_fallthru
        _
      // Predicated region
      $region17: #{d_upproj_block.11} parent=11 // pred_check
        %p137 = pneg %p91
      $region18: #{d_upproj_block.11} parent=11 // pred_check_branch
        %139 = sbr.rel (%p137) target = $region20
      $region19: #{d_upproj_block.11} parent=11 // pred_region
        _
      $region20: #{d_upproj_block.11} parent=11 // pred_fallthru
        _
    $region12: #{d_upproj_block.11} parent=5 // pred_fallthru
      _
    %p140 = scmp.lt.s32.totalorder %s9, 2
    // Predicated region
    $region21: #{d_upproj_block.11} parent=5 // pred_check
      %p141 = pneg %p140
    $region22: #{d_upproj_block.11} parent=5 // pred_check_branch
      %143 = sbr.rel (%p141) target = $region24
    $region23: #{d_upproj_block.11} parent=5 // pred_region
      // Predicated region
      $region25: #{d_upproj_block.11} parent=23 // pred_check
        %p144 = pneg %p43
      $region26: #{d_upproj_block.11} parent=23 // pred_check_branch
        %146 = sbr.rel (%p144) target = $region28
      $region27: #{d_upproj_block.11} parent=23 // pred_region
        %p147 = scmp.lt.s32.totalorder %s16, 1
        %s148 = scalar_select %p147, %s16, 1
        %p149 = scmp.lt.s32.totalorder %s17, 0
        %s150 = scalar_select %p149, %s17, 0
        %s151 = smul.addr %s148, 4
        %s152 = sadd.s32 %s150, %s151
        %s153 = smul.addr %s152, 8
        %s154 = scalar_lea.vmem %s0, %s153
      $region28: #{d_upproj_block.11} parent=23 // pred_fallthru
        _
    $region24: #{d_upproj_block.11} parent=5 // pred_fallthru
      _
    %p155 = scmp.le.s32.totalorder 1, %s9
    %p156 = scmp.lt.s32.totalorder %s9, 3
    %p157 = pnand %p155, %p156
    %p158 = pneg %p157
    // Predicated region
    $region29: #{d_upproj_block.11} parent=5 // pred_check
      _
    $region30: #{d_upproj_block.11} parent=5 // pred_check_branch
      %160 = sbr.rel (%p157) target = $region32
    $region31: #{d_upproj_block.11} parent=5 // pred_region
      %s161 = ssub.s32 %s9, 1
      %p162 = scmp.lt.s32.totalorder %s18, 1
      %s163 = scalar_select %p162, %s18, 1
      %p164 = scmp.lt.s32.totalorder %s19, 0
      %s165 = scalar_select %p164, %s19, 0
      %s166 = smul.addr %s163, 4
      %s167 = sadd.s32 %s165, %s166
      %s168 = smul.addr %s167, 8
      %s169 = scalar_lea.vmem %s0, %s168
      %p170 = pneg %p49
      %p171 = pneg %p46
      %p172 = pneg %p70
      %p173 = pneg %p67
      %p174 = pneg %p91
      %p175 = pneg %p88
      %p176 = pneg %p119
      %p177 = pneg %p116
      %p178 = scmp.lt.s32.totalorder %s18, 1
      %s179 = scalar_select %p178, %s18, 1
      %p180 = scmp.lt.s32.totalorder %s19, 0
      %s181 = scalar_select %p180, %s19, 0
      %s182 = sadd.s32 %s181, %s179
      %s183 = smul.addr %s182, 8
      %s184 = scalar_lea.vmem %s3, %s183
      %p185 = scmp.lt.s32.totalorder %s18, 1
      %s186 = scalar_select %p185, %s18, 1
      %p187 = scmp.lt.s32.totalorder %s19, 0
      %s188 = scalar_select %p187, %s19, 0
      %s189 = smul.addr %s186, 4
      %s190 = sadd.s32 %s188, %s189
      %s191 = smul.addr %s190, 8
      %s192 = scalar_lea.vmem %s0, %s191
      %p193 = scmp.lt.s32.totalorder %s18, 1
      %s194 = scalar_select %p193, %s18, 1
      %p195 = scmp.lt.s32.totalorder %s19, 0
      %s196 = scalar_select %p195, %s19, 0
      %s197 = sadd.s32 %s196, %s194
      %s198 = smul.addr %s197, 8
      %s199 = scalar_lea.vmem %s3, %s198
      %v200 = vld [vmem:[%s1] sm:$0xff]
      %v201 = vld [vmem:[%s192] sm:$0xff]
      %v202 = vld [vmem:[%s192 + $0x8] sm:$0xff]
      %v203 = vld [vmem:[%s192 + $0x10] sm:$0xff]
      %v204 = vld [vmem:[%s192 + $0x18] sm:$0xff]
      %v205 = vld [vmem:[%s2] sm:$0xff]
      %207 = vset.pattern.permute.xlu0 0
      %208 = vperm.xlu0 %207, %v205
      %v209 = vpop.permute.xlu0 %208
      %vm211 = vcmask 261120
      %v213 = vsel %vm211, %v200, 0
      %215 = vmatprep.subr.mxu0 0.0
      %v216 = vand.u32 %v201, 4294901760
      %217 = vmatpush1.msra.mxu0 %v216
      %218 = vmatprep.subr.mxu0 0.0
      %v219 = vand.u32 %v202, 4294901760
      %220 = vmatpush1.msra.mxu0 %v219
      %221 = vmatprep.subr.mxu0 0.0
      %v222 = vand.u32 %v203, 4294901760
      %223 = vmatpush1.msra.mxu0 %v222
      %224 = vmatprep.subr.mxu0 0.0
      %v225 = vand.u32 %v204, 4294901760
      %226 = vmatpush1.msra.mxu0 %v225
      %227 = vmatprep.subr.mxu0 0.0
      %228 = vmatpush1.msra.mxu0 0.0
      %229 = vmatprep.subr.mxu0 0.0
      %230 = vmatpush1.msra.mxu0 0.0
      %231 = vmatprep.subr.mxu0 0.0
      %232 = vmatpush1.msra.mxu0 0.0
      %233 = vmatprep.subr.mxu0 0.0
      %234 = vmatpush1.msra.mxu0 0.0
      %235 = vmatprep.subr.mxu0 0.0
      %236 = vmatpush1.msra.mxu0 0.0
      %237 = vmatprep.subr.mxu0 0.0
      %238 = vmatpush1.msra.mxu0 0.0
      %239 = vmatprep.subr.mxu0 0.0
      %240 = vmatpush1.msra.mxu0 0.0
      %241 = vmatprep.subr.mxu0 0.0
      %242 = vmatpush1.msra.mxu0 0.0
      %243 = vmatprep.subr.mxu0 0.0
      %244 = vmatpush1.msra.mxu0 0.0
      %245 = vmatprep.subr.mxu0 0.0
      %246 = vmatpush1.msra.mxu0 0.0
      %247 = vmatprep.subr.mxu0 0.0
      %248 = vmatpush1.msra.mxu0 0.0
      %249 = vmatprep.subr.mxu0 0.0
      %250 = vmatpush1.msra.mxu0 0.0
      %251 = vmatprep.subr.mxu0 0.0
      %252 = vmatpush1.msra.mxu0 0.0
      %253 = vmatprep.subr.mxu0 0.0
      %254 = vmatpush1.msra.mxu0 0.0
      %255 = vmatprep.subr.mxu0 0.0
      %256 = vmatpush1.msra.mxu0 0.0
      %257 = vmatprep.subr.mxu0 0.0
      %258 = vmatpush1.msra.mxu0 0.0
      %259 = vmatprep.subr.mxu0 0.0
      %260 = vmatpush1.msra.mxu0 0.0
      %261 = vmatprep.subr.mxu0 0.0
      %262 = vmatpush1.msra.mxu0 0.0
      %263 = vmatprep.subr.mxu0 0.0
      %264 = vmatpush1.msra.mxu0 0.0
      %265 = vmatprep.subr.mxu0 0.0
      %266 = vmatpush1.msra.mxu0 0.0
      %267 = vmatprep.subr.mxu0 0.0
      %268 = vmatpush1.msra.mxu0 0.0
      %269 = vmatprep.subr.mxu0 0.0
      %270 = vmatpush1.msra.mxu0 0.0
      %271 = vmatprep.subr.mxu0 0.0
      %272 = vmatpush1.msra.mxu0 0.0
      %273 = vmatprep.subr.mxu0 0.0
      %274 = vmatpush1.msra.mxu0 0.0
      %275 = vmatprep.subr.mxu0 0.0
      %276 = vmatpush1.msra.mxu0 0.0
      %277 = vmatprep.subr.mxu0 0.0
      %278 = vmatpush1.msra.mxu0 0.0
      %279 = vmatprep.subr.mxu0 0.0
      %280 = vmatpush1.msra.mxu0 0.0
      %281 = vmatprep.subr.mxu0 0.0
      %282 = vmatpush1.msra.mxu0 0.0
      %283 = vmatprep.mubr.f32.mxu0 0.0
      %v284 = vand.u32 %v213, 4294901760
      %v285 = vsub.f32 %v213, %v284
      %v286 = vand.u32 %v285, 4294901760
      %v287 = vsub.f32 %v285, %v286
      %v288 = vand.u32 %v287, 4294901760
      %289 = vmatmul.mubr.f32.gmra.mrb[0].mxu0 %v288
      %v290 = vpop.f32.mrb[0].mxu0
      %v291 = vadd.f32 %v209, %v290
      %v292 = vpop.f32.mrb[0].mxu0
      %293 = vdwg.mxu0
      %294 = vmatprep.subr.mxu0 0.0
      %v295 = vand.u32 %v201, 4294901760
      %v296 = vsub.f32 %v201, %v295
      %v297 = vand.u32 %v296, 4294901760
      %v298 = vsub.f32 %v296, %v297
      %v299 = vand.u32 %v298, 4294901760
      %300 = vmatpush1.msra.mxu0 %v299
      %301 = vmatprep.subr.mxu0 0.0
      %v302 = vand.u32 %v202, 4294901760
      %v303 = vsub.f32 %v202, %v302
      %v304 = vand.u32 %v303, 4294901760
      %v305 = vsub.f32 %v303, %v304
      %v306 = vand.u32 %v305, 4294901760
      %307 = vmatpush1.msra.mxu0 %v306
      %308 = vmatprep.subr.mxu0 0.0
      %v309 = vand.u32 %v203, 4294901760
      %v310 = vsub.f32 %v203, %v309
      %v311 = vand.u32 %v310, 4294901760
      %v312 = vsub.f32 %v310, %v311
      %v313 = vand.u32 %v312, 4294901760
      %314 = vmatpush1.msra.mxu0 %v313
      %315 = vmatprep.subr.mxu0 0.0
      %v316 = vand.u32 %v204, 4294901760
      %v317 = vsub.f32 %v204, %v316
      %v318 = vand.u32 %v317, 4294901760
      %v319 = vsub.f32 %v317, %v318
      %v320 = vand.u32 %v319, 4294901760
      %321 = vmatpush1.msra.mxu0 %v320
      %322 = vmatprep.subr.mxu0 0.0
      %323 = vmatpush1.msra.mxu0 0.0
      %324 = vmatprep.subr.mxu0 0.0
      %325 = vmatpush1.msra.mxu0 0.0
      %326 = vmatprep.subr.mxu0 0.0
      %327 = vmatpush1.msra.mxu0 0.0
      %328 = vmatprep.subr.mxu0 0.0
      %329 = vmatpush1.msra.mxu0 0.0
      %330 = vmatprep.subr.mxu0 0.0
      %331 = vmatpush1.msra.mxu0 0.0
      %332 = vmatprep.subr.mxu0 0.0
      %333 = vmatpush1.msra.mxu0 0.0
      %334 = vmatprep.subr.mxu0 0.0
      %335 = vmatpush1.msra.mxu0 0.0
      %336 = vmatprep.subr.mxu0 0.0
      %337 = vmatpush1.msra.mxu0 0.0
      %338 = vmatprep.subr.mxu0 0.0
      %339 = vmatpush1.msra.mxu0 0.0
      %340 = vmatprep.subr.mxu0 0.0
      %341 = vmatpush1.msra.mxu0 0.0
      %342 = vmatprep.subr.mxu0 0.0
      %343 = vmatpush1.msra.mxu0 0.0
      %344 = vmatprep.subr.mxu0 0.0
      %345 = vmatpush1.msra.mxu0 0.0
      %346 = vmatprep.subr.mxu0 0.0
      %347 = vmatpush1.msra.mxu0 0.0
      %348 = vmatprep.subr.mxu0 0.0
      %349 = vmatpush1.msra.mxu0 0.0
      %350 = vmatprep.subr.mxu0 0.0
      %351 = vmatpush1.msra.mxu0 0.0
      %352 = vmatprep.subr.mxu0 0.0
      %353 = vmatpush1.msra.mxu0 0.0
      %354 = vmatprep.subr.mxu0 0.0
      %355 = vmatpush1.msra.mxu0 0.0
      %356 = vmatprep.subr.mxu0 0.0
      %357 = vmatpush1.msra.mxu0 0.0
      %358 = vmatprep.subr.mxu0 0.0
      %359 = vmatpush1.msra.mxu0 0.0
      %360 = vmatprep.subr.mxu0 0.0
      %361 = vmatpush1.msra.mxu0 0.0
      %362 = vmatprep.subr.mxu0 0.0
      %363 = vmatpush1.msra.mxu0 0.0
      %364 = vmatprep.subr.mxu0 0.0
      %365 = vmatpush1.msra.mxu0 0.0
      %366 = vmatprep.subr.mxu0 0.0
      %367 = vmatpush1.msra.mxu0 0.0
      %368 = vmatprep.subr.mxu0 0.0
      %369 = vmatpush1.msra.mxu0 0.0
      %370 = vmatprep.subr.mxu0 0.0
      %371 = vmatpush1.msra.mxu0 0.0
      %372 = vmatprep.subr.mxu0 0.0
      %373 = vmatpush1.msra.mxu0 0.0
      %374 = vmatprep.subr.mxu0 0.0
      %375 = vmatpush1.msra.mxu0 0.0
      %376 = vmatprep.subr.mxu0 0.0
      %377 = vmatpush1.msra.mxu0 0.0
      %378 = vmatprep.mubr.f32.mxu0 0.0
      %v379 = vand.u32 %v213, 4294901760
      %380 = vmatmul.mubr.f32.gmra.mrb[0].mxu0 %v379
      %v381 = vpop.f32.mrb[0].mxu0
      %v382 = vadd.f32 %v291, %v381
      %v383 = vpop.f32.mrb[0].mxu0
      %384 = vdwg.mxu0
      %385 = vmatprep.subr.mxu0 0.0
      %v386 = vand.u32 %v201, 4294901760
      %v387 = vsub.f32 %v201, %v386
      %388 = vmatpush1.msra.mxu0 %v387
      %389 = vmatprep.subr.mxu0 0.0
      %v390 = vand.u32 %v202, 4294901760
      %v391 = vsub.f32 %v202, %v390
      %392 = vmatpush1.msra.mxu0 %v391
      %393 = vmatprep.subr.mxu0 0.0
      %v394 = vand.u32 %v203, 4294901760
      %v395 = vsub.f32 %v203, %v394
      %396 = vmatpush1.msra.mxu0 %v395
      %397 = vmatprep.subr.mxu0 0.0
      %v398 = vand.u32 %v204, 4294901760
      %v399 = vsub.f32 %v204, %v398
      %400 = vmatpush1.msra.mxu0 %v399
      %401 = vmatprep.subr.mxu0 0.0
      %402 = vmatpush1.msra.mxu0 0.0
      %403 = vmatprep.subr.mxu0 0.0
      %404 = vmatpush1.msra.mxu0 0.0
      %405 = vmatprep.subr.mxu0 0.0
      %406 = vmatpush1.msra.mxu0 0.0
      %407 = vmatprep.subr.mxu0 0.0
      %408 = vmatpush1.msra.mxu0 0.0
      %409 = vmatprep.subr.mxu0 0.0
      %410 = vmatpush1.msra.mxu0 0.0
      %411 = vmatprep.subr.mxu0 0.0
      %412 = vmatpush1.msra.mxu0 0.0
      %413 = vmatprep.subr.mxu0 0.0
      %414 = vmatpush1.msra.mxu0 0.0
      %415 = vmatprep.subr.mxu0 0.0
      %416 = vmatpush1.msra.mxu0 0.0
      %417 = vmatprep.subr.mxu0 0.0
      %418 = vmatpush1.msra.mxu0 0.0
      %419 = vmatprep.subr.mxu0 0.0
      %420 = vmatpush1.msra.mxu0 0.0
      %421 = vmatprep.subr.mxu0 0.0
      %422 = vmatpush1.msra.mxu0 0.0
      %423 = vmatprep.subr.mxu0 0.0
      %424 = vmatpush1.msra.mxu0 0.0
      %425 = vmatprep.subr.mxu0 0.0
      %426 = vmatpush1.msra.mxu0 0.0
      %427 = vmatprep.subr.mxu0 0.0
      %428 = vmatpush1.msra.mxu0 0.0
      %429 = vmatprep.subr.mxu0 0.0
      %430 = vmatpush1.msra.mxu0 0.0
      %431 = vmatprep.subr.mxu0 0.0
      %432 = vmatpush1.msra.mxu0 0.0
      %433 = vmatprep.subr.mxu0 0.0
      %434 = vmatpush1.msra.mxu0 0.0
      %435 = vmatprep.subr.mxu0 0.0
      %436 = vmatpush1.msra.mxu0 0.0
      %437 = vmatprep.subr.mxu0 0.0
      %438 = vmatpush1.msra.mxu0 0.0
      %439 = vmatprep.subr.mxu0 0.0
      %440 = vmatpush1.msra.mxu0 0.0
      %441 = vmatprep.subr.mxu0 0.0
      %442 = vmatpush1.msra.mxu0 0.0
      %443 = vmatprep.subr.mxu0 0.0
      %444 = vmatpush1.msra.mxu0 0.0
      %445 = vmatprep.subr.mxu0 0.0
      %446 = vmatpush1.msra.mxu0 0.0
      %447 = vmatprep.subr.mxu0 0.0
      %448 = vmatpush1.msra.mxu0 0.0
      %449 = vmatprep.subr.mxu0 0.0
      %450 = vmatpush1.msra.mxu0 0.0
      %451 = vmatprep.subr.mxu0 0.0
      %452 = vmatpush1.msra.mxu0 0.0
      %453 = vmatprep.subr.mxu0 0.0
      %454 = vmatpush1.msra.mxu0 0.0
      %455 = vmatprep.subr.mxu0 0.0
      %456 = vmatpush1.msra.mxu0 0.0
      %457 = vmatprep.mubr.f32.mxu0 0.0
      %v458 = vand.u32 %v213, 4294901760
      %v459 = vsub.f32 %v213, %v458
      %460 = vmatmul.mubr.f32.gmra.mrb[0].mxu0 %v459
      %v461 = vpop.f32.mrb[0].mxu0
      %v462 = vadd.f32 %v382, %v461
      %v463 = vpop.f32.mrb[0].mxu0
      %464 = vdwg.mxu0
      %465 = vmatprep.subr.mxu0 0.0
      %v466 = vand.u32 %v201, 4294901760
      %467 = vmatpush1.msra.mxu0 %v466
      %468 = vmatprep.subr.mxu0 0.0
      %v469 = vand.u32 %v202, 4294901760
      %470 = vmatpush1.msra.mxu0 %v469
      %471 = vmatprep.subr.mxu0 0.0
      %v472 = vand.u32 %v203, 4294901760
      %473 = vmatpush1.msra.mxu0 %v472
      %474 = vmatprep.subr.mxu0 0.0
      %v475 = vand.u32 %v204, 4294901760
      %476 = vmatpush1.msra.mxu0 %v475
      %477 = vmatprep.subr.mxu0 0.0
      %478 = vmatpush1.msra.mxu0 0.0
      %479 = vmatprep.subr.mxu0 0.0
      %480 = vmatpush1.msra.mxu0 0.0
      %481 = vmatprep.subr.mxu0 0.0
      %482 = vmatpush1.msra.mxu0 0.0
      %483 = vmatprep.subr.mxu0 0.0
      %484 = vmatpush1.msra.mxu0 0.0
      %485 = vmatprep.subr.mxu0 0.0
      %486 = vmatpush1.msra.mxu0 0.0
      %487 = vmatprep.subr.mxu0 0.0
      %488 = vmatpush1.msra.mxu0 0.0
      %489 = vmatprep.subr.mxu0 0.0
      %490 = vmatpush1.msra.mxu0 0.0
      %491 = vmatprep.subr.mxu0 0.0
      %492 = vmatpush1.msra.mxu0 0.0
      %493 = vmatprep.subr.mxu0 0.0
      %494 = vmatpush1.msra.mxu0 0.0
      %495 = vmatprep.subr.mxu0 0.0
      %496 = vmatpush1.msra.mxu0 0.0
      %497 = vmatprep.subr.mxu0 0.0
      %498 = vmatpush1.msra.mxu0 0.0
      %499 = vmatprep.subr.mxu0 0.0
      %500 = vmatpush1.msra.mxu0 0.0
      %501 = vmatprep.subr.mxu0 0.0
      %502 = vmatpush1.msra.mxu0 0.0
      %503 = vmatprep.subr.mxu0 0.0
      %504 = vmatpush1.msra.mxu0 0.0
      %505 = vmatprep.subr.mxu0 0.0
      %506 = vmatpush1.msra.mxu0 0.0
      %507 = vmatprep.subr.mxu0 0.0
      %508 = vmatpush1.msra.mxu0 0.0
      %509 = vmatprep.subr.mxu0 0.0
      %510 = vmatpush1.msra.mxu0 0.0
      %511 = vmatprep.subr.mxu0 0.0
      %512 = vmatpush1.msra.mxu0 0.0
      %513 = vmatprep.subr.mxu0 0.0
      %514 = vmatpush1.msra.mxu0 0.0
      %515 = vmatprep.subr.mxu0 0.0
      %516 = vmatpush1.msra.mxu0 0.0
      %517 = vmatprep.subr.mxu0 0.0
      %518 = vmatpush1.msra.mxu0 0.0
      %519 = vmatprep.subr.mxu0 0.0
      %520 = vmatpush1.msra.mxu0 0.0
      %521 = vmatprep.subr.mxu0 0.0
      %522 = vmatpush1.msra.mxu0 0.0
      %523 = vmatprep.subr.mxu0 0.0
      %524 = vmatpush1.msra.mxu0 0.0
      %525 = vmatprep.subr.mxu0 0.0
      %526 = vmatpush1.msra.mxu0 0.0
      %527 = vmatprep.subr.mxu0 0.0
      %528 = vmatpush1.msra.mxu0 0.0
      %529 = vmatprep.subr.mxu0 0.0
      %530 = vmatpush1.msra.mxu0 0.0
      %531 = vmatprep.subr.mxu0 0.0
      %532 = vmatpush1.msra.mxu0 0.0
      %533 = vmatprep.mubr.f32.mxu0 0.0
      %v534 = vand.u32 %v213, 4294901760
      %v535 = vsub.f32 %v213, %v534
      %v536 = vand.u32 %v535, 4294901760
      %537 = vmatmul.mubr.f32.gmra.mrb[0].mxu0 %v536
      %v538 = vpop.f32.mrb[0].mxu0
      %v539 = vadd.f32 %v462, %v538
      %v540 = vpop.f32.mrb[0].mxu0
      %541 = vdwg.mxu0
      %542 = vmatprep.subr.mxu0 0.0
      %v543 = vand.u32 %v201, 4294901760
      %v544 = vsub.f32 %v201, %v543
      %v545 = vand.u32 %v544, 4294901760
      %546 = vmatpush1.msra.mxu0 %v545
      %547 = vmatprep.subr.mxu0 0.0
      %v548 = vand.u32 %v202, 4294901760
      %v549 = vsub.f32 %v202, %v548
      %v550 = vand.u32 %v549, 4294901760
      %551 = vmatpush1.msra.mxu0 %v550
      %552 = vmatprep.subr.mxu0 0.0
      %v553 = vand.u32 %v203, 4294901760
      %v554 = vsub.f32 %v203, %v553
      %v555 = vand.u32 %v554, 4294901760
      %556 = vmatpush1.msra.mxu0 %v555
      %557 = vmatprep.subr.mxu0 0.0
      %v558 = vand.u32 %v204, 4294901760
      %v559 = vsub.f32 %v204, %v558
      %v560 = vand.u32 %v559, 4294901760
      %561 = vmatpush1.msra.mxu0 %v560
      %562 = vmatprep.subr.mxu0 0.0
      %563 = vmatpush1.msra.mxu0 0.0
      %564 = vmatprep.subr.mxu0 0.0
      %565 = vmatpush1.msra.mxu0 0.0
      %566 = vmatprep.subr.mxu0 0.0
      %567 = vmatpush1.msra.mxu0 0.0
      %568 = vmatprep.subr.mxu0 0.0
      %569 = vmatpush1.msra.mxu0 0.0
      %570 = vmatprep.subr.mxu0 0.0
      %571 = vmatpush1.msra.mxu0 0.0
      %572 = vmatprep.subr.mxu0 0.0
      %573 = vmatpush1.msra.mxu0 0.0
      %574 = vmatprep.subr.mxu0 0.0
      %575 = vmatpush1.msra.mxu0 0.0
      %576 = vmatprep.subr.mxu0 0.0
      %577 = vmatpush1.msra.mxu0 0.0
      %578 = vmatprep.subr.mxu0 0.0
      %579 = vmatpush1.msra.mxu0 0.0
      %580 = vmatprep.subr.mxu0 0.0
      %581 = vmatpush1.msra.mxu0 0.0
      %582 = vmatprep.subr.mxu0 0.0
      %583 = vmatpush1.msra.mxu0 0.0
      %584 = vmatprep.subr.mxu0 0.0
      %585 = vmatpush1.msra.mxu0 0.0
      %586 = vmatprep.subr.mxu0 0.0
      %587 = vmatpush1.msra.mxu0 0.0
      %588 = vmatprep.subr.mxu0 0.0
      %589 = vmatpush1.msra.mxu0 0.0
      %590 = vmatprep.subr.mxu0 0.0
      %591 = vmatpush1.msra.mxu0 0.0
      %592 = vmatprep.subr.mxu0 0.0
      %593 = vmatpush1.msra.mxu0 0.0
      %594 = vmatprep.subr.mxu0 0.0
      %595 = vmatpush1.msra.mxu0 0.0
      %596 = vmatprep.subr.mxu0 0.0
      %597 = vmatpush1.msra.mxu0 0.0
      %598 = vmatprep.subr.mxu0 0.0
      %599 = vmatpush1.msra.mxu0 0.0
      %600 = vmatprep.subr.mxu0 0.0
      %601 = vmatpush1.msra.mxu0 0.0
      %602 = vmatprep.subr.mxu0 0.0
      %603 = vmatpush1.msra.mxu0 0.0
      %604 = vmatprep.subr.mxu0 0.0
      %605 = vmatpush1.msra.mxu0 0.0
      %606 = vmatprep.subr.mxu0 0.0
      %607 = vmatpush1.msra.mxu0 0.0
      %608 = vmatprep.subr.mxu0 0.0
      %609 = vmatpush1.msra.mxu0 0.0
      %610 = vmatprep.subr.mxu0 0.0
      %611 = vmatpush1.msra.mxu0 0.0
      %612 = vmatprep.subr.mxu0 0.0
      %613 = vmatpush1.msra.mxu0 0.0
      %614 = vmatprep.subr.mxu0 0.0
      %615 = vmatpush1.msra.mxu0 0.0
      %616 = vmatprep.subr.mxu0 0.0
      %617 = vmatpush1.msra.mxu0 0.0
      %618 = vmatprep.mubr.f32.mxu0 0.0
      %v619 = vand.u32 %v213, 4294901760
      %620 = vmatmul.mubr.f32.gmra.mrb[0].mxu0 %v619
      %v621 = vpop.f32.mrb[0].mxu0
      %v622 = vadd.f32 %v539, %v621
      %v623 = vpop.f32.mrb[0].mxu0
      %624 = vdwg.mxu0
      %625 = vmatprep.subr.mxu0 0.0
      %v626 = vand.u32 %v201, 4294901760
      %627 = vmatpush1.msra.mxu0 %v626
      %628 = vmatprep.subr.mxu0 0.0
      %v629 = vand.u32 %v202, 4294901760
      %630 = vmatpush1.msra.mxu0 %v629
      %631 = vmatprep.subr.mxu0 0.0
      %v632 = vand.u32 %v203, 4294901760
      %633 = vmatpush1.msra.mxu0 %v632
      %634 = vmatprep.subr.mxu0 0.0
      %v635 = vand.u32 %v204, 4294901760
      %636 = vmatpush1.msra.mxu0 %v635
      %637 = vmatprep.subr.mxu0 0.0
      %638 = vmatpush1.msra.mxu0 0.0
      %639 = vmatprep.subr.mxu0 0.0
      %640 = vmatpush1.msra.mxu0 0.0
      %641 = vmatprep.subr.mxu0 0.0
      %642 = vmatpush1.msra.mxu0 0.0
      %643 = vmatprep.subr.mxu0 0.0
      %644 = vmatpush1.msra.mxu0 0.0
      %645 = vmatprep.subr.mxu0 0.0
      %646 = vmatpush1.msra.mxu0 0.0
      %647 = vmatprep.subr.mxu0 0.0
      %648 = vmatpush1.msra.mxu0 0.0
      %649 = vmatprep.subr.mxu0 0.0
      %650 = vmatpush1.msra.mxu0 0.0
      %651 = vmatprep.subr.mxu0 0.0
      %652 = vmatpush1.msra.mxu0 0.0
      %653 = vmatprep.subr.mxu0 0.0
      %654 = vmatpush1.msra.mxu0 0.0
      %655 = vmatprep.subr.mxu0 0.0
      %656 = vmatpush1.msra.mxu0 0.0
      %657 = vmatprep.subr.mxu0 0.0
      %658 = vmatpush1.msra.mxu0 0.0
      %659 = vmatprep.subr.mxu0 0.0
      %660 = vmatpush1.msra.mxu0 0.0
      %661 = vmatprep.subr.mxu0 0.0
      %662 = vmatpush1.msra.mxu0 0.0
      %663 = vmatprep.subr.mxu0 0.0
      %664 = vmatpush1.msra.mxu0 0.0
      %665 = vmatprep.subr.mxu0 0.0
      %666 = vmatpush1.msra.mxu0 0.0
      %667 = vmatprep.subr.mxu0 0.0
      %668 = vmatpush1.msra.mxu0 0.0
      %669 = vmatprep.subr.mxu0 0.0
      %670 = vmatpush1.msra.mxu0 0.0
      %671 = vmatprep.subr.mxu0 0.0
      %672 = vmatpush1.msra.mxu0 0.0
      %673 = vmatprep.subr.mxu0 0.0
      %674 = vmatpush1.msra.mxu0 0.0
      %675 = vmatprep.subr.mxu0 0.0
      %676 = vmatpush1.msra.mxu0 0.0
      %677 = vmatprep.subr.mxu0 0.0
      %678 = vmatpush1.msra.mxu0 0.0
      %679 = vmatprep.subr.mxu0 0.0
      %680 = vmatpush1.msra.mxu0 0.0
      %681 = vmatprep.subr.mxu0 0.0
      %682 = vmatpush1.msra.mxu0 0.0
      %683 = vmatprep.subr.mxu0 0.0
      %684 = vmatpush1.msra.mxu0 0.0
      %685 = vmatprep.subr.mxu0 0.0
      %686 = vmatpush1.msra.mxu0 0.0
      %687 = vmatprep.subr.mxu0 0.0
      %688 = vmatpush1.msra.mxu0 0.0
      %689 = vmatprep.subr.mxu0 0.0
      %690 = vmatpush1.msra.mxu0 0.0
      %691 = vmatprep.subr.mxu0 0.0
      %692 = vmatpush1.msra.mxu0 0.0
      %693 = vmatprep.mubr.f32.mxu0 0.0
      %v694 = vand.u32 %v213, 4294901760
      %695 = vmatmul.mubr.f32.gmra.mrb[0].mxu0 %v694
      %v696 = vpop.f32.mrb[0].mxu0
      %v697 = vadd.f32 %v622, %v696
      %v698 = vpop.f32.mrb[0].mxu0
      %699 = vdwg.mxu0
      %vm700 = vcmp.ge.f32.partialorder %v697, 0.0
      %v701 = vmul.f32 %v697, 0.2
      %v702 = vsel %vm700, %v697, %v701
      %703 = vst [vmem:[%s199] sm:$0xff] %v702
      %p704 = scmp.lt.s32.totalorder %s18, 1
      %s705 = scalar_select %p704, %s18, 1
      %p706 = scmp.lt.s32.totalorder %s19, 0
      %s707 = scalar_select %p706, %s19, 0
      %s708 = sadd.s32 %s707, %s705
      %s709 = smul.addr %s708, 8
      %s710 = scalar_lea.vmem %s3, %s709
      // Predicated region
      $region33: #{d_upproj_block.11} parent=31 // pred_check
        %p711 = pneg %p116
      $region34: #{d_upproj_block.11} parent=31 // pred_check_branch
        %713 = sbr.rel (%p711) target = $region36
      $region35: #{d_upproj_block.11} parent=31 // pred_region
        _
      $region36: #{d_upproj_block.11} parent=31 // pred_fallthru
        _
    $region32: #{d_upproj_block.11} parent=5 // pred_fallthru
      _
    %p714 = scmp.le.s32.totalorder 2, %s9
    // Predicated region
    $region37: #{d_upproj_block.11} parent=5 // pred_check
      %p715 = pneg %p714
    $region38: #{d_upproj_block.11} parent=5 // pred_check_branch
      %717 = sbr.rel (%p715) target = $region40
    $region39: #{d_upproj_block.11} parent=5 // pred_region
      %s718 = ssub.s32 %s9, 2
      // Predicated region
      $region41: #{d_upproj_block.11} parent=39 // pred_check
        %p719 = pneg %p122
      $region42: #{d_upproj_block.11} parent=39 // pred_check_branch
        %721 = sbr.rel (%p719) target = $region44
      $region43: #{d_upproj_block.11} parent=39 // pred_region
        %p722 = scmp.lt.s32.totalorder %s20, 1
        %s723 = scalar_select %p722, %s20, 1
        %p724 = scmp.lt.s32.totalorder %s21, 0
        %s725 = scalar_select %p724, %s21, 0
        %s726 = sadd.s32 %s725, %s723
        %s727 = smul.addr %s726, 8
        %s728 = scalar_lea.vmem %s3, %s727
      $region44: #{d_upproj_block.11} parent=39 // pred_fallthru
        _
    $region40: #{d_upproj_block.11} parent=5 // pred_fallthru
      _
  $region6: #{d_upproj_block.11} parent=0 // loop_footer
    %s13 = sadd.s32 1, %s9
  $region7: #{d_upproj_block.11} parent=0 // loop_footer_branch
    %8 = sbr.rel target = $region3
  $region8: #{d_upproj_block.11} parent=0 // loop_exit
    _

// kernel: d_upproj_block.15
$region0: #{d_upproj_block.15}
  #allocation0 [shape = 'u32[]', space=smem, size = 0x4, offset = 0x4, fixed_abs, tag = 'smem constant byte address 0x4 - core index']
  #allocation1 [shape = 'u32[144,128]{1,0:T(1,128)}', space=vmem, size = 0x12000, scoped, tag = 'internal scratch']
  %s0 = inlined_call_operand.vmem [shape: f32[2,128,128], index: 0, kind: input, shape index: {}]
  %s1 = inlined_call_operand.vmem [shape: f32[8,128], index: 1, kind: input, shape index: {}]
  %s2 = inlined_call_operand.vmem [shape: f32[8,1], index: 2, kind: input, shape index: {}]
  %s3 = inlined_call_operand.vmem [shape: f32[2,8,128], index: 3, kind: input, shape index: {}]
  %s4 = inlined_call_operand.vmem [shape: f32[2,8,128], index: 4, kind: output, shape index: {}]
  %s5 = sld [smem:[#allocation0]]
  $region49: #{d_upproj_block.15} parent=0
    _
  %s7 = ssub.s32 1, %s5
  %s8 = scalar_select 0, %s7, %s5
  loop: start=0, step=1, limit=4
  $region2: #{d_upproj_block.15} parent=0 // loop_pre_header
    _
  $region3: #{d_upproj_block.15} parent=0 // loop_header
    %s10 = sphi 0, %s14
    %p11 = scmp.ge.s32.totalorder %s10, 4
    %s17 = sphi 0, %s29
    %s18 = sphi 0, %s25
    %s19 = sphi 0, %s17
    %s20 = sphi 0, %s18
    %s21 = sphi 0, %s19
    %s22 = sphi 0, %s20
    %s34 = sphi 0, %s36
    %s37 = sphi 0, %s34
    %s38 = sphi 0, %s37
    %s54 = sphi 0, %s38
    %s58 = sphi 0, %s58
    %s60 = sphi 0, %s58
    %s61 = sphi 0, %s60
    %s75 = sphi 0, %s61
    %s79 = sphi 0, %s79
    %s81 = sphi 0, %s79
    %s82 = sphi 0, %s81
    %s96 = sphi 0, %s82
    %s104 = sphi 0, %s106
    %s107 = sphi 0, %s104
    %s108 = sphi 0, %s107
    %s124 = sphi 0, %s108
    %s132 = sphi 0, %s134
    %s135 = sphi 0, %s132
    %s136 = sphi 0, %s135
    %s152 = sphi 0, %s136
  $region4: #{d_upproj_block.15} parent=0 // loop_header_branch
    %13 = sbr.rel (%p11) target = $region8
  $region5: #{d_upproj_block.15} parent=0 // loop_body
    %s15 = ssub.s32 %s10, 1
    %s16 = ssub.s32 %s10, 2
    %s23 = sadd.s32 1, %s18
    %p24 = scmp.ge.s32.totalorder %s23, 1
    %s25 = scalar_select %p24, 0, %s23
    %s26 = sadd.s32 1, %s17
    %s27 = scalar_select %p24, %s26, %s17
    %p28 = scmp.ge.s32.totalorder %s27, 2
    %s29 = scalar_select %p28, 0, %s27
    %s30 = ssub.s32 %s17, %s29
    %s31 = ssub.s32 %s18, %s25
    %s32 = sor.u32 %s30, %s31
    %p33 = scmp.eq.s32.totalorder %s32, 0
    %s35 = sadd.s32 %s34, 1
    %s36 = scalar_select %p33, %s34, %s35
    %p39 = pneg %p33
    %p40 = scmp.eq.s32.totalorder %s10, 1
    %p41 = por %p39, %p40
    %p42 = scmp.ne.s32.totalorder %s34, %s37
    %p43 = scmp.eq.s32.totalorder %s10, 0
    %p44 = por %p42, %p43
    %p45 = scmp.ne.s32.totalorder %s34, %s37
    %p46 = scmp.eq.s32.totalorder %s15, 1
    %p47 = por %p45, %p46
    %p48 = scmp.ne.s32.totalorder %s37, %s38
    %p49 = scmp.eq.s32.totalorder %s15, 0
    %p50 = por %p48, %p49
    %p51 = scmp.ne.s32.totalorder %s37, %s38
    %p52 = scmp.eq.s32.totalorder %s16, 1
    %p53 = por %p51, %p52
    %p55 = scmp.ne.s32.totalorder %s38, %s54
    %p56 = scmp.eq.s32.totalorder %s16, 0
    %p57 = por %p55, %p56
    %s59 = sadd.s32 %s58, 1
    %p62 = scmp.eq.s32.totalorder %s10, 1
    %p63 = scmp.ne.s32.totalorder %s58, %s60
    %p64 = scmp.eq.s32.totalorder %s10, 0
    %p65 = por %p63, %p64
    %p66 = scmp.ne.s32.totalorder %s58, %s60
    %p67 = scmp.eq.s32.totalorder %s15, 1
    %p68 = por %p66, %p67
    %p69 = scmp.ne.s32.totalorder %s60, %s61
    %p70 = scmp.eq.s32.totalorder %s15, 0
    %p71 = por %p69, %p70
    %p72 = scmp.ne.s32.totalorder %s60, %s61
    %p73 = scmp.eq.s32.totalorder %s16, 1
    %p74 = por %p72, %p73
    %p76 = scmp.ne.s32.totalorder %s61, %s75
    %p77 = scmp.eq.s32.totalorder %s16, 0
    %p78 = por %p76, %p77
    %s80 = sadd.s32 %s79, 1
    %p83 = scmp.eq.s32.totalorder %s10, 1
    %p84 = scmp.ne.s32.totalorder %s79, %s81
    %p85 = scmp.eq.s32.totalorder %s10, 0
    %p86 = por %p84, %p85
    %p87 = scmp.ne.s32.totalorder %s79, %s81
    %p88 = scmp.eq.s32.totalorder %s15, 1
    %p89 = por %p87, %p88
    %p90 = scmp.ne.s32.totalorder %s81, %s82
    %p91 = scmp.eq.s32.totalorder %s15, 0
    %p92 = por %p90, %p91
    %p93 = scmp.ne.s32.totalorder %s81, %s82
    %p94 = scmp.eq.s32.totalorder %s16, 1
    %p95 = por %p93, %p94
    %p97 = scmp.ne.s32.totalorder %s82, %s96
    %p98 = scmp.eq.s32.totalorder %s16, 0
    %p99 = por %p97, %p98
    %s100 = ssub.s32 %s17, %s29
    %s101 = ssub.s32 %s18, %s25
    %s102 = sor.u32 %s100, %s101
    %p103 = scmp.eq.s32.totalorder %s102, 0
    %s105 = sadd.s32 %s104, 1
    %s106 = scalar_select %p103, %s104, %s105
    %p109 = pneg %p103
    %p110 = scmp.eq.s32.totalorder %s10, 1
    %p111 = por %p109, %p110
    %p112 = scmp.ne.s32.totalorder %s104, %s107
    %p113 = scmp.eq.s32.totalorder %s10, 0
    %p114 = por %p112, %p113
    %p115 = scmp.ne.s32.totalorder %s104, %s107
    %p116 = scmp.eq.s32.totalorder %s15, 1
    %p117 = por %p115, %p116
    %p118 = scmp.ne.s32.totalorder %s107, %s108
    %p119 = scmp.eq.s32.totalorder %s15, 0
    %p120 = por %p118, %p119
    %p121 = scmp.ne.s32.totalorder %s107, %s108
    %p122 = scmp.eq.s32.totalorder %s16, 1
    %p123 = por %p121, %p122
    %p125 = scmp.ne.s32.totalorder %s108, %s124
    %p126 = scmp.eq.s32.totalorder %s16, 0
    %p127 = por %p125, %p126
    %s128 = ssub.s32 %s17, %s29
    %s129 = ssub.s32 %s18, %s25
    %s130 = sor.u32 %s128, %s129
    %p131 = scmp.eq.s32.totalorder %s130, 0
    %s133 = sadd.s32 %s132, 1
    %s134 = scalar_select %p131, %s132, %s133
    %p137 = pneg %p131
    %p138 = scmp.eq.s32.totalorder %s10, 1
    %p139 = por %p137, %p138
    %p140 = scmp.ne.s32.totalorder %s132, %s135
    %p141 = scmp.eq.s32.totalorder %s10, 0
    %p142 = por %p140, %p141
    %p143 = scmp.ne.s32.totalorder %s132, %s135
    %p144 = scmp.eq.s32.totalorder %s15, 1
    %p145 = por %p143, %p144
    %p146 = scmp.ne.s32.totalorder %s135, %s136
    %p147 = scmp.eq.s32.totalorder %s15, 0
    %p148 = por %p146, %p147
    %p149 = scmp.ne.s32.totalorder %s135, %s136
    %p150 = scmp.eq.s32.totalorder %s16, 1
    %p151 = por %p149, %p150
    %p153 = scmp.ne.s32.totalorder %s136, %s152
    %p154 = scmp.eq.s32.totalorder %s16, 0
    %p155 = por %p153, %p154
    %p156 = scmp.le.s32.totalorder 1, %s10
    %p157 = scmp.lt.s32.totalorder %s10, 3
    %p158 = pnand %p156, %p157
    %p159 = pneg %p158
    // Predicated region
    $region9: #{d_upproj_block.15} parent=5 // pred_check
      _
    $region10: #{d_upproj_block.15} parent=5 // pred_check_branch
      %161 = sbr.rel (%p158) target = $region12
    $region11: #{d_upproj_block.15} parent=5 // pred_region
      %s162 = ssub.s32 %s10, 1
      // Predicated region
      $region13: #{d_upproj_block.15} parent=11 // pred_check
        %p163 = pneg %p71
      $region14: #{d_upproj_block.15} parent=11 // pred_check_branch
        %165 = sbr.rel (%p163) target = $region16
      $region15: #{d_upproj_block.15} parent=11 // pred_region
        _
      $region16: #{d_upproj_block.15} parent=11 // pred_fallthru
        _
      // Predicated region
      $region17: #{d_upproj_block.15} parent=11 // pred_check
        %p166 = pneg %p92
      $region18: #{d_upproj_block.15} parent=11 // pred_check_branch
        %168 = sbr.rel (%p166) target = $region20
      $region19: #{d_upproj_block.15} parent=11 // pred_region
        _
      $region20: #{d_upproj_block.15} parent=11 // pred_fallthru
        _
    $region12: #{d_upproj_block.15} parent=5 // pred_fallthru
      _
    %p169 = scmp.lt.s32.totalorder %s10, 2
    // Predicated region
    $region21: #{d_upproj_block.15} parent=5 // pred_check
      %p170 = pneg %p169
    $region22: #{d_upproj_block.15} parent=5 // pred_check_branch
      %172 = sbr.rel (%p170) target = $region24
    $region23: #{d_upproj_block.15} parent=5 // pred_region
      // Predicated region
      $region25: #{d_upproj_block.15} parent=23 // pred_check
        %p173 = pneg %p44
      $region26: #{d_upproj_block.15} parent=23 // pred_check_branch
        %175 = sbr.rel (%p173) target = $region28
      $region27: #{d_upproj_block.15} parent=23 // pred_region
        %p176 = scmp.lt.s32.totalorder %s17, 1
        %s177 = scalar_select %p176, %s17, 1
        %p178 = scmp.lt.s32.totalorder %s18, 0
        %s179 = scalar_select %p178, %s18, 0
        %s180 = smul.addr %s177, 16
        %s181 = sadd.s32 %s179, %s180
        %s182 = smul.addr %s181, 8
        %s183 = scalar_lea.vmem %s0, %s182
      $region28: #{d_upproj_block.15} parent=23 // pred_fallthru
        _
      // Predicated region
      $region29: #{d_upproj_block.15} parent=23 // pred_check
        %p184 = pneg %p114
      $region30: #{d_upproj_block.15} parent=23 // pred_check_branch
        %186 = sbr.rel (%p184) target = $region32
      $region31: #{d_upproj_block.15} parent=23 // pred_region
        %p187 = scmp.lt.s32.totalorder %s17, 1
        %s188 = scalar_select %p187, %s17, 1
        %p189 = scmp.lt.s32.totalorder %s18, 0
        %s190 = scalar_select %p189, %s18, 0
        %s191 = sadd.s32 %s190, %s188
        %s192 = smul.addr %s191, 8
        %s193 = scalar_lea.vmem %s3, %s192
      $region32: #{d_upproj_block.15} parent=23 // pred_fallthru
        _
    $region24: #{d_upproj_block.15} parent=5 // pred_fallthru
      _
    %p194 = scmp.le.s32.totalorder 1, %s10
    %p195 = scmp.lt.s32.totalorder %s10, 3
    %p196 = pnand %p194, %p195
    %p197 = pneg %p196
    // Predicated region
    $region33: #{d_upproj_block.15} parent=5 // pred_check
      _
    $region34: #{d_upproj_block.15} parent=5 // pred_check_branch
      %199 = sbr.rel (%p196) target = $region36
    $region35: #{d_upproj_block.15} parent=5 // pred_region
      %s200 = ssub.s32 %s10, 1
      %p201 = scmp.lt.s32.totalorder %s19, 1
      %s202 = scalar_select %p201, %s19, 1
      %p203 = scmp.lt.s32.totalorder %s20, 0
      %s204 = scalar_select %p203, %s20, 0
      %s205 = smul.addr %s202, 16
      %s206 = sadd.s32 %s204, %s205
      %s207 = smul.addr %s206, 8
      %s208 = scalar_lea.vmem %s0, %s207
      %p209 = pneg %p50
      %p210 = pneg %p47
      %p211 = pneg %p71
      %p212 = pneg %p68
      %p213 = pneg %p92
      %p214 = pneg %p89
      %p215 = scmp.lt.s32.totalorder %s19, 1
      %s216 = scalar_select %p215, %s19, 1
      %p217 = scmp.lt.s32.totalorder %s20, 0
      %s218 = scalar_select %p217, %s20, 0
      %s219 = sadd.s32 %s218, %s216
      %s220 = smul.addr %s219, 8
      %s221 = scalar_lea.vmem %s3, %s220
      %p222 = pneg %p120
      %p223 = pneg %p117
      %p224 = pneg %p148
      %p225 = pneg %p145
      %p226 = scmp.lt.s32.totalorder %s19, 1
      %s227 = scalar_select %p226, %s19, 1
      %p228 = scmp.lt.s32.totalorder %s20, 0
      %s229 = scalar_select %p228, %s20, 0
      %s230 = sadd.s32 %s229, %s227
      %s231 = smul.addr %s230, 8
      %s232 = scalar_lea.vmem %s4, %s231
      %p233 = scmp.lt.s32.totalorder %s19, 1
      %s234 = scalar_select %p233, %s19, 1
      %p235 = scmp.lt.s32.totalorder %s20, 0
      %s236 = scalar_select %p235, %s20, 0
      %s237 = smul.addr %s234, 16
      %s238 = sadd.s32 %s236, %s237
      %s239 = smul.addr %s238, 8
      %s240 = scalar_lea.vmem %s0, %s239
      %p241 = scmp.lt.s32.totalorder %s19, 1
      %s242 = scalar_select %p241, %s19, 1
      %p243 = scmp.lt.s32.totalorder %s20, 0
      %s244 = scalar_select %p243, %s20, 0
      %s245 = sadd.s32 %s244, %s242
      %s246 = smul.addr %s245, 8
      %s247 = scalar_lea.vmem %s3, %s246
      %p248 = scmp.lt.s32.totalorder %s19, 1
      %s249 = scalar_select %p248, %s19, 1
      %p250 = scmp.lt.s32.totalorder %s20, 0
      %s251 = scalar_select %p250, %s20, 0
      %s252 = sadd.s32 %s251, %s249
      %s253 = smul.addr %s252, 8
      %s254 = scalar_lea.vmem %s4, %s253
      %v255 = vld [vmem:[%s1] sm:$0xff]
      %v256 = vld [vmem:[%s240] sm:$0xff]
      %v257 = vld [vmem:[%s240 + $0x8] sm:$0xff]
      %v258 = vld [vmem:[%s240 + $0x10] sm:$0xff]
      %v259 = vld [vmem:[%s240 + $0x18] sm:$0xff]
      %v260 = vld [vmem:[%s240 + $0x20] sm:$0xff]
      %v261 = vld [vmem:[%s240 + $0x28] sm:$0xff]
      %v262 = vld [vmem:[%s240 + $0x30] sm:$0xff]
      %v263 = vld [vmem:[%s240 + $0x38] sm:$0xff]
      %v264 = vld [vmem:[%s240 + $0x40] sm:$0xff]
      %v265 = vld [vmem:[%s240 + $0x48] sm:$0xff]
      %v266 = vld [vmem:[%s240 + $0x50] sm:$0xff]
      %v267 = vld [vmem:[%s240 + $0x58] sm:$0xff]
      %v268 = vld [vmem:[%s240 + $0x60] sm:$0xff]
      %v269 = vld [vmem:[%s240 + $0x68] sm:$0xff]
      %v270 = vld [vmem:[%s240 + $0x70] sm:$0xff]
      %v271 = vld [vmem:[%s240 + $0x78] sm:$0xff]
      %v272 = vld [vmem:[%s2] sm:$0xff]
      %274 = vset.pattern.permute.xlu0 0
      %275 = vperm.xlu0 %274, %v272
      %v276 = vpop.permute.xlu0 %275
      %278 = vmatprep.subr.mxu0 0.0
      %v279 = vand.u32 %v256, 4294901760
      %280 = vmatpush1.msra.mxu0 %v279
      %281 = vmatprep.subr.mxu0 0.0
      %v282 = vand.u32 %v257, 4294901760
      %283 = vmatpush1.msra.mxu0 %v282
      %284 = vmatprep.subr.mxu0 0.0
      %v285 = vand.u32 %v258, 4294901760
      %286 = vmatpush1.msra.mxu0 %v285
      %287 = vmatprep.subr.mxu0 0.0
      %v288 = vand.u32 %v259, 4294901760
      %289 = vmatpush1.msra.mxu0 %v288
      %290 = vmatprep.subr.mxu0 0.0
      %v291 = vand.u32 %v260, 4294901760
      %292 = vmatpush1.msra.mxu0 %v291
      %293 = vmatprep.subr.mxu0 0.0
      %v294 = vand.u32 %v261, 4294901760
      %295 = vmatpush1.msra.mxu0 %v294
      %296 = vmatprep.subr.mxu0 0.0
      %v297 = vand.u32 %v262, 4294901760
      %298 = vmatpush1.msra.mxu0 %v297
      %299 = vmatprep.subr.mxu0 0.0
      %v300 = vand.u32 %v263, 4294901760
      %301 = vmatpush1.msra.mxu0 %v300
      %302 = vmatprep.subr.mxu0 0.0
      %v303 = vand.u32 %v264, 4294901760
      %304 = vmatpush1.msra.mxu0 %v303
      %305 = vmatprep.subr.mxu0 0.0
      %v306 = vand.u32 %v265, 4294901760
      %307 = vmatpush1.msra.mxu0 %v306
      %308 = vmatprep.subr.mxu0 0.0
      %v309 = vand.u32 %v266, 4294901760
      %310 = vmatpush1.msra.mxu0 %v309
      %311 = vmatprep.subr.mxu0 0.0
      %v312 = vand.u32 %v267, 4294901760
      %313 = vmatpush1.msra.mxu0 %v312
      %314 = vmatprep.subr.mxu0 0.0
      %v315 = vand.u32 %v268, 4294901760
      %316 = vmatpush1.msra.mxu0 %v315
      %317 = vmatprep.subr.mxu0 0.0
      %v318 = vand.u32 %v269, 4294901760
      %319 = vmatpush1.msra.mxu0 %v318
      %320 = vmatprep.subr.mxu0 0.0
      %v321 = vand.u32 %v270, 4294901760
      %322 = vmatpush1.msra.mxu0 %v321
      %323 = vmatprep.subr.mxu0 0.0
      %v324 = vand.u32 %v271, 4294901760
      %325 = vmatpush1.msra.mxu0 %v324
      %326 = vmatprep.subr.mxu0 0.0
      %327 = vmatpush1.msra.mxu0 0.0
      %328 = vmatprep.subr.mxu0 0.0
      %329 = vmatpush1.msra.mxu0 0.0
      %330 = vmatprep.subr.mxu0 0.0
      %331 = vmatpush1.msra.mxu0 0.0
      %332 = vmatprep.subr.mxu0 0.0
      %333 = vmatpush1.msra.mxu0 0.0
      %334 = vmatprep.subr.mxu0 0.0
      %335 = vmatpush1.msra.mxu0 0.0
      %336 = vmatprep.subr.mxu0 0.0
      %337 = vmatpush1.msra.mxu0 0.0
      %338 = vmatprep.subr.mxu0 0.0
      %339 = vmatpush1.msra.mxu0 0.0
      %340 = vmatprep.subr.mxu0 0.0
      %341 = vmatpush1.msra.mxu0 0.0
      %342 = vmatprep.subr.mxu0 0.0
      %343 = vmatpush1.msra.mxu0 0.0
      %344 = vmatprep.subr.mxu0 0.0
      %345 = vmatpush1.msra.mxu0 0.0
      %346 = vmatprep.subr.mxu0 0.0
      %347 = vmatpush1.msra.mxu0 0.0
      %348 = vmatprep.subr.mxu0 0.0
      %349 = vmatpush1.msra.mxu0 0.0
      %350 = vmatprep.subr.mxu0 0.0
      %351 = vmatpush1.msra.mxu0 0.0
      %352 = vmatprep.subr.mxu0 0.0
      %353 = vmatpush1.msra.mxu0 0.0
      %354 = vmatprep.subr.mxu0 0.0
      %355 = vmatpush1.msra.mxu0 0.0
      %356 = vmatprep.subr.mxu0 0.0
      %357 = vmatpush1.msra.mxu0 0.0
      %358 = vmatprep.mubr.f32.mxu0 0.0
      %v359 = vand.u32 %v255, 4294901760
      %v360 = vsub.f32 %v255, %v359
      %v361 = vand.u32 %v360, 4294901760
      %v362 = vsub.f32 %v360, %v361
      %v363 = vand.u32 %v362, 4294901760
      %364 = vmatmul.mubr.f32.gmra.mrb[0].mxu0 %v363
      %v365 = vpop.f32.mrb[0].mxu0
      %v366 = vadd.f32 %v276, %v365
      %v367 = vpop.f32.mrb[0].mxu0
      %368 = vdwg.mxu0
      %369 = vmatprep.subr.mxu0 0.0
      %v370 = vand.u32 %v256, 4294901760
      %v371 = vsub.f32 %v256, %v370
      %v372 = vand.u32 %v371, 4294901760
      %v373 = vsub.f32 %v371, %v372
      %v374 = vand.u32 %v373, 4294901760
      %375 = vmatpush1.msra.mxu0 %v374
      %376 = vmatprep.subr.mxu0 0.0
      %v377 = vand.u32 %v257, 4294901760
      %v378 = vsub.f32 %v257, %v377
      %v379 = vand.u32 %v378, 4294901760
      %v380 = vsub.f32 %v378, %v379
      %v381 = vand.u32 %v380, 4294901760
      %382 = vmatpush1.msra.mxu0 %v381
      %383 = vmatprep.subr.mxu0 0.0
      %v384 = vand.u32 %v258, 4294901760
      %v385 = vsub.f32 %v258, %v384
      %v386 = vand.u32 %v385, 4294901760
      %v387 = vsub.f32 %v385, %v386
      %v388 = vand.u32 %v387, 4294901760
      %389 = vmatpush1.msra.mxu0 %v388
      %390 = vmatprep.subr.mxu0 0.0
      %v391 = vand.u32 %v259, 4294901760
      %v392 = vsub.f32 %v259, %v391
      %v393 = vand.u32 %v392, 4294901760
      %v394 = vsub.f32 %v392, %v393
      %v395 = vand.u32 %v394, 4294901760
      %396 = vmatpush1.msra.mxu0 %v395
      %397 = vmatprep.subr.mxu0 0.0
      %v398 = vand.u32 %v260, 4294901760
      %v399 = vsub.f32 %v260, %v398
      %v400 = vand.u32 %v399, 4294901760
      %v401 = vsub.f32 %v399, %v400
      %v402 = vand.u32 %v401, 4294901760
      %403 = vmatpush1.msra.mxu0 %v402
      %404 = vmatprep.subr.mxu0 0.0
      %v405 = vand.u32 %v261, 4294901760
      %v406 = vsub.f32 %v261, %v405
      %v407 = vand.u32 %v406, 4294901760
      %v408 = vsub.f32 %v406, %v407
      %v409 = vand.u32 %v408, 4294901760
      %410 = vmatpush1.msra.mxu0 %v409
      %411 = vmatprep.subr.mxu0 0.0
      %v412 = vand.u32 %v262, 4294901760
      %v413 = vsub.f32 %v262, %v412
      %v414 = vand.u32 %v413, 4294901760
      %v415 = vsub.f32 %v413, %v414
      %v416 = vand.u32 %v415, 4294901760
      %417 = vmatpush1.msra.mxu0 %v416
      %418 = vmatprep.subr.mxu0 0.0
      %v419 = vand.u32 %v263, 4294901760
      %v420 = vsub.f32 %v263, %v419
      %v421 = vand.u32 %v420, 4294901760
      %v422 = vsub.f32 %v420, %v421
      %v423 = vand.u32 %v422, 4294901760
      %424 = vmatpush1.msra.mxu0 %v423
      %425 = vmatprep.subr.mxu0 0.0
      %v426 = vand.u32 %v264, 4294901760
      %v427 = vsub.f32 %v264, %v426
      %v428 = vand.u32 %v427, 4294901760
      %v429 = vsub.f32 %v427, %v428
      %v430 = vand.u32 %v429, 4294901760
      %431 = vmatpush1.msra.mxu0 %v430
      %432 = vmatprep.subr.mxu0 0.0
      %v433 = vand.u32 %v265, 4294901760
      %v434 = vsub.f32 %v265, %v433
      %v435 = vand.u32 %v434, 4294901760
      %v436 = vsub.f32 %v434, %v435
      %v437 = vand.u32 %v436, 4294901760
      %438 = vmatpush1.msra.mxu0 %v437
      %439 = vmatprep.subr.mxu0 0.0
      %v440 = vand.u32 %v266, 4294901760
      %v441 = vsub.f32 %v266, %v440
      %v442 = vand.u32 %v441, 4294901760
      %v443 = vsub.f32 %v441, %v442
      %v444 = vand.u32 %v443, 4294901760
      %445 = vmatpush1.msra.mxu0 %v444
      %446 = vmatprep.subr.mxu0 0.0
      %v447 = vand.u32 %v267, 4294901760
      %v448 = vsub.f32 %v267, %v447
      %v449 = vand.u32 %v448, 4294901760
      %v450 = vsub.f32 %v448, %v449
      %v451 = vand.u32 %v450, 4294901760
      %452 = vmatpush1.msra.mxu0 %v451
      %453 = vmatprep.subr.mxu0 0.0
      %v454 = vand.u32 %v268, 4294901760
      %v455 = vsub.f32 %v268, %v454
      %v456 = vand.u32 %v455, 4294901760
      %v457 = vsub.f32 %v455, %v456
      %v458 = vand.u32 %v457, 4294901760
      %459 = vmatpush1.msra.mxu0 %v458
      %460 = vmatprep.subr.mxu0 0.0
      %v461 = vand.u32 %v269, 4294901760
      %v462 = vsub.f32 %v269, %v461
      %v463 = vand.u32 %v462, 4294901760
      %v464 = vsub.f32 %v462, %v463
      %v465 = vand.u32 %v464, 4294901760
      %466 = vmatpush1.msra.mxu0 %v465
      %467 = vmatprep.subr.mxu0 0.0
      %v468 = vand.u32 %v270, 4294901760
      %v469 = vsub.f32 %v270, %v468
      %v470 = vand.u32 %v469, 4294901760
      %v471 = vsub.f32 %v469, %v470
      %v472 = vand.u32 %v471, 4294901760
      %473 = vmatpush1.msra.mxu0 %v472
      %474 = vmatprep.subr.mxu0 0.0
      %v475 = vand.u32 %v271, 4294901760
      %v476 = vsub.f32 %v271, %v475
      %v477 = vand.u32 %v476, 4294901760
      %v478 = vsub.f32 %v476, %v477
      %v479 = vand.u32 %v478, 4294901760
      %480 = vmatpush1.msra.mxu0 %v479
      %481 = vmatprep.subr.mxu0 0.0
      %482 = vmatpush1.msra.mxu0 0.0
      %483 = vmatprep.subr.mxu0 0.0
      %484 = vmatpush1.msra.mxu0 0.0
      %485 = vmatprep.subr.mxu0 0.0
      %486 = vmatpush1.msra.mxu0 0.0
      %487 = vmatprep.subr.mxu0 0.0
      %488 = vmatpush1.msra.mxu0 0.0
      %489 = vmatprep.subr.mxu0 0.0
      %490 = vmatpush1.msra.mxu0 0.0
      %491 = vmatprep.subr.mxu0 0.0
      %492 = vmatpush1.msra.mxu0 0.0
      %493 = vmatprep.subr.mxu0 0.0
      %494 = vmatpush1.msra.mxu0 0.0
      %495 = vmatprep.subr.mxu0 0.0
      %496 = vmatpush1.msra.mxu0 0.0
      %497 = vmatprep.subr.mxu0 0.0
      %498 = vmatpush1.msra.mxu0 0.0
      %499 = vmatprep.subr.mxu0 0.0
      %500 = vmatpush1.msra.mxu0 0.0
      %501 = vmatprep.subr.mxu0 0.0
      %502 = vmatpush1.msra.mxu0 0.0
      %503 = vmatprep.subr.mxu0 0.0
      %504 = vmatpush1.msra.mxu0 0.0
      %505 = vmatprep.subr.mxu0 0.0
      %506 = vmatpush1.msra.mxu0 0.0
      %507 = vmatprep.subr.mxu0 0.0
      %508 = vmatpush1.msra.mxu0 0.0
      %509 = vmatprep.subr.mxu0 0.0
      %510 = vmatpush1.msra.mxu0 0.0
      %511 = vmatprep.subr.mxu0 0.0
      %512 = vmatpush1.msra.mxu0 0.0
      %513 = vmatprep.mubr.f32.mxu0 0.0
      %v514 = vand.u32 %v255, 4294901760
      %515 = vmatmul.mubr.f32.gmra.mrb[0].mxu0 %v514
      %v516 = vpop.f32.mrb[0].mxu0
      %v517 = vadd.f32 %v366, %v516
      %v518 = vpop.f32.mrb[0].mxu0
      %519 = vdwg.mxu0
      %520 = vmatprep.subr.mxu0 0.0
      %v521 = vand.u32 %v256, 4294901760
      %v522 = vsub.f32 %v256, %v521
      %523 = vmatpush1.msra.mxu0 %v522
      %524 = vmatprep.subr.mxu0 0.0
      %v525 = vand.u32 %v257, 4294901760
      %v526 = vsub.f32 %v257, %v525
      %527 = vmatpush1.msra.mxu0 %v526
      %528 = vmatprep.subr.mxu0 0.0
      %v529 = vand.u32 %v258, 4294901760
      %v530 = vsub.f32 %v258, %v529
      %531 = vmatpush1.msra.mxu0 %v530
      %532 = vmatprep.subr.mxu0 0.0
      %v533 = vand.u32 %v259, 4294901760
      %v534 = vsub.f32 %v259, %v533
      %535 = vmatpush1.msra.mxu0 %v534
      %536 = vmatprep.subr.mxu0 0.0
      %v537 = vand.u32 %v260, 4294901760
      %v538 = vsub.f32 %v260, %v537
      %539 = vmatpush1.msra.mxu0 %v538
      %540 = vmatprep.subr.mxu0 0.0
      %v541 = vand.u32 %v261, 4294901760
      %v542 = vsub.f32 %v261, %v541
      %543 = vmatpush1.msra.mxu0 %v542
      %544 = vmatprep.subr.mxu0 0.0
      %v545 = vand.u32 %v262, 4294901760
      %v546 = vsub.f32 %v262, %v545
      %547 = vmatpush1.msra.mxu0 %v546
      %548 = vmatprep.subr.mxu0 0.0
      %v549 = vand.u32 %v263, 4294901760
      %v550 = vsub.f32 %v263, %v549
      %551 = vmatpush1.msra.mxu0 %v550
      %552 = vmatprep.subr.mxu0 0.0
      %v553 = vand.u32 %v264, 4294901760
      %v554 = vsub.f32 %v264, %v553
      %555 = vmatpush1.msra.mxu0 %v554
      %556 = vmatprep.subr.mxu0 0.0
      %v557 = vand.u32 %v265, 4294901760
      %v558 = vsub.f32 %v265, %v557
      %559 = vmatpush1.msra.mxu0 %v558
      %560 = vmatprep.subr.mxu0 0.0
      %v561 = vand.u32 %v266, 4294901760
      %v562 = vsub.f32 %v266, %v561
      %563 = vmatpush1.msra.mxu0 %v562
      %564 = vmatprep.subr.mxu0 0.0
      %v565 = vand.u32 %v267, 4294901760
      %v566 = vsub.f32 %v267, %v565
      %567 = vmatpush1.msra.mxu0 %v566
      %568 = vmatprep.subr.mxu0 0.0
      %v569 = vand.u32 %v268, 4294901760
      %v570 = vsub.f32 %v268, %v569
      %571 = vmatpush1.msra.mxu0 %v570
      %572 = vmatprep.subr.mxu0 0.0
      %v573 = vand.u32 %v269, 4294901760
      %v574 = vsub.f32 %v269, %v573
      %575 = vmatpush1.msra.mxu0 %v574
      %576 = vmatprep.subr.mxu0 0.0
      %v577 = vand.u32 %v270, 4294901760
      %v578 = vsub.f32 %v270, %v577
      %579 = vmatpush1.msra.mxu0 %v578
      %580 = vmatprep.subr.mxu0 0.0
      %v581 = vand.u32 %v271, 4294901760
      %v582 = vsub.f32 %v271, %v581
      %583 = vmatpush1.msra.mxu0 %v582
      %584 = vmatprep.subr.mxu0 0.0
      %585 = vmatpush1.msra.mxu0 0.0
      %586 = vmatprep.subr.mxu0 0.0
      %587 = vmatpush1.msra.mxu0 0.0
      %588 = vmatprep.subr.mxu0 0.0
      %589 = vmatpush1.msra.mxu0 0.0
      %590 = vmatprep.subr.mxu0 0.0
      %591 = vmatpush1.msra.mxu0 0.0
      %592 = vmatprep.subr.mxu0 0.0
      %593 = vmatpush1.msra.mxu0 0.0
      %594 = vmatprep.subr.mxu0 0.0
      %595 = vmatpush1.msra.mxu0 0.0
      %596 = vmatprep.subr.mxu0 0.0
      %597 = vmatpush1.msra.mxu0 0.0
      %598 = vmatprep.subr.mxu0 0.0
      %599 = vmatpush1.msra.mxu0 0.0
      %600 = vmatprep.subr.mxu0 0.0
      %601 = vmatpush1.msra.mxu0 0.0
      %602 = vmatprep.subr.mxu0 0.0
      %603 = vmatpush1.msra.mxu0 0.0
      %604 = vmatprep.subr.mxu0 0.0
      %605 = vmatpush1.msra.mxu0 0.0
      %606 = vmatprep.subr.mxu0 0.0
      %607 = vmatpush1.msra.mxu0 0.0
      %608 = vmatprep.subr.mxu0 0.0
      %609 = vmatpush1.msra.mxu0 0.0
      %610 = vmatprep.subr.mxu0 0.0
      %611 = vmatpush1.msra.mxu0 0.0
      %612 = vmatprep.subr.mxu0 0.0
      %613 = vmatpush1.msra.mxu0 0.0
      %614 = vmatprep.subr.mxu0 0.0
      %615 = vmatpush1.msra.mxu0 0.0
      %616 = vmatprep.mubr.f32.mxu0 0.0
      %v617 = vand.u32 %v255, 4294901760
      %v618 = vsub.f32 %v255, %v617
      %619 = vmatmul.mubr.f32.gmra.mrb[0].mxu0 %v618
      %v620 = vpop.f32.mrb[0].mxu0
      %v621 = vadd.f32 %v517, %v620
      %v622 = vpop.f32.mrb[0].mxu0
      %623 = vdwg.mxu0
      %624 = vmatprep.subr.mxu0 0.0
      %v625 = vand.u32 %v256, 4294901760
      %626 = vmatpush1.msra.mxu0 %v625
      %627 = vmatprep.subr.mxu0 0.0
      %v628 = vand.u32 %v257, 4294901760
      %629 = vmatpush1.msra.mxu0 %v628
      %630 = vmatprep.subr.mxu0 0.0
      %v631 = vand.u32 %v258, 4294901760
      %632 = vmatpush1.msra.mxu0 %v631
      %633 = vmatprep.subr.mxu0 0.0
      %v634 = vand.u32 %v259, 4294901760
      %635 = vmatpush1.msra.mxu0 %v634
      %636 = vmatprep.subr.mxu0 0.0
      %v637 = vand.u32 %v260, 4294901760
      %638 = vmatpush1.msra.mxu0 %v637
      %639 = vmatprep.subr.mxu0 0.0
      %v640 = vand.u32 %v261, 4294901760
      %641 = vmatpush1.msra.mxu0 %v640
      %642 = vmatprep.subr.mxu0 0.0
      %v643 = vand.u32 %v262, 4294901760
      %644 = vmatpush1.msra.mxu0 %v643
      %645 = vmatprep.subr.mxu0 0.0
      %v646 = vand.u32 %v263, 4294901760
      %647 = vmatpush1.msra.mxu0 %v646
      %648 = vmatprep.subr.mxu0 0.0
      %v649 = vand.u32 %v264, 4294901760
      %650 = vmatpush1.msra.mxu0 %v649
      %651 = vmatprep.subr.mxu0 0.0
      %v652 = vand.u32 %v265, 4294901760
      %653 = vmatpush1.msra.mxu0 %v652
      %654 = vmatprep.subr.mxu0 0.0
      %v655 = vand.u32 %v266, 4294901760
      %656 = vmatpush1.msra.mxu0 %v655
      %657 = vmatprep.subr.mxu0 0.0
      %v658 = vand.u32 %v267, 4294901760
      %659 = vmatpush1.msra.mxu0 %v658
      %660 = vmatprep.subr.mxu0 0.0
      %v661 = vand.u32 %v268, 4294901760
      %662 = vmatpush1.msra.mxu0 %v661
      %663 = vmatprep.subr.mxu0 0.0
      %v664 = vand.u32 %v269, 4294901760
      %665 = vmatpush1.msra.mxu0 %v664
      %666 = vmatprep.subr.mxu0 0.0
      %v667 = vand.u32 %v270, 4294901760
      %668 = vmatpush1.msra.mxu0 %v667
      %669 = vmatprep.subr.mxu0 0.0
      %v670 = vand.u32 %v271, 4294901760
      %671 = vmatpush1.msra.mxu0 %v670
      %672 = vmatprep.subr.mxu0 0.0
      %673 = vmatpush1.msra.mxu0 0.0
      %674 = vmatprep.subr.mxu0 0.0
      %675 = vmatpush1.msra.mxu0 0.0
      %676 = vmatprep.subr.mxu0 0.0
      %677 = vmatpush1.msra.mxu0 0.0
      %678 = vmatprep.subr.mxu0 0.0
      %679 = vmatpush1.msra.mxu0 0.0
      %680 = vmatprep.subr.mxu0 0.0
      %681 = vmatpush1.msra.mxu0 0.0
      %682 = vmatprep.subr.mxu0 0.0
      %683 = vmatpush1.msra.mxu0 0.0
      %684 = vmatprep.subr.mxu0 0.0
      %685 = vmatpush1.msra.mxu0 0.0
      %686 = vmatprep.subr.mxu0 0.0
      %687 = vmatpush1.msra.mxu0 0.0
      %688 = vmatprep.subr.mxu0 0.0
      %689 = vmatpush1.msra.mxu0 0.0
      %690 = vmatprep.subr.mxu0 0.0
      %691 = vmatpush1.msra.mxu0 0.0
      %692 = vmatprep.subr.mxu0 0.0
      %693 = vmatpush1.msra.mxu0 0.0
      %694 = vmatprep.subr.mxu0 0.0
      %695 = vmatpush1.msra.mxu0 0.0
      %696 = vmatprep.subr.mxu0 0.0
      %697 = vmatpush1.msra.mxu0 0.0
      %698 = vmatprep.subr.mxu0 0.0
      %699 = vmatpush1.msra.mxu0 0.0
      %700 = vmatprep.subr.mxu0 0.0
      %701 = vmatpush1.msra.mxu0 0.0
      %702 = vmatprep.subr.mxu0 0.0
      %703 = vmatpush1.msra.mxu0 0.0
      %704 = vmatprep.mubr.f32.mxu0 0.0
      %v705 = vand.u32 %v255, 4294901760
      %v706 = vsub.f32 %v255, %v705
      %v707 = vand.u32 %v706, 4294901760
      %708 = vmatmul.mubr.f32.gmra.mrb[0].mxu0 %v707
      %v709 = vpop.f32.mrb[0].mxu0
      %v710 = vadd.f32 %v621, %v709
      %v711 = vpop.f32.mrb[0].mxu0
      %712 = vdwg.mxu0
      %713 = vmatprep.subr.mxu0 0.0
      %v714 = vand.u32 %v256, 4294901760
      %v715 = vsub.f32 %v256, %v714
      %v716 = vand.u32 %v715, 4294901760
      %717 = vmatpush1.msra.mxu0 %v716
      %718 = vmatprep.subr.mxu0 0.0
      %v719 = vand.u32 %v257, 4294901760
      %v720 = vsub.f32 %v257, %v719
      %v721 = vand.u32 %v720, 4294901760
      %722 = vmatpush1.msra.mxu0 %v721
      %723 = vmatprep.subr.mxu0 0.0
      %v724 = vand.u32 %v258, 4294901760
      %v725 = vsub.f32 %v258, %v724
      %v726 = vand.u32 %v725, 4294901760
      %727 = vmatpush1.msra.mxu0 %v726
      %728 = vmatprep.subr.mxu0 0.0
      %v729 = vand.u32 %v259, 4294901760
      %v730 = vsub.f32 %v259, %v729
      %v731 = vand.u32 %v730, 4294901760
      %732 = vmatpush1.msra.mxu0 %v731
      %733 = vmatprep.subr.mxu0 0.0
      %v734 = vand.u32 %v260, 4294901760
      %v735 = vsub.f32 %v260, %v734
      %v736 = vand.u32 %v735, 4294901760
      %737 = vmatpush1.msra.mxu0 %v736
      %738 = vmatprep.subr.mxu0 0.0
      %v739 = vand.u32 %v261, 4294901760
      %v740 = vsub.f32 %v261, %v739
      %v741 = vand.u32 %v740, 4294901760
      %742 = vmatpush1.msra.mxu0 %v741
      %743 = vmatprep.subr.mxu0 0.0
      %v744 = vand.u32 %v262, 4294901760
      %v745 = vsub.f32 %v262, %v744
      %v746 = vand.u32 %v745, 4294901760
      %747 = vmatpush1.msra.mxu0 %v746
      %748 = vmatprep.subr.mxu0 0.0
      %v749 = vand.u32 %v263, 4294901760
      %v750 = vsub.f32 %v263, %v749
      %v751 = vand.u32 %v750, 4294901760
      %752 = vmatpush1.msra.mxu0 %v751
      %753 = vmatprep.subr.mxu0 0.0
      %v754 = vand.u32 %v264, 4294901760
      %v755 = vsub.f32 %v264, %v754
      %v756 = vand.u32 %v755, 4294901760
      %757 = vmatpush1.msra.mxu0 %v756
      %758 = vmatprep.subr.mxu0 0.0
      %v759 = vand.u32 %v265, 4294901760
      %v760 = vsub.f32 %v265, %v759
      %v761 = vand.u32 %v760, 4294901760
      %762 = vmatpush1.msra.mxu0 %v761
      %763 = vmatprep.subr.mxu0 0.0
      %v764 = vand.u32 %v266, 4294901760
      %v765 = vsub.f32 %v266, %v764
      %v766 = vand.u32 %v765, 4294901760
      %767 = vmatpush1.msra.mxu0 %v766
      %768 = vmatprep.subr.mxu0 0.0
      %v769 = vand.u32 %v267, 4294901760
      %v770 = vsub.f32 %v267, %v769
      %v771 = vand.u32 %v770, 4294901760
      %772 = vmatpush1.msra.mxu0 %v771
      %773 = vmatprep.subr.mxu0 0.0
      %v774 = vand.u32 %v268, 4294901760
      %v775 = vsub.f32 %v268, %v774
      %v776 = vand.u32 %v775, 4294901760
      %777 = vmatpush1.msra.mxu0 %v776
      %778 = vmatprep.subr.mxu0 0.0
      %v779 = vand.u32 %v269, 4294901760
      %v780 = vsub.f32 %v269, %v779
      %v781 = vand.u32 %v780, 4294901760
      %782 = vmatpush1.msra.mxu0 %v781
      %783 = vmatprep.subr.mxu0 0.0
      %v784 = vand.u32 %v270, 4294901760
      %v785 = vsub.f32 %v270, %v784
      %v786 = vand.u32 %v785, 4294901760
      %787 = vmatpush1.msra.mxu0 %v786
      %788 = vmatprep.subr.mxu0 0.0
      %v789 = vand.u32 %v271, 4294901760
      %v790 = vsub.f32 %v271, %v789
      %v791 = vand.u32 %v790, 4294901760
      %792 = vmatpush1.msra.mxu0 %v791
      %793 = vmatprep.subr.mxu0 0.0
      %794 = vmatpush1.msra.mxu0 0.0
      %795 = vmatprep.subr.mxu0 0.0
      %796 = vmatpush1.msra.mxu0 0.0
      %797 = vmatprep.subr.mxu0 0.0
      %798 = vmatpush1.msra.mxu0 0.0
      %799 = vmatprep.subr.mxu0 0.0
      %800 = vmatpush1.msra.mxu0 0.0
      %801 = vmatprep.subr.mxu0 0.0
      %802 = vmatpush1.msra.mxu0 0.0
      %803 = vmatprep.subr.mxu0 0.0
      %804 = vmatpush1.msra.mxu0 0.0
      %805 = vmatprep.subr.mxu0 0.0
      %806 = vmatpush1.msra.mxu0 0.0
      %807 = vmatprep.subr.mxu0 0.0
      %808 = vmatpush1.msra.mxu0 0.0
      %809 = vmatprep.subr.mxu0 0.0
      %810 = vmatpush1.msra.mxu0 0.0
      %811 = vmatprep.subr.mxu0 0.0
      %812 = vmatpush1.msra.mxu0 0.0
      %813 = vmatprep.subr.mxu0 0.0
      %814 = vmatpush1.msra.mxu0 0.0
      %815 = vmatprep.subr.mxu0 0.0
      %816 = vmatpush1.msra.mxu0 0.0
      %817 = vmatprep.subr.mxu0 0.0
      %818 = vmatpush1.msra.mxu0 0.0
      %819 = vmatprep.subr.mxu0 0.0
      %820 = vmatpush1.msra.mxu0 0.0
      %821 = vmatprep.subr.mxu0 0.0
      %822 = vmatpush1.msra.mxu0 0.0
      %823 = vmatprep.subr.mxu0 0.0
      %824 = vmatpush1.msra.mxu0 0.0
      %825 = vmatprep.mubr.f32.mxu0 0.0
      %v826 = vand.u32 %v255, 4294901760
      %827 = vmatmul.mubr.f32.gmra.mrb[0].mxu0 %v826
      %v828 = vpop.f32.mrb[0].mxu0
      %v829 = vadd.f32 %v710, %v828
      %v830 = vpop.f32.mrb[0].mxu0
      %831 = vdwg.mxu0
      %832 = vmatprep.subr.mxu0 0.0
      %v833 = vand.u32 %v256, 4294901760
      %834 = vmatpush1.msra.mxu0 %v833
      %835 = vmatprep.subr.mxu0 0.0
      %v836 = vand.u32 %v257, 4294901760
      %837 = vmatpush1.msra.mxu0 %v836
      %838 = vmatprep.subr.mxu0 0.0
      %v839 = vand.u32 %v258, 4294901760
      %840 = vmatpush1.msra.mxu0 %v839
      %841 = vmatprep.subr.mxu0 0.0
      %v842 = vand.u32 %v259, 4294901760
      %843 = vmatpush1.msra.mxu0 %v842
      %844 = vmatprep.subr.mxu0 0.0
      %v845 = vand.u32 %v260, 4294901760
      %846 = vmatpush1.msra.mxu0 %v845
      %847 = vmatprep.subr.mxu0 0.0
      %v848 = vand.u32 %v261, 4294901760
      %849 = vmatpush1.msra.mxu0 %v848
      %850 = vmatprep.subr.mxu0 0.0
      %v851 = vand.u32 %v262, 4294901760
      %852 = vmatpush1.msra.mxu0 %v851
      %853 = vmatprep.subr.mxu0 0.0
      %v854 = vand.u32 %v263, 4294901760
      %855 = vmatpush1.msra.mxu0 %v854
      %856 = vmatprep.subr.mxu0 0.0
      %v857 = vand.u32 %v264, 4294901760
      %858 = vmatpush1.msra.mxu0 %v857
      %859 = vmatprep.subr.mxu0 0.0
      %v860 = vand.u32 %v265, 4294901760
      %861 = vmatpush1.msra.mxu0 %v860
      %862 = vmatprep.subr.mxu0 0.0
      %v863 = vand.u32 %v266, 4294901760
      %864 = vmatpush1.msra.mxu0 %v863
      %865 = vmatprep.subr.mxu0 0.0
      %v866 = vand.u32 %v267, 4294901760
      %867 = vmatpush1.msra.mxu0 %v866
      %868 = vmatprep.subr.mxu0 0.0
      %v869 = vand.u32 %v268, 4294901760
      %870 = vmatpush1.msra.mxu0 %v869
      %871 = vmatprep.subr.mxu0 0.0
      %v872 = vand.u32 %v269, 4294901760
      %873 = vmatpush1.msra.mxu0 %v872
      %874 = vmatprep.subr.mxu0 0.0
      %v875 = vand.u32 %v270, 4294901760
      %876 = vmatpush1.msra.mxu0 %v875
      %877 = vmatprep.subr.mxu0 0.0
      %v878 = vand.u32 %v271, 4294901760
      %879 = vmatpush1.msra.mxu0 %v878
      %880 = vmatprep.subr.mxu0 0.0
      %881 = vmatpush1.msra.mxu0 0.0
      %882 = vmatprep.subr.mxu0 0.0
      %883 = vmatpush1.msra.mxu0 0.0
      %884 = vmatprep.subr.mxu0 0.0
      %885 = vmatpush1.msra.mxu0 0.0
      %886 = vmatprep.subr.mxu0 0.0
      %887 = vmatpush1.msra.mxu0 0.0
      %888 = vmatprep.subr.mxu0 0.0
      %889 = vmatpush1.msra.mxu0 0.0
      %890 = vmatprep.subr.mxu0 0.0
      %891 = vmatpush1.msra.mxu0 0.0
      %892 = vmatprep.subr.mxu0 0.0
      %893 = vmatpush1.msra.mxu0 0.0
      %894 = vmatprep.subr.mxu0 0.0
      %895 = vmatpush1.msra.mxu0 0.0
      %896 = vmatprep.subr.mxu0 0.0
      %897 = vmatpush1.msra.mxu0 0.0
      %898 = vmatprep.subr.mxu0 0.0
      %899 = vmatpush1.msra.mxu0 0.0
      %900 = vmatprep.subr.mxu0 0.0
      %901 = vmatpush1.msra.mxu0 0.0
      %902 = vmatprep.subr.mxu0 0.0
      %903 = vmatpush1.msra.mxu0 0.0
      %904 = vmatprep.subr.mxu0 0.0
      %905 = vmatpush1.msra.mxu0 0.0
      %906 = vmatprep.subr.mxu0 0.0
      %907 = vmatpush1.msra.mxu0 0.0
      %908 = vmatprep.subr.mxu0 0.0
      %909 = vmatpush1.msra.mxu0 0.0
      %910 = vmatprep.subr.mxu0 0.0
      %911 = vmatpush1.msra.mxu0 0.0
      %912 = vmatprep.mubr.f32.mxu0 0.0
      %v913 = vand.u32 %v255, 4294901760
      %914 = vmatmul.mubr.f32.gmra.mrb[0].mxu0 %v913
      %v915 = vpop.f32.mrb[0].mxu0
      %v916 = vadd.f32 %v829, %v915
      %v917 = vpop.f32.mrb[0].mxu0
      %918 = vdwg.mxu0
      %vm919 = vcmp.ge.f32.partialorder %v916, 0.0
      %v920 = vmul.f32 %v916, 0.2
      %v921 = vsel %vm919, %v916, %v920
      %v922 = vld [vmem:[%s247] sm:$0xff]
      %v923 = vsub.f32 %v921, %v922
      %924 = vst [vmem:[%s254] sm:$0xff] %v923
      %p925 = scmp.lt.s32.totalorder %s19, 1
      %s926 = scalar_select %p925, %s19, 1
      %p927 = scmp.lt.s32.totalorder %s20, 0
      %s928 = scalar_select %p927, %s20, 0
      %s929 = sadd.s32 %s928, %s926
      %s930 = smul.addr %s929, 8
      %s931 = scalar_lea.vmem %s4, %s930
      // Predicated region
      $region37: #{d_upproj_block.15} parent=35 // pred_check
        %p932 = pneg %p145
      $region38: #{d_upproj_block.15} parent=35 // pred_check_branch
        %934 = sbr.rel (%p932) target = $region40
      $region39: #{d_upproj_block.15} parent=35 // pred_region
        _
      $region40: #{d_upproj_block.15} parent=35 // pred_fallthru
        _
    $region36: #{d_upproj_block.15} parent=5 // pred_fallthru
      _
    %p935 = scmp.le.s32.totalorder 2, %s10
    // Predicated region
    $region41: #{d_upproj_block.15} parent=5 // pred_check
      %p936 = pneg %p935
    $region42: #{d_upproj_block.15} parent=5 // pred_check_branch
      %938 = sbr.rel (%p936) target = $region44
    $region43: #{d_upproj_block.15} parent=5 // pred_region
      %s939 = ssub.s32 %s10, 2
      // Predicated region
      $region45: #{d_upproj_block.15} parent=43 // pred_check
        %p940 = pneg %p151
      $region46: #{d_upproj_block.15} parent=43 // pred_check_branch
        %942 = sbr.rel (%p940) target = $region48
      $region47: #{d_upproj_block.15} parent=43 // pred_region
        %p943 = scmp.lt.s32.totalorder %s21, 1
        %s944 = scalar_select %p943, %s21, 1
        %p945 = scmp.lt.s32.totalorder %s22, 0
        %s946 = scalar_select %p945, %s22, 0
        %s947 = sadd.s32 %s946, %s944
        %s948 = smul.addr %s947, 8
        %s949 = scalar_lea.vmem %s4, %s948
      $region48: #{d_upproj_block.15} parent=43 // pred_fallthru
        _
    $region44: #{d_upproj_block.15} parent=5 // pred_fallthru
      _
  $region6: #{d_upproj_block.15} parent=0 // loop_footer
    %s14 = sadd.s32 1, %s10
  $region7: #{d_upproj_block.15} parent=0 // loop_footer_branch
    %9 = sbr.rel target = $region3
  $region8: #{d_upproj_block.15} parent=0 // loop_exit
    _

// kernel: d_upproj_block.19
$region0: #{d_upproj_block.19}
  #allocation0 [shape = 'u32[]', space=smem, size = 0x4, offset = 0x4, fixed_abs, tag = 'smem constant byte address 0x4 - core index']
  #allocation1 [shape = 'u32[144,128]{1,0:T(1,128)}', space=vmem, size = 0x12000, scoped, tag = 'internal scratch']
  %s0 = inlined_call_operand.vmem [shape: f32[2,32,128], index: 0, kind: input, shape index: {}]
  %s1 = inlined_call_operand.vmem [shape: f32[8,32], index: 1, kind: input, shape index: {}]
  %s2 = inlined_call_operand.vmem [shape: f32[8,1], index: 2, kind: input, shape index: {}]
  %s3 = inlined_call_operand.vmem [shape: f32[2,8,128], index: 3, kind: input, shape index: {}]
  %s4 = inlined_call_operand.vmem [shape: f32[2,8,128], index: 4, kind: output, shape index: {}]
  %s5 = sld [smem:[#allocation0]]
  $region49: #{d_upproj_block.19} parent=0
    _
  %s7 = ssub.s32 1, %s5
  %s8 = scalar_select 0, %s7, %s5
  loop: start=0, step=1, limit=4
  $region2: #{d_upproj_block.19} parent=0 // loop_pre_header
    _
  $region3: #{d_upproj_block.19} parent=0 // loop_header
    %s10 = sphi 0, %s14
    %p11 = scmp.ge.s32.totalorder %s10, 4
    %s17 = sphi 0, %s29
    %s18 = sphi 0, %s25
    %s19 = sphi 0, %s17
    %s20 = sphi 0, %s18
    %s21 = sphi 0, %s19
    %s22 = sphi 0, %s20
    %s34 = sphi 0, %s36
    %s37 = sphi 0, %s34
    %s38 = sphi 0, %s37
    %s54 = sphi 0, %s38
    %s58 = sphi 0, %s58
    %s60 = sphi 0, %s58
    %s61 = sphi 0, %s60
    %s75 = sphi 0, %s61
    %s79 = sphi 0, %s79
    %s81 = sphi 0, %s79
    %s82 = sphi 0, %s81
    %s96 = sphi 0, %s82
    %s104 = sphi 0, %s106
    %s107 = sphi 0, %s104
    %s108 = sphi 0, %s107
    %s124 = sphi 0, %s108
    %s132 = sphi 0, %s134
    %s135 = sphi 0, %s132
    %s136 = sphi 0, %s135
    %s152 = sphi 0, %s136
  $region4: #{d_upproj_block.19} parent=0 // loop_header_branch
    %13 = sbr.rel (%p11) target = $region8
  $region5: #{d_upproj_block.19} parent=0 // loop_body
    %s15 = ssub.s32 %s10, 1
    %s16 = ssub.s32 %s10, 2
    %s23 = sadd.s32 1, %s18
    %p24 = scmp.ge.s32.totalorder %s23, 1
    %s25 = scalar_select %p24, 0, %s23
    %s26 = sadd.s32 1, %s17
    %s27 = scalar_select %p24, %s26, %s17
    %p28 = scmp.ge.s32.totalorder %s27, 2
    %s29 = scalar_select %p28, 0, %s27
    %s30 = ssub.s32 %s17, %s29
    %s31 = ssub.s32 %s18, %s25
    %s32 = sor.u32 %s30, %s31
    %p33 = scmp.eq.s32.totalorder %s32, 0
    %s35 = sadd.s32 %s34, 1
    %s36 = scalar_select %p33, %s34, %s35
    %p39 = pneg %p33
    %p40 = scmp.eq.s32.totalorder %s10, 1
    %p41 = por %p39, %p40
    %p42 = scmp.ne.s32.totalorder %s34, %s37
    %p43 = scmp.eq.s32.totalorder %s10, 0
    %p44 = por %p42, %p43
    %p45 = scmp.ne.s32.totalorder %s34, %s37
    %p46 = scmp.eq.s32.totalorder %s15, 1
    %p47 = por %p45, %p46
    %p48 = scmp.ne.s32.totalorder %s37, %s38
    %p49 = scmp.eq.s32.totalorder %s15, 0
    %p50 = por %p48, %p49
    %p51 = scmp.ne.s32.totalorder %s37, %s38
    %p52 = scmp.eq.s32.totalorder %s16, 1
    %p53 = por %p51, %p52
    %p55 = scmp.ne.s32.totalorder %s38, %s54
    %p56 = scmp.eq.s32.totalorder %s16, 0
    %p57 = por %p55, %p56
    %s59 = sadd.s32 %s58, 1
    %p62 = scmp.eq.s32.totalorder %s10, 1
    %p63 = scmp.ne.s32.totalorder %s58, %s60
    %p64 = scmp.eq.s32.totalorder %s10, 0
    %p65 = por %p63, %p64
    %p66 = scmp.ne.s32.totalorder %s58, %s60
    %p67 = scmp.eq.s32.totalorder %s15, 1
    %p68 = por %p66, %p67
    %p69 = scmp.ne.s32.totalorder %s60, %s61
    %p70 = scmp.eq.s32.totalorder %s15, 0
    %p71 = por %p69, %p70
    %p72 = scmp.ne.s32.totalorder %s60, %s61
    %p73 = scmp.eq.s32.totalorder %s16, 1
    %p74 = por %p72, %p73
    %p76 = scmp.ne.s32.totalorder %s61, %s75
    %p77 = scmp.eq.s32.totalorder %s16, 0
    %p78 = por %p76, %p77
    %s80 = sadd.s32 %s79, 1
    %p83 = scmp.eq.s32.totalorder %s10, 1
    %p84 = scmp.ne.s32.totalorder %s79, %s81
    %p85 = scmp.eq.s32.totalorder %s10, 0
    %p86 = por %p84, %p85
    %p87 = scmp.ne.s32.totalorder %s79, %s81
    %p88 = scmp.eq.s32.totalorder %s15, 1
    %p89 = por %p87, %p88
    %p90 = scmp.ne.s32.totalorder %s81, %s82
    %p91 = scmp.eq.s32.totalorder %s15, 0
    %p92 = por %p90, %p91
    %p93 = scmp.ne.s32.totalorder %s81, %s82
    %p94 = scmp.eq.s32.totalorder %s16, 1
    %p95 = por %p93, %p94
    %p97 = scmp.ne.s32.totalorder %s82, %s96
    %p98 = scmp.eq.s32.totalorder %s16, 0
    %p99 = por %p97, %p98
    %s100 = ssub.s32 %s17, %s29
    %s101 = ssub.s32 %s18, %s25
    %s102 = sor.u32 %s100, %s101
    %p103 = scmp.eq.s32.totalorder %s102, 0
    %s105 = sadd.s32 %s104, 1
    %s106 = scalar_select %p103, %s104, %s105
    %p109 = pneg %p103
    %p110 = scmp.eq.s32.totalorder %s10, 1
    %p111 = por %p109, %p110
    %p112 = scmp.ne.s32.totalorder %s104, %s107
    %p113 = scmp.eq.s32.totalorder %s10, 0
    %p114 = por %p112, %p113
    %p115 = scmp.ne.s32.totalorder %s104, %s107
    %p116 = scmp.eq.s32.totalorder %s15, 1
    %p117 = por %p115, %p116
    %p118 = scmp.ne.s32.totalorder %s107, %s108
    %p119 = scmp.eq.s32.totalorder %s15, 0
    %p120 = por %p118, %p119
    %p121 = scmp.ne.s32.totalorder %s107, %s108
    %p122 = scmp.eq.s32.totalorder %s16, 1
    %p123 = por %p121, %p122
    %p125 = scmp.ne.s32.totalorder %s108, %s124
    %p126 = scmp.eq.s32.totalorder %s16, 0
    %p127 = por %p125, %p126
    %s128 = ssub.s32 %s17, %s29
    %s129 = ssub.s32 %s18, %s25
    %s130 = sor.u32 %s128, %s129
    %p131 = scmp.eq.s32.totalorder %s130, 0
    %s133 = sadd.s32 %s132, 1
    %s134 = scalar_select %p131, %s132, %s133
    %p137 = pneg %p131
    %p138 = scmp.eq.s32.totalorder %s10, 1
    %p139 = por %p137, %p138
    %p140 = scmp.ne.s32.totalorder %s132, %s135
    %p141 = scmp.eq.s32.totalorder %s10, 0
    %p142 = por %p140, %p141
    %p143 = scmp.ne.s32.totalorder %s132, %s135
    %p144 = scmp.eq.s32.totalorder %s15, 1
    %p145 = por %p143, %p144
    %p146 = scmp.ne.s32.totalorder %s135, %s136
    %p147 = scmp.eq.s32.totalorder %s15, 0
    %p148 = por %p146, %p147
    %p149 = scmp.ne.s32.totalorder %s135, %s136
    %p150 = scmp.eq.s32.totalorder %s16, 1
    %p151 = por %p149, %p150
    %p153 = scmp.ne.s32.totalorder %s136, %s152
    %p154 = scmp.eq.s32.totalorder %s16, 0
    %p155 = por %p153, %p154
    %p156 = scmp.le.s32.totalorder 1, %s10
    %p157 = scmp.lt.s32.totalorder %s10, 3
    %p158 = pnand %p156, %p157
    %p159 = pneg %p158
    // Predicated region
    $region9: #{d_upproj_block.19} parent=5 // pred_check
      _
    $region10: #{d_upproj_block.19} parent=5 // pred_check_branch
      %161 = sbr.rel (%p158) target = $region12
    $region11: #{d_upproj_block.19} parent=5 // pred_region
      %s162 = ssub.s32 %s10, 1
      // Predicated region
      $region13: #{d_upproj_block.19} parent=11 // pred_check
        %p163 = pneg %p71
      $region14: #{d_upproj_block.19} parent=11 // pred_check_branch
        %165 = sbr.rel (%p163) target = $region16
      $region15: #{d_upproj_block.19} parent=11 // pred_region
        _
      $region16: #{d_upproj_block.19} parent=11 // pred_fallthru
        _
      // Predicated region
      $region17: #{d_upproj_block.19} parent=11 // pred_check
        %p166 = pneg %p92
      $region18: #{d_upproj_block.19} parent=11 // pred_check_branch
        %168 = sbr.rel (%p166) target = $region20
      $region19: #{d_upproj_block.19} parent=11 // pred_region
        _
      $region20: #{d_upproj_block.19} parent=11 // pred_fallthru
        _
    $region12: #{d_upproj_block.19} parent=5 // pred_fallthru
      _
    %p169 = scmp.lt.s32.totalorder %s10, 2
    // Predicated region
    $region21: #{d_upproj_block.19} parent=5 // pred_check
      %p170 = pneg %p169
    $region22: #{d_upproj_block.19} parent=5 // pred_check_branch
      %172 = sbr.rel (%p170) target = $region24
    $region23: #{d_upproj_block.19} parent=5 // pred_region
      // Predicated region
      $region25: #{d_upproj_block.19} parent=23 // pred_check
        %p173 = pneg %p44
      $region26: #{d_upproj_block.19} parent=23 // pred_check_branch
        %175 = sbr.rel (%p173) target = $region28
      $region27: #{d_upproj_block.19} parent=23 // pred_region
        %p176 = scmp.lt.s32.totalorder %s17, 1
        %s177 = scalar_select %p176, %s17, 1
        %p178 = scmp.lt.s32.totalorder %s18, 0
        %s179 = scalar_select %p178, %s18, 0
        %s180 = smul.addr %s177, 4
        %s181 = sadd.s32 %s179, %s180
        %s182 = smul.addr %s181, 8
        %s183 = scalar_lea.vmem %s0, %s182
      $region28: #{d_upproj_block.19} parent=23 // pred_fallthru
        _
      // Predicated region
      $region29: #{d_upproj_block.19} parent=23 // pred_check
        %p184 = pneg %p114
      $region30: #{d_upproj_block.19} parent=23 // pred_check_branch
        %186 = sbr.rel (%p184) target = $region32
      $region31: #{d_upproj_block.19} parent=23 // pred_region
        %p187 = scmp.lt.s32.totalorder %s17, 1
        %s188 = scalar_select %p187, %s17, 1
        %p189 = scmp.lt.s32.totalorder %s18, 0
        %s190 = scalar_select %p189, %s18, 0
        %s191 = sadd.s32 %s190, %s188
        %s192 = smul.addr %s191, 8
        %s193 = scalar_lea.vmem %s3, %s192
      $region32: #{d_upproj_block.19} parent=23 // pred_fallthru
        _
    $region24: #{d_upproj_block.19} parent=5 // pred_fallthru
      _
    %p194 = scmp.le.s32.totalorder 1, %s10
    %p195 = scmp.lt.s32.totalorder %s10, 3
    %p196 = pnand %p194, %p195
    %p197 = pneg %p196
    // Predicated region
    $region33: #{d_upproj_block.19} parent=5 // pred_check
      _
    $region34: #{d_upproj_block.19} parent=5 // pred_check_branch
      %199 = sbr.rel (%p196) target = $region36
    $region35: #{d_upproj_block.19} parent=5 // pred_region
      %s200 = ssub.s32 %s10, 1
      %p201 = scmp.lt.s32.totalorder %s19, 1
      %s202 = scalar_select %p201, %s19, 1
      %p203 = scmp.lt.s32.totalorder %s20, 0
      %s204 = scalar_select %p203, %s20, 0
      %s205 = smul.addr %s202, 4
      %s206 = sadd.s32 %s204, %s205
      %s207 = smul.addr %s206, 8
      %s208 = scalar_lea.vmem %s0, %s207
      %p209 = pneg %p50
      %p210 = pneg %p47
      %p211 = pneg %p71
      %p212 = pneg %p68
      %p213 = pneg %p92
      %p214 = pneg %p89
      %p215 = scmp.lt.s32.totalorder %s19, 1
      %s216 = scalar_select %p215, %s19, 1
      %p217 = scmp.lt.s32.totalorder %s20, 0
      %s218 = scalar_select %p217, %s20, 0
      %s219 = sadd.s32 %s218, %s216
      %s220 = smul.addr %s219, 8
      %s221 = scalar_lea.vmem %s3, %s220
      %p222 = pneg %p120
      %p223 = pneg %p117
      %p224 = pneg %p148
      %p225 = pneg %p145
      %p226 = scmp.lt.s32.totalorder %s19, 1
      %s227 = scalar_select %p226, %s19, 1
      %p228 = scmp.lt.s32.totalorder %s20, 0
      %s229 = scalar_select %p228, %s20, 0
      %s230 = sadd.s32 %s229, %s227
      %s231 = smul.addr %s230, 8
      %s232 = scalar_lea.vmem %s4, %s231
      %p233 = scmp.lt.s32.totalorder %s19, 1
      %s234 = scalar_select %p233, %s19, 1
      %p235 = scmp.lt.s32.totalorder %s20, 0
      %s236 = scalar_select %p235, %s20, 0
      %s237 = smul.addr %s234, 4
      %s238 = sadd.s32 %s236, %s237
      %s239 = smul.addr %s238, 8
      %s240 = scalar_lea.vmem %s0, %s239
      %p241 = scmp.lt.s32.totalorder %s19, 1
      %s242 = scalar_select %p241, %s19, 1
      %p243 = scmp.lt.s32.totalorder %s20, 0
      %s244 = scalar_select %p243, %s20, 0
      %s245 = sadd.s32 %s244, %s242
      %s246 = smul.addr %s245, 8
      %s247 = scalar_lea.vmem %s3, %s246
      %p248 = scmp.lt.s32.totalorder %s19, 1
      %s249 = scalar_select %p248, %s19, 1
      %p250 = scmp.lt.s32.totalorder %s20, 0
      %s251 = scalar_select %p250, %s20, 0
      %s252 = sadd.s32 %s251, %s249
      %s253 = smul.addr %s252, 8
      %s254 = scalar_lea.vmem %s4, %s253
      %v255 = vld [vmem:[%s1] sm:$0xff]
      %v256 = vld [vmem:[%s240] sm:$0xff]
      %v257 = vld [vmem:[%s240 + $0x8] sm:$0xff]
      %v258 = vld [vmem:[%s240 + $0x10] sm:$0xff]
      %v259 = vld [vmem:[%s240 + $0x18] sm:$0xff]
      %v260 = vld [vmem:[%s2] sm:$0xff]
      %262 = vset.pattern.permute.xlu0 0
      %263 = vperm.xlu0 %262, %v260
      %v264 = vpop.permute.xlu0 %263
      %vm266 = vcmask 261120
      %v268 = vsel %vm266, %v255, 0
      %270 = vmatprep.subr.mxu0 0.0
      %v271 = vand.u32 %v256, 4294901760
      %272 = vmatpush1.msra.mxu0 %v271
      %273 = vmatprep.subr.mxu0 0.0
      %v274 = vand.u32 %v257, 4294901760
      %275 = vmatpush1.msra.mxu0 %v274
      %276 = vmatprep.subr.mxu0 0.0
      %v277 = vand.u32 %v258, 4294901760
      %278 = vmatpush1.msra.mxu0 %v277
      %279 = vmatprep.subr.mxu0 0.0
      %v280 = vand.u32 %v259, 4294901760
      %281 = vmatpush1.msra.mxu0 %v280
      %282 = vmatprep.subr.mxu0 0.0
      %283 = vmatpush1.msra.mxu0 0.0
      %284 = vmatprep.subr.mxu0 0.0
      %285 = vmatpush1.msra.mxu0 0.0
      %286 = vmatprep.subr.mxu0 0.0
      %287 = vmatpush1.msra.mxu0 0.0
      %288 = vmatprep.subr.mxu0 0.0
      %289 = vmatpush1.msra.mxu0 0.0
      %290 = vmatprep.subr.mxu0 0.0
      %291 = vmatpush1.msra.mxu0 0.0
      %292 = vmatprep.subr.mxu0 0.0
      %293 = vmatpush1.msra.mxu0 0.0
      %294 = vmatprep.subr.mxu0 0.0
      %295 = vmatpush1.msra.mxu0 0.0
      %296 = vmatprep.subr.mxu0 0.0
      %297 = vmatpush1.msra.mxu0 0.0
      %298 = vmatprep.subr.mxu0 0.0
      %299 = vmatpush1.msra.mxu0 0.0
      %300 = vmatprep.subr.mxu0 0.0
      %301 = vmatpush1.msra.mxu0 0.0
      %302 = vmatprep.subr.mxu0 0.0
      %303 = vmatpush1.msra.mxu0 0.0
      %304 = vmatprep.subr.mxu0 0.0
      %305 = vmatpush1.msra.mxu0 0.0
      %306 = vmatprep.subr.mxu0 0.0
      %307 = vmatpush1.msra.mxu0 0.0
      %308 = vmatprep.subr.mxu0 0.0
      %309 = vmatpush1.msra.mxu0 0.0
      %310 = vmatprep.subr.mxu0 0.0
      %311 = vmatpush1.msra.mxu0 0.0
      %312 = vmatprep.subr.mxu0 0.0
      %313 = vmatpush1.msra.mxu0 0.0
      %314 = vmatprep.subr.mxu0 0.0
      %315 = vmatpush1.msra.mxu0 0.0
      %316 = vmatprep.subr.mxu0 0.0
      %317 = vmatpush1.msra.mxu0 0.0
      %318 = vmatprep.subr.mxu0 0.0
      %319 = vmatpush1.msra.mxu0 0.0
      %320 = vmatprep.subr.mxu0 0.0
      %321 = vmatpush1.msra.mxu0 0.0
      %322 = vmatprep.subr.mxu0 0.0
      %323 = vmatpush1.msra.mxu0 0.0
      %324 = vmatprep.subr.mxu0 0.0
      %325 = vmatpush1.msra.mxu0 0.0
      %326 = vmatprep.subr.mxu0 0.0
      %327 = vmatpush1.msra.mxu0 0.0
      %328 = vmatprep.subr.mxu0 0.0
      %329 = vmatpush1.msra.mxu0 0.0
      %330 = vmatprep.subr.mxu0 0.0
      %331 = vmatpush1.msra.mxu0 0.0
      %332 = vmatprep.subr.mxu0 0.0
      %333 = vmatpush1.msra.mxu0 0.0
      %334 = vmatprep.subr.mxu0 0.0
      %335 = vmatpush1.msra.mxu0 0.0
      %336 = vmatprep.subr.mxu0 0.0
      %337 = vmatpush1.msra.mxu0 0.0
      %338 = vmatprep.mubr.f32.mxu0 0.0
      %v339 = vand.u32 %v268, 4294901760
      %v340 = vsub.f32 %v268, %v339
      %v341 = vand.u32 %v340, 4294901760
      %v342 = vsub.f32 %v340, %v341
      %v343 = vand.u32 %v342, 4294901760
      %344 = vmatmul.mubr.f32.gmra.mrb[0].mxu0 %v343
      %v345 = vpop.f32.mrb[0].mxu0
      %v346 = vadd.f32 %v264, %v345
      %v347 = vpop.f32.mrb[0].mxu0
      %348 = vdwg.mxu0
      %349 = vmatprep.subr.mxu0 0.0
      %v350 = vand.u32 %v256, 4294901760
      %v351 = vsub.f32 %v256, %v350
      %v352 = vand.u32 %v351, 4294901760
      %v353 = vsub.f32 %v351, %v352
      %v354 = vand.u32 %v353, 4294901760
      %355 = vmatpush1.msra.mxu0 %v354
      %356 = vmatprep.subr.mxu0 0.0
      %v357 = vand.u32 %v257, 4294901760
      %v358 = vsub.f32 %v257, %v357
      %v359 = vand.u32 %v358, 4294901760
      %v360 = vsub.f32 %v358, %v359
      %v361 = vand.u32 %v360, 4294901760
      %362 = vmatpush1.msra.mxu0 %v361
      %363 = vmatprep.subr.mxu0 0.0
      %v364 = vand.u32 %v258, 4294901760
      %v365 = vsub.f32 %v258, %v364
      %v366 = vand.u32 %v365, 4294901760
      %v367 = vsub.f32 %v365, %v366
      %v368 = vand.u32 %v367, 4294901760
      %369 = vmatpush1.msra.mxu0 %v368
      %370 = vmatprep.subr.mxu0 0.0
      %v371 = vand.u32 %v259, 4294901760
      %v372 = vsub.f32 %v259, %v371
      %v373 = vand.u32 %v372, 4294901760
      %v374 = vsub.f32 %v372, %v373
      %v375 = vand.u32 %v374, 4294901760
      %376 = vmatpush1.msra.mxu0 %v375
      %377 = vmatprep.subr.mxu0 0.0
      %378 = vmatpush1.msra.mxu0 0.0
      %379 = vmatprep.subr.mxu0 0.0
      %380 = vmatpush1.msra.mxu0 0.0
      %381 = vmatprep.subr.mxu0 0.0
      %382 = vmatpush1.msra.mxu0 0.0
      %383 = vmatprep.subr.mxu0 0.0
      %384 = vmatpush1.msra.mxu0 0.0
      %385 = vmatprep.subr.mxu0 0.0
      %386 = vmatpush1.msra.mxu0 0.0
      %387 = vmatprep.subr.mxu0 0.0
      %388 = vmatpush1.msra.mxu0 0.0
      %389 = vmatprep.subr.mxu0 0.0
      %390 = vmatpush1.msra.mxu0 0.0
      %391 = vmatprep.subr.mxu0 0.0
      %392 = vmatpush1.msra.mxu0 0.0
      %393 = vmatprep.subr.mxu0 0.0
      %394 = vmatpush1.msra.mxu0 0.0
      %395 = vmatprep.subr.mxu0 0.0
      %396 = vmatpush1.msra.mxu0 0.0
      %397 = vmatprep.subr.mxu0 0.0
      %398 = vmatpush1.msra.mxu0 0.0
      %399 = vmatprep.subr.mxu0 0.0
      %400 = vmatpush1.msra.mxu0 0.0
      %401 = vmatprep.subr.mxu0 0.0
      %402 = vmatpush1.msra.mxu0 0.0
      %403 = vmatprep.subr.mxu0 0.0
      %404 = vmatpush1.msra.mxu0 0.0
      %405 = vmatprep.subr.mxu0 0.0
      %406 = vmatpush1.msra.mxu0 0.0
      %407 = vmatprep.subr.mxu0 0.0
      %408 = vmatpush1.msra.mxu0 0.0
      %409 = vmatprep.subr.mxu0 0.0
      %410 = vmatpush1.msra.mxu0 0.0
      %411 = vmatprep.subr.mxu0 0.0
      %412 = vmatpush1.msra.mxu0 0.0
      %413 = vmatprep.subr.mxu0 0.0
      %414 = vmatpush1.msra.mxu0 0.0
      %415 = vmatprep.subr.mxu0 0.0
      %416 = vmatpush1.msra.mxu0 0.0
      %417 = vmatprep.subr.mxu0 0.0
      %418 = vmatpush1.msra.mxu0 0.0
      %419 = vmatprep.subr.mxu0 0.0
      %420 = vmatpush1.msra.mxu0 0.0
      %421 = vmatprep.subr.mxu0 0.0
      %422 = vmatpush1.msra.mxu0 0.0
      %423 = vmatprep.subr.mxu0 0.0
      %424 = vmatpush1.msra.mxu0 0.0
      %425 = vmatprep.subr.mxu0 0.0
      %426 = vmatpush1.msra.mxu0 0.0
      %427 = vmatprep.subr.mxu0 0.0
      %428 = vmatpush1.msra.mxu0 0.0
      %429 = vmatprep.subr.mxu0 0.0
      %430 = vmatpush1.msra.mxu0 0.0
      %431 = vmatprep.subr.mxu0 0.0
      %432 = vmatpush1.msra.mxu0 0.0
      %433 = vmatprep.mubr.f32.mxu0 0.0
      %v434 = vand.u32 %v268, 4294901760
      %435 = vmatmul.mubr.f32.gmra.mrb[0].mxu0 %v434
      %v436 = vpop.f32.mrb[0].mxu0
      %v437 = vadd.f32 %v346, %v436
      %v438 = vpop.f32.mrb[0].mxu0
      %439 = vdwg.mxu0
      %440 = vmatprep.subr.mxu0 0.0
      %v441 = vand.u32 %v256, 4294901760
      %v442 = vsub.f32 %v256, %v441
      %443 = vmatpush1.msra.mxu0 %v442
      %444 = vmatprep.subr.mxu0 0.0
      %v445 = vand.u32 %v257, 4294901760
      %v446 = vsub.f32 %v257, %v445
      %447 = vmatpush1.msra.mxu0 %v446
      %448 = vmatprep.subr.mxu0 0.0
      %v449 = vand.u32 %v258, 4294901760
      %v450 = vsub.f32 %v258, %v449
      %451 = vmatpush1.msra.mxu0 %v450
      %452 = vmatprep.subr.mxu0 0.0
      %v453 = vand.u32 %v259, 4294901760
      %v454 = vsub.f32 %v259, %v453
      %455 = vmatpush1.msra.mxu0 %v454
      %456 = vmatprep.subr.mxu0 0.0
      %457 = vmatpush1.msra.mxu0 0.0
      %458 = vmatprep.subr.mxu0 0.0
      %459 = vmatpush1.msra.mxu0 0.0
      %460 = vmatprep.subr.mxu0 0.0
      %461 = vmatpush1.msra.mxu0 0.0
      %462 = vmatprep.subr.mxu0 0.0
      %463 = vmatpush1.msra.mxu0 0.0
      %464 = vmatprep.subr.mxu0 0.0
      %465 = vmatpush1.msra.mxu0 0.0
      %466 = vmatprep.subr.mxu0 0.0
      %467 = vmatpush1.msra.mxu0 0.0
      %468 = vmatprep.subr.mxu0 0.0
      %469 = vmatpush1.msra.mxu0 0.0
      %470 = vmatprep.subr.mxu0 0.0
      %471 = vmatpush1.msra.mxu0 0.0
      %472 = vmatprep.subr.mxu0 0.0
      %473 = vmatpush1.msra.mxu0 0.0
      %474 = vmatprep.subr.mxu0 0.0
      %475 = vmatpush1.msra.mxu0 0.0
      %476 = vmatprep.subr.mxu0 0.0
      %477 = vmatpush1.msra.mxu0 0.0
      %478 = vmatprep.subr.mxu0 0.0
      %479 = vmatpush1.msra.mxu0 0.0
      %480 = vmatprep.subr.mxu0 0.0
      %481 = vmatpush1.msra.mxu0 0.0
      %482 = vmatprep.subr.mxu0 0.0
      %483 = vmatpush1.msra.mxu0 0.0
      %484 = vmatprep.subr.mxu0 0.0
      %485 = vmatpush1.msra.mxu0 0.0
      %486 = vmatprep.subr.mxu0 0.0
      %487 = vmatpush1.msra.mxu0 0.0
      %488 = vmatprep.subr.mxu0 0.0
      %489 = vmatpush1.msra.mxu0 0.0
      %490 = vmatprep.subr.mxu0 0.0
      %491 = vmatpush1.msra.mxu0 0.0
      %492 = vmatprep.subr.mxu0 0.0
      %493 = vmatpush1.msra.mxu0 0.0
      %494 = vmatprep.subr.mxu0 0.0
      %495 = vmatpush1.msra.mxu0 0.0
      %496 = vmatprep.subr.mxu0 0.0
      %497 = vmatpush1.msra.mxu0 0.0
      %498 = vmatprep.subr.mxu0 0.0
      %499 = vmatpush1.msra.mxu0 0.0
      %500 = vmatprep.subr.mxu0 0.0
      %501 = vmatpush1.msra.mxu0 0.0
      %502 = vmatprep.subr.mxu0 0.0
      %503 = vmatpush1.msra.mxu0 0.0
      %504 = vmatprep.subr.mxu0 0.0
      %505 = vmatpush1.msra.mxu0 0.0
      %506 = vmatprep.subr.mxu0 0.0
      %507 = vmatpush1.msra.mxu0 0.0
      %508 = vmatprep.subr.mxu0 0.0
      %509 = vmatpush1.msra.mxu0 0.0
      %510 = vmatprep.subr.mxu0 0.0
      %511 = vmatpush1.msra.mxu0 0.0
      %512 = vmatprep.mubr.f32.mxu0 0.0
      %v513 = vand.u32 %v268, 4294901760
      %v514 = vsub.f32 %v268, %v513
      %515 = vmatmul.mubr.f32.gmra.mrb[0].mxu0 %v514
      %v516 = vpop.f32.mrb[0].mxu0
      %v517 = vadd.f32 %v437, %v516
      %v518 = vpop.f32.mrb[0].mxu0
      %519 = vdwg.mxu0
      %520 = vmatprep.subr.mxu0 0.0
      %v521 = vand.u32 %v256, 4294901760
      %522 = vmatpush1.msra.mxu0 %v521
      %523 = vmatprep.subr.mxu0 0.0
      %v524 = vand.u32 %v257, 4294901760
      %525 = vmatpush1.msra.mxu0 %v524
      %526 = vmatprep.subr.mxu0 0.0
      %v527 = vand.u32 %v258, 4294901760
      %528 = vmatpush1.msra.mxu0 %v527
      %529 = vmatprep.subr.mxu0 0.0
      %v530 = vand.u32 %v259, 4294901760
      %531 = vmatpush1.msra.mxu0 %v530
      %532 = vmatprep.subr.mxu0 0.0
      %533 = vmatpush1.msra.mxu0 0.0
      %534 = vmatprep.subr.mxu0 0.0
      %535 = vmatpush1.msra.mxu0 0.0
      %536 = vmatprep.subr.mxu0 0.0
      %537 = vmatpush1.msra.mxu0 0.0
      %538 = vmatprep.subr.mxu0 0.0
      %539 = vmatpush1.msra.mxu0 0.0
      %540 = vmatprep.subr.mxu0 0.0
      %541 = vmatpush1.msra.mxu0 0.0
      %542 = vmatprep.subr.mxu0 0.0
      %543 = vmatpush1.msra.mxu0 0.0
      %544 = vmatprep.subr.mxu0 0.0
      %545 = vmatpush1.msra.mxu0 0.0
      %546 = vmatprep.subr.mxu0 0.0
      %547 = vmatpush1.msra.mxu0 0.0
      %548 = vmatprep.subr.mxu0 0.0
      %549 = vmatpush1.msra.mxu0 0.0
      %550 = vmatprep.subr.mxu0 0.0
      %551 = vmatpush1.msra.mxu0 0.0
      %552 = vmatprep.subr.mxu0 0.0
      %553 = vmatpush1.msra.mxu0 0.0
      %554 = vmatprep.subr.mxu0 0.0
      %555 = vmatpush1.msra.mxu0 0.0
      %556 = vmatprep.subr.mxu0 0.0
      %557 = vmatpush1.msra.mxu0 0.0
      %558 = vmatprep.subr.mxu0 0.0
      %559 = vmatpush1.msra.mxu0 0.0
      %560 = vmatprep.subr.mxu0 0.0
      %561 = vmatpush1.msra.mxu0 0.0
      %562 = vmatprep.subr.mxu0 0.0
      %563 = vmatpush1.msra.mxu0 0.0
      %564 = vmatprep.subr.mxu0 0.0
      %565 = vmatpush1.msra.mxu0 0.0
      %566 = vmatprep.subr.mxu0 0.0
      %567 = vmatpush1.msra.mxu0 0.0
      %568 = vmatprep.subr.mxu0 0.0
      %569 = vmatpush1.msra.mxu0 0.0
      %570 = vmatprep.subr.mxu0 0.0
      %571 = vmatpush1.msra.mxu0 0.0
      %572 = vmatprep.subr.mxu0 0.0
      %573 = vmatpush1.msra.mxu0 0.0
      %574 = vmatprep.subr.mxu0 0.0
      %575 = vmatpush1.msra.mxu0 0.0
      %576 = vmatprep.subr.mxu0 0.0
      %577 = vmatpush1.msra.mxu0 0.0
      %578 = vmatprep.subr.mxu0 0.0
      %579 = vmatpush1.msra.mxu0 0.0
      %580 = vmatprep.subr.mxu0 0.0
      %581 = vmatpush1.msra.mxu0 0.0
      %582 = vmatprep.subr.mxu0 0.0
      %583 = vmatpush1.msra.mxu0 0.0
      %584 = vmatprep.subr.mxu0 0.0
      %585 = vmatpush1.msra.mxu0 0.0
      %586 = vmatprep.subr.mxu0 0.0
      %587 = vmatpush1.msra.mxu0 0.0
      %588 = vmatprep.mubr.f32.mxu0 0.0
      %v589 = vand.u32 %v268, 4294901760
      %v590 = vsub.f32 %v268, %v589
      %v591 = vand.u32 %v590, 4294901760
      %592 = vmatmul.mubr.f32.gmra.mrb[0].mxu0 %v591
      %v593 = vpop.f32.mrb[0].mxu0
      %v594 = vadd.f32 %v517, %v593
      %v595 = vpop.f32.mrb[0].mxu0
      %596 = vdwg.mxu0
      %597 = vmatprep.subr.mxu0 0.0
      %v598 = vand.u32 %v256, 4294901760
      %v599 = vsub.f32 %v256, %v598
      %v600 = vand.u32 %v599, 4294901760
      %601 = vmatpush1.msra.mxu0 %v600
      %602 = vmatprep.subr.mxu0 0.0
      %v603 = vand.u32 %v257, 4294901760
      %v604 = vsub.f32 %v257, %v603
      %v605 = vand.u32 %v604, 4294901760
      %606 = vmatpush1.msra.mxu0 %v605
      %607 = vmatprep.subr.mxu0 0.0
      %v608 = vand.u32 %v258, 4294901760
      %v609 = vsub.f32 %v258, %v608
      %v610 = vand.u32 %v609, 4294901760
      %611 = vmatpush1.msra.mxu0 %v610
      %612 = vmatprep.subr.mxu0 0.0
      %v613 = vand.u32 %v259, 4294901760
      %v614 = vsub.f32 %v259, %v613
      %v615 = vand.u32 %v614, 4294901760
      %616 = vmatpush1.msra.mxu0 %v615
      %617 = vmatprep.subr.mxu0 0.0
      %618 = vmatpush1.msra.mxu0 0.0
      %619 = vmatprep.subr.mxu0 0.0
      %620 = vmatpush1.msra.mxu0 0.0
      %621 = vmatprep.subr.mxu0 0.0
      %622 = vmatpush1.msra.mxu0 0.0
      %623 = vmatprep.subr.mxu0 0.0
      %624 = vmatpush1.msra.mxu0 0.0
      %625 = vmatprep.subr.mxu0 0.0
      %626 = vmatpush1.msra.mxu0 0.0
      %627 = vmatprep.subr.mxu0 0.0
      %628 = vmatpush1.msra.mxu0 0.0
      %629 = vmatprep.subr.mxu0 0.0
      %630 = vmatpush1.msra.mxu0 0.0
      %631 = vmatprep.subr.mxu0 0.0
      %632 = vmatpush1.msra.mxu0 0.0
      %633 = vmatprep.subr.mxu0 0.0
      %634 = vmatpush1.msra.mxu0 0.0
      %635 = vmatprep.subr.mxu0 0.0
      %636 = vmatpush1.msra.mxu0 0.0
      %637 = vmatprep.subr.mxu0 0.0
      %638 = vmatpush1.msra.mxu0 0.0
      %639 = vmatprep.subr.mxu0 0.0
      %640 = vmatpush1.msra.mxu0 0.0
      %641 = vmatprep.subr.mxu0 0.0
      %642 = vmatpush1.msra.mxu0 0.0
      %643 = vmatprep.subr.mxu0 0.0
      %644 = vmatpush1.msra.mxu0 0.0
      %645 = vmatprep.subr.mxu0 0.0
      %646 = vmatpush1.msra.mxu0 0.0
      %647 = vmatprep.subr.mxu0 0.0
      %648 = vmatpush1.msra.mxu0 0.0
      %649 = vmatprep.subr.mxu0 0.0
      %650 = vmatpush1.msra.mxu0 0.0
      %651 = vmatprep.subr.mxu0 0.0
      %652 = vmatpush1.msra.mxu0 0.0
      %653 = vmatprep.subr.mxu0 0.0
      %654 = vmatpush1.msra.mxu0 0.0
      %655 = vmatprep.subr.mxu0 0.0
      %656 = vmatpush1.msra.mxu0 0.0
      %657 = vmatprep.subr.mxu0 0.0
      %658 = vmatpush1.msra.mxu0 0.0
      %659 = vmatprep.subr.mxu0 0.0
      %660 = vmatpush1.msra.mxu0 0.0
      %661 = vmatprep.subr.mxu0 0.0
      %662 = vmatpush1.msra.mxu0 0.0
      %663 = vmatprep.subr.mxu0 0.0
      %664 = vmatpush1.msra.mxu0 0.0
      %665 = vmatprep.subr.mxu0 0.0
      %666 = vmatpush1.msra.mxu0 0.0
      %667 = vmatprep.subr.mxu0 0.0
      %668 = vmatpush1.msra.mxu0 0.0
      %669 = vmatprep.subr.mxu0 0.0
      %670 = vmatpush1.msra.mxu0 0.0
      %671 = vmatprep.subr.mxu0 0.0
      %672 = vmatpush1.msra.mxu0 0.0
      %673 = vmatprep.mubr.f32.mxu0 0.0
      %v674 = vand.u32 %v268, 4294901760
      %675 = vmatmul.mubr.f32.gmra.mrb[0].mxu0 %v674
      %v676 = vpop.f32.mrb[0].mxu0
      %v677 = vadd.f32 %v594, %v676
      %v678 = vpop.f32.mrb[0].mxu0
      %679 = vdwg.mxu0
      %680 = vmatprep.subr.mxu0 0.0
      %v681 = vand.u32 %v256, 4294901760
      %682 = vmatpush1.msra.mxu0 %v681
      %683 = vmatprep.subr.mxu0 0.0
      %v684 = vand.u32 %v257, 4294901760
      %685 = vmatpush1.msra.mxu0 %v684
      %686 = vmatprep.subr.mxu0 0.0
      %v687 = vand.u32 %v258, 4294901760
      %688 = vmatpush1.msra.mxu0 %v687
      %689 = vmatprep.subr.mxu0 0.0
      %v690 = vand.u32 %v259, 4294901760
      %691 = vmatpush1.msra.mxu0 %v690
      %692 = vmatprep.subr.mxu0 0.0
      %693 = vmatpush1.msra.mxu0 0.0
      %694 = vmatprep.subr.mxu0 0.0
      %695 = vmatpush1.msra.mxu0 0.0
      %696 = vmatprep.subr.mxu0 0.0
      %697 = vmatpush1.msra.mxu0 0.0
      %698 = vmatprep.subr.mxu0 0.0
      %699 = vmatpush1.msra.mxu0 0.0
      %700 = vmatprep.subr.mxu0 0.0
      %701 = vmatpush1.msra.mxu0 0.0
      %702 = vmatprep.subr.mxu0 0.0
      %703 = vmatpush1.msra.mxu0 0.0
      %704 = vmatprep.subr.mxu0 0.0
      %705 = vmatpush1.msra.mxu0 0.0
      %706 = vmatprep.subr.mxu0 0.0
      %707 = vmatpush1.msra.mxu0 0.0
      %708 = vmatprep.subr.mxu0 0.0
      %709 = vmatpush1.msra.mxu0 0.0
      %710 = vmatprep.subr.mxu0 0.0
      %711 = vmatpush1.msra.mxu0 0.0
      %712 = vmatprep.subr.mxu0 0.0
      %713 = vmatpush1.msra.mxu0 0.0
      %714 = vmatprep.subr.mxu0 0.0
      %715 = vmatpush1.msra.mxu0 0.0
      %716 = vmatprep.subr.mxu0 0.0
      %717 = vmatpush1.msra.mxu0 0.0
      %718 = vmatprep.subr.mxu0 0.0
      %719 = vmatpush1.msra.mxu0 0.0
      %720 = vmatprep.subr.mxu0 0.0
      %721 = vmatpush1.msra.mxu0 0.0
      %722 = vmatprep.subr.mxu0 0.0
      %723 = vmatpush1.msra.mxu0 0.0
      %724 = vmatprep.subr.mxu0 0.0
      %725 = vmatpush1.msra.mxu0 0.0
      %726 = vmatprep.subr.mxu0 0.0
      %727 = vmatpush1.msra.mxu0 0.0
      %728 = vmatprep.subr.mxu0 0.0
      %729 = vmatpush1.msra.mxu0 0.0
      %730 = vmatprep.subr.mxu0 0.0
      %731 = vmatpush1.msra.mxu0 0.0
      %732 = vmatprep.subr.mxu0 0.0
      %733 = vmatpush1.msra.mxu0 0.0
      %734 = vmatprep.subr.mxu0 0.0
      %735 = vmatpush1.msra.mxu0 0.0
      %736 = vmatprep.subr.mxu0 0.0
      %737 = vmatpush1.msra.mxu0 0.0
      %738 = vmatprep.subr.mxu0 0.0
      %739 = vmatpush1.msra.mxu0 0.0
      %740 = vmatprep.subr.mxu0 0.0
      %741 = vmatpush1.msra.mxu0 0.0
      %742 = vmatprep.subr.mxu0 0.0
      %743 = vmatpush1.msra.mxu0 0.0
      %744 = vmatprep.subr.mxu0 0.0
      %745 = vmatpush1.msra.mxu0 0.0
      %746 = vmatprep.subr.mxu0 0.0
      %747 = vmatpush1.msra.mxu0 0.0
      %748 = vmatprep.mubr.f32.mxu0 0.0
      %v749 = vand.u32 %v268, 4294901760
      %750 = vmatmul.mubr.f32.gmra.mrb[0].mxu0 %v749
      %v751 = vpop.f32.mrb[0].mxu0
      %v752 = vadd.f32 %v677, %v751
      %v753 = vpop.f32.mrb[0].mxu0
      %754 = vdwg.mxu0
      %vm755 = vcmp.ge.f32.partialorder %v752, 0.0
      %v756 = vmul.f32 %v752, 0.2
      %v757 = vsel %vm755, %v752, %v756
      %v758 = vld [vmem:[%s247] sm:$0xff]
      %v759 = vadd.f32 %v757, %v758
      %760 = vst [vmem:[%s254] sm:$0xff] %v759
      %p761 = scmp.lt.s32.totalorder %s19, 1
      %s762 = scalar_select %p761, %s19, 1
      %p763 = scmp.lt.s32.totalorder %s20, 0
      %s764 = scalar_select %p763, %s20, 0
      %s765 = sadd.s32 %s764, %s762
      %s766 = smul.addr %s765, 8
      %s767 = scalar_lea.vmem %s4, %s766
      // Predicated region
      $region37: #{d_upproj_block.19} parent=35 // pred_check
        %p768 = pneg %p145
      $region38: #{d_upproj_block.19} parent=35 // pred_check_branch
        %770 = sbr.rel (%p768) target = $region40
      $region39: #{d_upproj_block.19} parent=35 // pred_region
        _
      $region40: #{d_upproj_block.19} parent=35 // pred_fallthru
        _
    $region36: #{d_upproj_block.19} parent=5 // pred_fallthru
      _
    %p771 = scmp.le.s32.totalorder 2, %s10
    // Predicated region
    $region41: #{d_upproj_block.19} parent=5 // pred_check
      %p772 = pneg %p771
    $region42: #{d_upproj_block.19} parent=5 // pred_check_branch
      %774 = sbr.rel (%p772) target = $region44
    $region43: #{d_upproj_block.19} parent=5 // pred_region
      %s775 = ssub.s32 %s10, 2
      // Predicated region
      $region45: #{d_upproj_block.19} parent=43 // pred_check
        %p776 = pneg %p151
      $region46: #{d_upproj_block.19} parent=43 // pred_check_branch
        %778 = sbr.rel (%p776) target = $region48
      $region47: #{d_upproj_block.19} parent=43 // pred_region
        %p779 = scmp.lt.s32.totalorder %s21, 1
        %s780 = scalar_select %p779, %s21, 1
        %p781 = scmp.lt.s32.totalorder %s22, 0
        %s782 = scalar_select %p781, %s22, 0
        %s783 = sadd.s32 %s782, %s780
        %s784 = smul.addr %s783, 8
        %s785 = scalar_lea.vmem %s4, %s784
      $region48: #{d_upproj_block.19} parent=43 // pred_fallthru
        _
    $region44: #{d_upproj_block.19} parent=5 // pred_fallthru
      _
  $region6: #{d_upproj_block.19} parent=0 // loop_footer
    %s14 = sadd.s32 1, %s10
  $region7: #{d_upproj_block.19} parent=0 // loop_footer_branch
    %9 = sbr.rel target = $region3
  $region8: #{d_upproj_block.19} parent=0 // loop_exit
    _

</llo_original>
